<compile_context>
chip_gen: v5e
topology: v5e:2x2
jax: 0.10.0
libtpu: 0.0.40
codegen_flags: <defaults>
</compile_context>

<pallas_src>
import functools
import math

import jax
import jax.numpy as jnp
from jax import lax
from jax.experimental import pallas as pl
from jax.experimental.pallas import tpu as pltpu

GN_GROUPS = 32
GN_EPS = 1e-5


# ----------------------------- kernel helpers ------------------------------
def _gn_scale_shift(y, gamma, beta, p_map, q_map, eps=GN_EPS):
    """One-pass GroupNorm stats -> per-channel affine (scale, shift).

    y: (HW, C) f32; gamma/beta: (1, C) f32.  Returns (scale, shift), each
    (1, C) f32, such that GroupNorm(y) == y * scale + shift.  Group stats come
    from per-channel [mean, mean-of-squares] rows pushed through two tiny
    matmuls against the precomputed one-hot group maps:
      p_map: (C, G) channel-stat -> group-stat averaging map
      q_map: (G, C) group value  -> per-channel broadcast map
    No centered copy of the slab is materialized.
    """
    stats = jnp.concatenate(
        [jnp.mean(y, axis=0, keepdims=True),
         jnp.mean(y * y, axis=0, keepdims=True)], axis=0)               # (2, C)
    g = jnp.dot(jnp.dot(stats, p_map, preferred_element_type=jnp.float32),
                q_map, preferred_element_type=jnp.float32)              # (2, C)
    mean, meansq = g[0:1, :], g[1:2, :]
    var = jnp.maximum(meansq - mean * mean, 0.0)
    scale = gamma * lax.rsqrt(var + eps)
    shift = beta - mean * scale
    return scale, shift


def bottleneck_kernel(x_ref, w1_ref, ws_ref, w2_ref, w3_ref,
                      g1_ref, b1_ref, g2_ref, b2_ref,
                      g3_ref, b3_ref, gs_ref, bs_ref,
                      pcb_ref, qcb_ref, pco_ref, qco_ref,
                      out_ref, *, H, W):
    HW = H * W
    Cb = w3_ref.shape[0]

    # ---- conv1 (1x1) + projection shortcut (1x1) ---------------------------
    # One bf16 cast of the input slab; both dots reuse it.  Two separate dots
    # (not one fused (Cin, Cb+Cout) dot) so the split stays lane-tile aligned.
    xb = x_ref[...].astype(jnp.bfloat16)                                # (HW, Cin)
    h1 = jnp.dot(xb, w1_ref[...], preferred_element_type=jnp.float32)   # (HW, Cb)
    sc = jnp.dot(xb, ws_ref[...], preferred_element_type=jnp.float32)   # (HW, Cout)

    # ---- GN1 + ReLU fused into one normalize pass, straight to bf16 --------
    s1, t1 = _gn_scale_shift(h1, g1_ref[...], b1_ref[...],
                             pcb_ref[...], qcb_ref[...])
    h1b = jnp.maximum(h1 * s1 + t1, 0.0).astype(jnp.bfloat16)           # (HW, Cb)

    # ---- conv2: 3x3, pad=1, stride=1 as nine accumulated dots --------------
    # A (dh, dw) tap of the flattened image is a row shift by dh*W + dw.  Zero
    # row padding covers out-of-image rows; a per-dw 0/1 column mask kills the
    # wrap-around between image rows.  All tap assembly is in bf16 (half the
    # vector load/store bytes); no (HW, 9*Cb) patches matrix is built.
    col = lax.broadcasted_iota(jnp.int32, (HW, 1), 0) % W               # cheap; hoist if more grid axes are added
    col_mask = {-1: (col >= 1).astype(jnp.bfloat16),
                1: (col < (W - 1)).astype(jnp.bfloat16)}
    zpad = jnp.zeros((W + 1, Cb), jnp.bfloat16)
    h1p = jnp.concatenate([zpad, h1b, zpad], axis=0)                    # (HW+2W+2, Cb)
    h2 = None
    k = 0
    for dh in (-1, 0, 1):
        for dw in (-1, 0, 1):
            start = (W + 1) + dh * W + dw
            t = h1p[start:start + HW, :]                                # (HW, Cb) bf16
            if dw != 0:
                t = t * col_mask[dw]
            prod = jnp.dot(t, w2_ref[k], preferred_element_type=jnp.float32)
            h2 = prod if h2 is None else h2 + prod
            k += 1

    # ---- GN2 + ReLU fused, bf16 out for the conv3 MXU pass ------------------
    s2, t2 = _gn_scale_shift(h2, g2_ref[...], b2_ref[...],
                             pcb_ref[...], qcb_ref[...])
    h2b = jnp.maximum(h2 * s2 + t2, 0.0).astype(jnp.bfloat16)           # (HW, Cb)

    # ---- conv3 (1x1) --------------------------------------------------------
    h3 = jnp.dot(h2b, w3_ref[...], preferred_element_type=jnp.float32)  # (HW, Cout)

    # ---- GN3 + shortcut-GN (shared Cout group maps, one stat matmul) --------
    # then normalize + residual add + final ReLU fused into a single pass.
    stats = jnp.concatenate(
        [jnp.mean(h3, axis=0, keepdims=True),
         jnp.mean(h3 * h3, axis=0, keepdims=True),
         jnp.mean(sc, axis=0, keepdims=True),
         jnp.mean(sc * sc, axis=0, keepdims=True)], axis=0)             # (4, Cout)
    g = jnp.dot(jnp.dot(stats, pco_ref[...], preferred_element_type=jnp.float32),
                qco_ref[...], preferred_element_type=jnp.float32)       # (4, Cout)
    m3, e3, ms, es = g[0:1, :], g[1:2, :], g[2:3, :], g[3:4, :]
    s3 = g3_ref[...] * lax.rsqrt(jnp.maximum(e3 - m3 * m3, 0.0) + GN_EPS)
    t3 = b3_ref[...] - m3 * s3
    ss = gs_ref[...] * lax.rsqrt(jnp.maximum(es - ms * ms, 0.0) + GN_EPS)
    ts = bs_ref[...] - ms * ss
    out_ref[...] = jnp.maximum(h3 * s3 + t3 + sc * ss + ts, 0.0).astype(out_ref.dtype)


# ------------------------------- wrapper ------------------------------------
def _vmem_limit_bytes():
    """Scoped-VMEM limit sized per TPU generation (~85% of physical VMEM:
    ~108 MiB on v5e/v6e, ~54 MiB on v7x); conservative fallback if the query
    is unavailable."""
    try:
        cap = int(pltpu.get_tpu_info().vmem_capacity_bytes)
    except Exception:
        cap = 64 * 1024 * 1024
    return min(int(cap * 0.85), 110 * 1024 * 1024)


def bottleneck_block(x_nhwc, params):
    """Forward of BottleneckBlock (stride=1, dilation=1, num_groups=1, GN,
    projection shortcut).  x_nhwc: (N, H, W, Cin); returns (N, H, W, Cout)."""
    N, H, W, Cin = x_nhwc.shape
    Cb, Cout = params["w3"].shape
    # Fail loudly on unsupported constructor variants / shape misuse.
    assert params["w1"].shape == (Cin, Cb) and params["ws"].shape == (Cin, Cout)
    assert Cb % GN_GROUPS == 0 and Cout % GN_GROUPS == 0, \
        "GroupNorm(32, C) requires C % 32 == 0"
    assert Cin != Cout, "identity-shortcut variant not implemented (see TODO)"
    HW = H * W
    x2d = x_nhwc.reshape(N, HW, Cin)          # free reshape: lane-dense slabs

    def rep(shape):                           # replicated (grid-invariant) operand
        nd = len(shape)
        return pl.BlockSpec(shape, lambda n, _nd=nd: (0,) * _nd)

    grid_spec = pltpu.PrefetchScalarGridSpec(
        num_scalar_prefetch=0,
        grid=(N,),
        in_specs=[
            pl.BlockSpec((None, HW, Cin), lambda n: (n, 0, 0)),   # x, batch squeezed
            rep((Cin, Cb)), rep((Cin, Cout)),                     # w1, ws   (bf16)
            rep((9, Cb, Cb)), rep((Cb, Cout)),                    # w2 taps, w3 (bf16)
            rep((1, Cb)), rep((1, Cb)), rep((1, Cb)), rep((1, Cb)),          # g1,b1,g2,b2
            rep((1, Cout)), rep((1, Cout)), rep((1, Cout)), rep((1, Cout)),  # g3,b3,gs,bs
            rep((Cb, GN_GROUPS)), rep((GN_GROUPS, Cb)),           # GN maps (Cb)
            rep((Cout, GN_GROUPS)), rep((GN_GROUPS, Cout)),       # GN maps (Cout)
        ],
        out_specs=pl.BlockSpec((None, HW, Cout), lambda n: (n, 0, 0)),
    )
    kernel = functools.partial(bottleneck_kernel, H=H, W=W)
    out2d = pl.pallas_call(
        kernel,
        # I/O stays in the caller's dtype (f32 here).  If the surrounding net
        # runs bf16, pass bf16 activations in; no extra wrapper casts added.
        out_shape=jax.ShapeDtypeStruct((N, HW, Cout), x_nhwc.dtype),
        grid_spec=grid_spec,
        compiler_params=pltpu.CompilerParams(
            # Batch axis is embarrassingly parallel (dual TensorCore on v7x).
            # TODO(synk): spatial HW tiling (two-pass GN) + a second parallel
            # axis for v7x-scale inputs / odd N; Buffered(1) on the replicated
            # weight operands is a further VMEM trim once tiling multiplies
            # the step count.
            dimension_semantics=("parallel",),
            vmem_limit_bytes=_vmem_limit_bytes(),
        ),
    )(x2d,
      params["w1"], params["ws"], params["w2"], params["w3"],
      params["g1"], params["b1"], params["g2"], params["b2"],
      params["g3"], params["b3"], params["gs"], params["bs"],
      params["p_cb"], params["q_cb"], params["p_co"], params["q_co"])
    return out2d.reshape(N, H, W, Cout)


# ------------------------------ parameters ----------------------------------
def _gn_group_maps(c, groups=GN_GROUPS):
    cg = c // groups
    grp = jnp.arange(c, dtype=jnp.int32) // cg
    onehot = (grp[:, None] == jnp.arange(groups, dtype=jnp.int32)[None, :]
              ).astype(jnp.float32)
    return onehot / float(cg), onehot.T        # (C, G), (G, C)


def make_params(key, in_channels, bottleneck_channels, out_channels):
    """c2_msra_fill: kaiming_normal_(fan_out, relu) => std = sqrt(2/(O*kh*kw)).
    GroupNorm affine params default to gamma=1, beta=0.  Weights are stored in
    the matmul-friendly layouts the kernel consumes (bf16; f32 accumulation)."""
    Cin, Cb, Cout = in_channels, bottleneck_channels, out_channels
    assert Cb % GN_GROUPS == 0 and Cout % GN_GROUPS == 0
    k1, k2, k3, ks = jax.random.split(key, 4)
    # PyTorch OIHW weights, converted to kernel layouts.
    w1 = jax.random.normal(k1, (Cb, Cin, 1, 1), jnp.float32) * math.sqrt(2.0 / (Cb * 1 * 1))
    w2 = jax.random.normal(k2, (Cb, Cb, 3, 3), jnp.float32) * math.sqrt(2.0 / (Cb * 3 * 3))
    w3 = jax.random.normal(k3, (Cout, Cb, 1, 1), jnp.float32) * math.sqrt(2.0 / (Cout * 1 * 1))
    ws = jax.random.normal(ks, (Cout, Cin, 1, 1), jnp.float32) * math.sqrt(2.0 / (Cout * 1 * 1))
    p_cb, q_cb = _gn_group_maps(Cb)
    p_co, q_co = _gn_group_maps(Cout)
    return {
        "w1": jnp.transpose(w1[:, :, 0, 0], (1, 0)).astype(jnp.bfloat16),   # (Cin, Cb)
        "ws": jnp.transpose(ws[:, :, 0, 0], (1, 0)).astype(jnp.bfloat16),   # (Cin, Cout)
        # (kh, kw, Cin, Cout) -> (9, Cb, Cb): tap k = (dh+1)*3 + (dw+1)
        "w2": jnp.transpose(w2, (2, 3, 1, 0)).reshape(9, Cb, Cb).astype(jnp.bfloat16),
        "w3": jnp.transpose(w3[:, :, 0, 0], (1, 0)).astype(jnp.bfloat16),   # (Cb, Cout)
        "g1": jnp.ones((1, Cb), jnp.float32), "b1": jnp.zeros((1, Cb), jnp.float32),
        "g2": jnp.ones((1, Cb), jnp.float32), "b2": jnp.zeros((1, Cb), jnp.float32),
        "g3": jnp.ones((1, Cout), jnp.float32), "b3": jnp.zeros((1, Cout), jnp.float32),
        "gs": jnp.ones((1, Cout), jnp.float32), "bs": jnp.zeros((1, Cout), jnp.float32),
        "p_cb": p_cb, "q_cb": q_cb, "p_co": p_co, "q_co": q_co,
    }


# ------------- pure-JAX reference (PyTorch semantics, NHWC) -----------------
def _group_norm_ref(x, gamma, beta, groups, eps=GN_EPS):
    n, h, w, c = x.shape
    xg = x.reshape(n, h, w, groups, c // groups)
    mean = xg.mean(axis=(1, 2, 4), keepdims=True)
    var = ((xg - mean) ** 2).mean(axis=(1, 2, 4), keepdims=True)
    xn = ((xg - mean) / jnp.sqrt(var + eps)).reshape(n, h, w, c)
    return xn * gamma + beta


def ref_forward(x_nhwc, p):
    f32 = jnp.float32
    # Match the kernel's bf16 MXU activation inputs (weights are already bf16),
    # so the comparison tolerance can be tight (~accumulation-order only).
    bf = lambda a: a.astype(jnp.bfloat16).astype(f32)
    w1 = p["w1"].astype(f32)
    ws = p["ws"].astype(f32)
    w3 = p["w3"].astype(f32)
    Cb = w3.shape[0]
    w2 = p["w2"].astype(f32).reshape(3, 3, Cb, Cb)               # HWIO
    h = jnp.einsum("nhwc,cd->nhwd", bf(x_nhwc), w1)
    h = jax.nn.relu(_group_norm_ref(h, p["g1"], p["b1"], GN_GROUPS))
    h = lax.conv_general_dilated(bf(h), w2, (1, 1), ((1, 1), (1, 1)),
                                 dimension_numbers=("NHWC", "HWIO", "NHWC"))
    h = jax.nn.relu(_group_norm_ref(h, p["g2"], p["b2"], GN_GROUPS))
    h = jnp.einsum("nhwc,cd->nhwd", bf(h), w3)
    h = _group_norm_ref(h, p["g3"], p["b3"], GN_GROUPS)
    s = jnp.einsum("nhwc,cd->nhwd", bf(x_nhwc), ws)
    s = _group_norm_ref(s, p["gs"], p["bs"], GN_GROUPS)
    return jax.nn.relu(h + s)


if __name__ == "__main__":
    # GroupNorm(32, C) requires C % 32 == 0, so the smallest faithful config:
    N, H, W = 2, 16, 16
    Cin, Cb, Cout = 32, 32, 64      # in != out -> projection shortcut is used
    # stride=1, num_groups=1, dilation=1 (module defaults)

    key = jax.random.PRNGKey(0)
    kx, kp = jax.random.split(key)
    x_nchw = jax.random.normal(kx, (N, Cin, H, W), jnp.float32)  # PyTorch NCHW input
    x_nhwc = jnp.transpose(x_nchw, (0, 2, 3, 1))                 # kernel layout: NHWC

    params = make_params(kp, Cin, Cb, Cout)

    out = jax.block_until_ready(bottleneck_block(x_nhwc, params))
    ref = ref_forward(x_nhwc, params)

    assert out.shape == (N, H, W, Cout), out.shape
    err = float(jnp.max(jnp.abs(out - ref)))
    # Kernel and reference both feed bf16-rounded activations/weights to the
    # MXU with f32 accumulation; remaining differences are accumulation order
    # and the GN variance formulation.
    assert err < 2e-2, f"max abs error {err}"
    print("KERNEL_OK")
</pallas_src>

<mosaic_0001>
module attributes {stable_mosaic.version = 11 : i64} {
  func.func @bottleneck_kernel(%arg0: i32, %arg1: memref<1x256x32xf32, #tpu.memory_space<vmem>>, %arg2: memref<32x32xbf16, #tpu.memory_space<vmem>>, %arg3: memref<32x64xbf16, #tpu.memory_space<vmem>>, %arg4: memref<9x32x32xbf16, #tpu.memory_space<vmem>>, %arg5: memref<32x64xbf16, #tpu.memory_space<vmem>>, %arg6: memref<1x32xf32, #tpu.memory_space<vmem>>, %arg7: memref<1x32xf32, #tpu.memory_space<vmem>>, %arg8: memref<1x32xf32, #tpu.memory_space<vmem>>, %arg9: memref<1x32xf32, #tpu.memory_space<vmem>>, %arg10: memref<1x64xf32, #tpu.memory_space<vmem>>, %arg11: memref<1x64xf32, #tpu.memory_space<vmem>>, %arg12: memref<1x64xf32, #tpu.memory_space<vmem>>, %arg13: memref<1x64xf32, #tpu.memory_space<vmem>>, %arg14: memref<32x32xf32, #tpu.memory_space<vmem>>, %arg15: memref<32x32xf32, #tpu.memory_space<vmem>>, %arg16: memref<64x32xf32, #tpu.memory_space<vmem>>, %arg17: memref<32x64xf32, #tpu.memory_space<vmem>>, %arg18: memref<1x256x64xf32, #tpu.memory_space<vmem>>) attributes {dimension_semantics = [#tpu.dimension_semantics<parallel>], iteration_bounds = array<i64: 2>, scalar_prefetch = 0 : i64, scratch_operands = 0 : i64, tpu.core_type = #tpu.core_type<tc>, window_params = [{transform_indices = @transform_0, window_bounds = array<i64: 1, 256, 32>}, {pipeline_mode = #tpu.pipeline_mode<synchronous>, transform_indices = @transform_1, window_bounds = array<i64: 32, 32>}, {pipeline_mode = #tpu.pipeline_mode<synchronous>, transform_indices = @transform_2, window_bounds = array<i64: 32, 64>}, {pipeline_mode = #tpu.pipeline_mode<synchronous>, transform_indices = @transform_3, window_bounds = array<i64: 9, 32, 32>}, {pipeline_mode = #tpu.pipeline_mode<synchronous>, transform_indices = @transform_4, window_bounds = array<i64: 32, 64>}, {pipeline_mode = #tpu.pipeline_mode<synchronous>, transform_indices = @transform_5, window_bounds = array<i64: 1, 32>}, {pipeline_mode = #tpu.pipeline_mode<synchronous>, transform_indices = @transform_6, window_bounds = array<i64: 1, 32>}, {pipeline_mode = #tpu.pipeline_mode<synchronous>, transform_indices = @transform_7, window_bounds = array<i64: 1, 32>}, {pipeline_mode = #tpu.pipeline_mode<synchronous>, transform_indices = @transform_8, window_bounds = array<i64: 1, 32>}, {pipeline_mode = #tpu.pipeline_mode<synchronous>, transform_indices = @transform_9, window_bounds = array<i64: 1, 64>}, {pipeline_mode = #tpu.pipeline_mode<synchronous>, transform_indices = @transform_10, window_bounds = array<i64: 1, 64>}, {pipeline_mode = #tpu.pipeline_mode<synchronous>, transform_indices = @transform_11, window_bounds = array<i64: 1, 64>}, {pipeline_mode = #tpu.pipeline_mode<synchronous>, transform_indices = @transform_12, window_bounds = array<i64: 1, 64>}, {pipeline_mode = #tpu.pipeline_mode<synchronous>, transform_indices = @transform_13, window_bounds = array<i64: 32, 32>}, {pipeline_mode = #tpu.pipeline_mode<synchronous>, transform_indices = @transform_14, window_bounds = array<i64: 32, 32>}, {pipeline_mode = #tpu.pipeline_mode<synchronous>, transform_indices = @transform_15, window_bounds = array<i64: 64, 32>}, {pipeline_mode = #tpu.pipeline_mode<synchronous>, transform_indices = @transform_16, window_bounds = array<i64: 32, 64>}, {transform_indices = @transform_17, window_bounds = array<i64: 1, 256, 64>}]} {
    %c0 = arith.constant 0 : index
    %c0_0 = arith.constant 0 : index
    %c0_1 = arith.constant 0 : index
    %0 = vector.load %arg1[%c0, %c0_0, %c0_1] : memref<1x256x32xf32, #tpu.memory_space<vmem>>, vector<1x256x32xf32>
    %1 = vector.shape_cast %0 : vector<1x256x32xf32> to vector<256x32xf32>
    %2 = arith.truncf %1 : vector<256x32xf32> to vector<256x32xbf16>
    %c0_2 = arith.constant 0 : index
    %c0_3 = arith.constant 0 : index
    %3 = vector.load %arg2[%c0_2, %c0_3] : memref<32x32xbf16, #tpu.memory_space<vmem>>, vector<32x32xbf16>
    %cst = arith.constant dense<0.000000e+00> : vector<256x32xf32>
    %4 = tpu.matmul %2, %3, %cst {dimension_numbers = #tpu.dot_dimension_numbers<[1], [0], [0], [1], [0, 0, 1, 1], [], []>} : vector<256x32xbf16>, vector<32x32xbf16>, vector<256x32xf32> -> vector<256x32xf32>
    %c0_4 = arith.constant 0 : index
    %c0_5 = arith.constant 0 : index
    %5 = vector.load %arg3[%c0_4, %c0_5] : memref<32x64xbf16, #tpu.memory_space<vmem>>, vector<32x64xbf16>
    %cst_6 = arith.constant dense<0.000000e+00> : vector<256x64xf32>
    %6 = tpu.matmul %2, %5, %cst_6 {dimension_numbers = #tpu.dot_dimension_numbers<[1], [0], [0], [1], [0, 0, 1, 1], [], []>} : vector<256x32xbf16>, vector<32x64xbf16>, vector<256x64xf32> -> vector<256x64xf32>
    %c0_7 = arith.constant 0 : index
    %c0_8 = arith.constant 0 : index
    %7 = vector.load %arg6[%c0_7, %c0_8] : memref<1x32xf32, #tpu.memory_space<vmem>>, vector<1x32xf32>
    %c0_9 = arith.constant 0 : index
    %c0_10 = arith.constant 0 : index
    %8 = vector.load %arg7[%c0_9, %c0_10] : memref<1x32xf32, #tpu.memory_space<vmem>>, vector<1x32xf32>
    %c0_11 = arith.constant 0 : index
    %c0_12 = arith.constant 0 : index
    %9 = vector.load %arg14[%c0_11, %c0_12] : memref<32x32xf32, #tpu.memory_space<vmem>>, vector<32x32xf32>
    %c0_13 = arith.constant 0 : index
    %c0_14 = arith.constant 0 : index
    %10 = vector.load %arg15[%c0_13, %c0_14] : memref<32x32xf32, #tpu.memory_space<vmem>>, vector<32x32xf32>
    %cst_15 = arith.constant dense<0.000000e+00> : vector<32xf32>
    %11 = vector.multi_reduction <add>, %4, %cst_15 [0] : vector<256x32xf32> to vector<32xf32>
    %12 = vector.shape_cast %11 : vector<32xf32> to vector<1x32xf32>
    %cst_16 = arith.constant 2.560000e+02 : f32
    %13 = vector.broadcast %cst_16 : f32 to vector<1x32xf32>
    %14 = arith.divf %12, %13 : vector<1x32xf32>
    %15 = arith.mulf %4, %4 : vector<256x32xf32>
    %cst_17 = arith.constant dense<0.000000e+00> : vector<32xf32>
    %16 = vector.multi_reduction <add>, %15, %cst_17 [0] : vector<256x32xf32> to vector<32xf32>
    %17 = vector.shape_cast %16 : vector<32xf32> to vector<1x32xf32>
    %cst_18 = arith.constant 2.560000e+02 : f32
    %18 = vector.broadcast %cst_18 : f32 to vector<1x32xf32>
    %19 = arith.divf %17, %18 : vector<1x32xf32>
    %20 = tpu.concatenate %14, %19 in 0 : vector<1x32xf32>, vector<1x32xf32> -> vector<2x32xf32>
    %cst_19 = arith.constant dense<0.000000e+00> : vector<2x32xf32>
    %21 = tpu.matmul %20, %9, %cst_19 {dimension_numbers = #tpu.dot_dimension_numbers<[1], [0], [0], [1], [0, 0, 1, 1], [], []>} : vector<2x32xf32>, vector<32x32xf32>, vector<2x32xf32> -> vector<2x32xf32>
    %cst_20 = arith.constant dense<0.000000e+00> : vector<2x32xf32>
    %22 = tpu.matmul %21, %10, %cst_20 {dimension_numbers = #tpu.dot_dimension_numbers<[1], [0], [0], [1], [0, 0, 1, 1], [], []>} : vector<2x32xf32>, vector<32x32xf32>, vector<2x32xf32> -> vector<2x32xf32>
    %23 = vector.extract_strided_slice %22 {offsets = [0, 0], sizes = [1, 32], strides = [1, 1]} : vector<2x32xf32> to vector<1x32xf32>
    %24 = vector.extract_strided_slice %22 {offsets = [1, 0], sizes = [1, 32], strides = [1, 1]} : vector<2x32xf32> to vector<1x32xf32>
    %25 = arith.mulf %23, %23 : vector<1x32xf32>
    %26 = arith.subf %24, %25 : vector<1x32xf32>
    %cst_21 = arith.constant 0.000000e+00 : f32
    %27 = vector.broadcast %cst_21 : f32 to vector<1x32xf32>
    %28 = arith.maximumf %26, %27 : vector<1x32xf32>
    %cst_22 = arith.constant 9.99999974E-6 : f32
    %29 = vector.broadcast %cst_22 : f32 to vector<1x32xf32>
    %30 = arith.addf %28, %29 : vector<1x32xf32>
    %31 = math.rsqrt %30 : vector<1x32xf32>
    %32 = arith.mulf %7, %31 : vector<1x32xf32>
    %33 = arith.mulf %23, %32 : vector<1x32xf32>
    %34 = arith.subf %8, %33 : vector<1x32xf32>
    %35 = vector.broadcast %32 : vector<1x32xf32> to vector<256x32xf32>
    %36 = arith.mulf %4, %35 : vector<256x32xf32>
    %37 = vector.broadcast %34 : vector<1x32xf32> to vector<256x32xf32>
    %38 = arith.addf %36, %37 : vector<256x32xf32>
    %cst_23 = arith.constant 0.000000e+00 : f32
    %39 = vector.broadcast %cst_23 : f32 to vector<256x32xf32>
    %40 = arith.maximumf %38, %39 : vector<256x32xf32>
    %41 = arith.truncf %40 : vector<256x32xf32> to vector<256x32xbf16>
    %42 = tpu.iota {dimensions = array<i32: 0>} : vector<256x1xi32>
    %c16_i32 = arith.constant 16 : i32
    %c0_i32 = arith.constant 0 : i32
    %43 = arith.cmpi eq, %c16_i32, %c0_i32 : i32
    %c1_i32 = arith.constant 1 : i32
    %44 = arith.select %43, %c1_i32, %c16_i32 : i32
    %45 = vector.broadcast %44 : i32 to vector<256x1xi32>
    %46 = arith.remsi %42, %45 : vector<256x1xi32>
    %c0_i32_24 = arith.constant 0 : i32
    %47 = vector.broadcast %c0_i32_24 : i32 to vector<256x1xi32>
    %48 = arith.cmpi ne, %46, %47 : vector<256x1xi32>
    %c0_i32_25 = arith.constant 0 : i32
    %49 = vector.broadcast %c0_i32_25 : i32 to vector<256x1xi32>
    %50 = arith.cmpi slt, %46, %49 : vector<256x1xi32>
    %c0_i32_26 = arith.constant 0 : i32
    %51 = arith.cmpi slt, %44, %c0_i32_26 : i32
    %52 = vector.broadcast %51 : i1 to vector<256x1xi1>
    %53 = vector.broadcast %52 : vector<256x1xi1> to vector<256x1xi1>
    %54 = arith.xori %50, %53 : vector<256x1xi1>
    %55 = arith.andi %54, %48 : vector<256x1xi1>
    %56 = vector.broadcast %44 : i32 to vector<256x1xi32>
    %57 = arith.addi %46, %56 : vector<256x1xi32>
    %58 = arith.select %55, %57, %46 : vector<256x1xi1>, vector<256x1xi32>
    %c1_i32_27 = arith.constant 1 : i32
    %59 = vector.broadcast %c1_i32_27 : i32 to vector<256x1xi32>
    %60 = arith.cmpi sge, %58, %59 : vector<256x1xi32>
    %61 = arith.extui %60 : vector<256x1xi1> to vector<256x1xi32>
    %62 = arith.sitofp %61 : vector<256x1xi32> to vector<256x1xf32>
    %63 = arith.truncf %62 : vector<256x1xf32> to vector<256x1xbf16>
    %c15_i32 = arith.constant 15 : i32
    %64 = vector.broadcast %c15_i32 : i32 to vector<256x1xi32>
    %65 = arith.cmpi slt, %58, %64 : vector<256x1xi32>
    %66 = arith.extui %65 : vector<256x1xi1> to vector<256x1xi32>
    %67 = arith.sitofp %66 : vector<256x1xi32> to vector<256x1xf32>
    %68 = arith.truncf %67 : vector<256x1xf32> to vector<256x1xbf16>
    %cst_28 = arith.constant 0.000000e+00 : bf16
    %69 = vector.broadcast %cst_28 : bf16 to vector<17x32xbf16>
    %70 = tpu.concatenate %69, %41, %69 in 0 : vector<17x32xbf16>, vector<256x32xbf16>, vector<17x32xbf16> -> vector<290x32xbf16>
    %71 = vector.extract_strided_slice %70 {offsets = [0, 0], sizes = [256, 32], strides = [1, 1]} : vector<290x32xbf16> to vector<256x32xbf16>
    %72 = vector.broadcast %63 : vector<256x1xbf16> to vector<256x32xbf16>
    %73 = arith.mulf %71, %72 : vector<256x32xbf16>
    %c0_29 = arith.constant 0 : index
    %c0_30 = arith.constant 0 : index
    %c0_31 = arith.constant 0 : index
    %74 = vector.load %arg4[%c0_29, %c0_30, %c0_31] : memref<9x32x32xbf16, #tpu.memory_space<vmem>>, vector<1x32x32xbf16>
    %75 = vector.shape_cast %74 : vector<1x32x32xbf16> to vector<32x32xbf16>
    %cst_32 = arith.constant dense<0.000000e+00> : vector<256x32xf32>
    %76 = tpu.matmul %73, %75, %cst_32 {dimension_numbers = #tpu.dot_dimension_numbers<[1], [0], [0], [1], [0, 0, 1, 1], [], []>} : vector<256x32xbf16>, vector<32x32xbf16>, vector<256x32xf32> -> vector<256x32xf32>
    %77 = vector.extract_strided_slice %70 {offsets = [1, 0], sizes = [256, 32], strides = [1, 1]} : vector<290x32xbf16> to vector<256x32xbf16>
    %c1 = arith.constant 1 : index
    %c0_33 = arith.constant 0 : index
    %c0_34 = arith.constant 0 : index
    %78 = vector.load %arg4[%c1, %c0_33, %c0_34] : memref<9x32x32xbf16, #tpu.memory_space<vmem>>, vector<1x32x32xbf16>
    %79 = vector.shape_cast %78 : vector<1x32x32xbf16> to vector<32x32xbf16>
    %cst_35 = arith.constant dense<0.000000e+00> : vector<256x32xf32>
    %80 = tpu.matmul %77, %79, %cst_35 {dimension_numbers = #tpu.dot_dimension_numbers<[1], [0], [0], [1], [0, 0, 1, 1], [], []>} : vector<256x32xbf16>, vector<32x32xbf16>, vector<256x32xf32> -> vector<256x32xf32>
    %81 = arith.addf %76, %80 : vector<256x32xf32>
    %82 = vector.extract_strided_slice %70 {offsets = [2, 0], sizes = [256, 32], strides = [1, 1]} : vector<290x32xbf16> to vector<256x32xbf16>
    %83 = vector.broadcast %68 : vector<256x1xbf16> to vector<256x32xbf16>
    %84 = arith.mulf %82, %83 : vector<256x32xbf16>
    %c2 = arith.constant 2 : index
    %c0_36 = arith.constant 0 : index
    %c0_37 = arith.constant 0 : index
    %85 = vector.load %arg4[%c2, %c0_36, %c0_37] : memref<9x32x32xbf16, #tpu.memory_space<vmem>>, vector<1x32x32xbf16>
    %86 = vector.shape_cast %85 : vector<1x32x32xbf16> to vector<32x32xbf16>
    %cst_38 = arith.constant dense<0.000000e+00> : vector<256x32xf32>
    %87 = tpu.matmul %84, %86, %cst_38 {dimension_numbers = #tpu.dot_dimension_numbers<[1], [0], [0], [1], [0, 0, 1, 1], [], []>} : vector<256x32xbf16>, vector<32x32xbf16>, vector<256x32xf32> -> vector<256x32xf32>
    %88 = arith.addf %81, %87 : vector<256x32xf32>
    %89 = vector.extract_strided_slice %70 {offsets = [16, 0], sizes = [256, 32], strides = [1, 1]} : vector<290x32xbf16> to vector<256x32xbf16>
    %90 = vector.broadcast %63 : vector<256x1xbf16> to vector<256x32xbf16>
    %91 = arith.mulf %89, %90 : vector<256x32xbf16>
    %c3 = arith.constant 3 : index
    %c0_39 = arith.constant 0 : index
    %c0_40 = arith.constant 0 : index
    %92 = vector.load %arg4[%c3, %c0_39, %c0_40] : memref<9x32x32xbf16, #tpu.memory_space<vmem>>, vector<1x32x32xbf16>
    %93 = vector.shape_cast %92 : vector<1x32x32xbf16> to vector<32x32xbf16>
    %cst_41 = arith.constant dense<0.000000e+00> : vector<256x32xf32>
    %94 = tpu.matmul %91, %93, %cst_41 {dimension_numbers = #tpu.dot_dimension_numbers<[1], [0], [0], [1], [0, 0, 1, 1], [], []>} : vector<256x32xbf16>, vector<32x32xbf16>, vector<256x32xf32> -> vector<256x32xf32>
    %95 = arith.addf %88, %94 : vector<256x32xf32>
    %96 = vector.extract_strided_slice %70 {offsets = [17, 0], sizes = [256, 32], strides = [1, 1]} : vector<290x32xbf16> to vector<256x32xbf16>
    %c4 = arith.constant 4 : index
    %c0_42 = arith.constant 0 : index
    %c0_43 = arith.constant 0 : index
    %97 = vector.load %arg4[%c4, %c0_42, %c0_43] : memref<9x32x32xbf16, #tpu.memory_space<vmem>>, vector<1x32x32xbf16>
    %98 = vector.shape_cast %97 : vector<1x32x32xbf16> to vector<32x32xbf16>
    %cst_44 = arith.constant dense<0.000000e+00> : vector<256x32xf32>
    %99 = tpu.matmul %96, %98, %cst_44 {dimension_numbers = #tpu.dot_dimension_numbers<[1], [0], [0], [1], [0, 0, 1, 1], [], []>} : vector<256x32xbf16>, vector<32x32xbf16>, vector<256x32xf32> -> vector<256x32xf32>
    %100 = arith.addf %95, %99 : vector<256x32xf32>
    %101 = vector.extract_strided_slice %70 {offsets = [18, 0], sizes = [256, 32], strides = [1, 1]} : vector<290x32xbf16> to vector<256x32xbf16>
    %102 = vector.broadcast %68 : vector<256x1xbf16> to vector<256x32xbf16>
    %103 = arith.mulf %101, %102 : vector<256x32xbf16>
    %c5 = arith.constant 5 : index
    %c0_45 = arith.constant 0 : index
    %c0_46 = arith.constant 0 : index
    %104 = vector.load %arg4[%c5, %c0_45, %c0_46] : memref<9x32x32xbf16, #tpu.memory_space<vmem>>, vector<1x32x32xbf16>
    %105 = vector.shape_cast %104 : vector<1x32x32xbf16> to vector<32x32xbf16>
    %cst_47 = arith.constant dense<0.000000e+00> : vector<256x32xf32>
    %106 = tpu.matmul %103, %105, %cst_47 {dimension_numbers = #tpu.dot_dimension_numbers<[1], [0], [0], [1], [0, 0, 1, 1], [], []>} : vector<256x32xbf16>, vector<32x32xbf16>, vector<256x32xf32> -> vector<256x32xf32>
    %107 = arith.addf %100, %106 : vector<256x32xf32>
    %108 = vector.extract_strided_slice %70 {offsets = [32, 0], sizes = [256, 32], strides = [1, 1]} : vector<290x32xbf16> to vector<256x32xbf16>
    %109 = vector.broadcast %63 : vector<256x1xbf16> to vector<256x32xbf16>
    %110 = arith.mulf %108, %109 : vector<256x32xbf16>
    %c6 = arith.constant 6 : index
    %c0_48 = arith.constant 0 : index
    %c0_49 = arith.constant 0 : index
    %111 = vector.load %arg4[%c6, %c0_48, %c0_49] : memref<9x32x32xbf16, #tpu.memory_space<vmem>>, vector<1x32x32xbf16>
    %112 = vector.shape_cast %111 : vector<1x32x32xbf16> to vector<32x32xbf16>
    %cst_50 = arith.constant dense<0.000000e+00> : vector<256x32xf32>
    %113 = tpu.matmul %110, %112, %cst_50 {dimension_numbers = #tpu.dot_dimension_numbers<[1], [0], [0], [1], [0, 0, 1, 1], [], []>} : vector<256x32xbf16>, vector<32x32xbf16>, vector<256x32xf32> -> vector<256x32xf32>
    %114 = arith.addf %107, %113 : vector<256x32xf32>
    %115 = vector.extract_strided_slice %70 {offsets = [33, 0], sizes = [256, 32], strides = [1, 1]} : vector<290x32xbf16> to vector<256x32xbf16>
    %c7 = arith.constant 7 : index
    %c0_51 = arith.constant 0 : index
    %c0_52 = arith.constant 0 : index
    %116 = vector.load %arg4[%c7, %c0_51, %c0_52] : memref<9x32x32xbf16, #tpu.memory_space<vmem>>, vector<1x32x32xbf16>
    %117 = vector.shape_cast %116 : vector<1x32x32xbf16> to vector<32x32xbf16>
    %cst_53 = arith.constant dense<0.000000e+00> : vector<256x32xf32>
    %118 = tpu.matmul %115, %117, %cst_53 {dimension_numbers = #tpu.dot_dimension_numbers<[1], [0], [0], [1], [0, 0, 1, 1], [], []>} : vector<256x32xbf16>, vector<32x32xbf16>, vector<256x32xf32> -> vector<256x32xf32>
    %119 = arith.addf %114, %118 : vector<256x32xf32>
    %120 = vector.extract_strided_slice %70 {offsets = [34, 0], sizes = [256, 32], strides = [1, 1]} : vector<290x32xbf16> to vector<256x32xbf16>
    %121 = vector.broadcast %68 : vector<256x1xbf16> to vector<256x32xbf16>
    %122 = arith.mulf %120, %121 : vector<256x32xbf16>
    %c8 = arith.constant 8 : index
    %c0_54 = arith.constant 0 : index
    %c0_55 = arith.constant 0 : index
    %123 = vector.load %arg4[%c8, %c0_54, %c0_55] : memref<9x32x32xbf16, #tpu.memory_space<vmem>>, vector<1x32x32xbf16>
    %124 = vector.shape_cast %123 : vector<1x32x32xbf16> to vector<32x32xbf16>
    %cst_56 = arith.constant dense<0.000000e+00> : vector<256x32xf32>
    %125 = tpu.matmul %122, %124, %cst_56 {dimension_numbers = #tpu.dot_dimension_numbers<[1], [0], [0], [1], [0, 0, 1, 1], [], []>} : vector<256x32xbf16>, vector<32x32xbf16>, vector<256x32xf32> -> vector<256x32xf32>
    %126 = arith.addf %119, %125 : vector<256x32xf32>
    %c0_57 = arith.constant 0 : index
    %c0_58 = arith.constant 0 : index
    %127 = vector.load %arg8[%c0_57, %c0_58] : memref<1x32xf32, #tpu.memory_space<vmem>>, vector<1x32xf32>
    %c0_59 = arith.constant 0 : index
    %c0_60 = arith.constant 0 : index
    %128 = vector.load %arg9[%c0_59, %c0_60] : memref<1x32xf32, #tpu.memory_space<vmem>>, vector<1x32xf32>
    %c0_61 = arith.constant 0 : index
    %c0_62 = arith.constant 0 : index
    %129 = vector.load %arg14[%c0_61, %c0_62] : memref<32x32xf32, #tpu.memory_space<vmem>>, vector<32x32xf32>
    %c0_63 = arith.constant 0 : index
    %c0_64 = arith.constant 0 : index
    %130 = vector.load %arg15[%c0_63, %c0_64] : memref<32x32xf32, #tpu.memory_space<vmem>>, vector<32x32xf32>
    %cst_65 = arith.constant dense<0.000000e+00> : vector<32xf32>
    %131 = vector.multi_reduction <add>, %126, %cst_65 [0] : vector<256x32xf32> to vector<32xf32>
    %132 = vector.shape_cast %131 : vector<32xf32> to vector<1x32xf32>
    %cst_66 = arith.constant 2.560000e+02 : f32
    %133 = vector.broadcast %cst_66 : f32 to vector<1x32xf32>
    %134 = arith.divf %132, %133 : vector<1x32xf32>
    %135 = arith.mulf %126, %126 : vector<256x32xf32>
    %cst_67 = arith.constant dense<0.000000e+00> : vector<32xf32>
    %136 = vector.multi_reduction <add>, %135, %cst_67 [0] : vector<256x32xf32> to vector<32xf32>
    %137 = vector.shape_cast %136 : vector<32xf32> to vector<1x32xf32>
    %cst_68 = arith.constant 2.560000e+02 : f32
    %138 = vector.broadcast %cst_68 : f32 to vector<1x32xf32>
    %139 = arith.divf %137, %138 : vector<1x32xf32>
    %140 = tpu.concatenate %134, %139 in 0 : vector<1x32xf32>, vector<1x32xf32> -> vector<2x32xf32>
    %cst_69 = arith.constant dense<0.000000e+00> : vector<2x32xf32>
    %141 = tpu.matmul %140, %129, %cst_69 {dimension_numbers = #tpu.dot_dimension_numbers<[1], [0], [0], [1], [0, 0, 1, 1], [], []>} : vector<2x32xf32>, vector<32x32xf32>, vector<2x32xf32> -> vector<2x32xf32>
    %cst_70 = arith.constant dense<0.000000e+00> : vector<2x32xf32>
    %142 = tpu.matmul %141, %130, %cst_70 {dimension_numbers = #tpu.dot_dimension_numbers<[1], [0], [0], [1], [0, 0, 1, 1], [], []>} : vector<2x32xf32>, vector<32x32xf32>, vector<2x32xf32> -> vector<2x32xf32>
    %143 = vector.extract_strided_slice %142 {offsets = [0, 0], sizes = [1, 32], strides = [1, 1]} : vector<2x32xf32> to vector<1x32xf32>
    %144 = vector.extract_strided_slice %142 {offsets = [1, 0], sizes = [1, 32], strides = [1, 1]} : vector<2x32xf32> to vector<1x32xf32>
    %145 = arith.mulf %143, %143 : vector<1x32xf32>
    %146 = arith.subf %144, %145 : vector<1x32xf32>
    %cst_71 = arith.constant 0.000000e+00 : f32
    %147 = vector.broadcast %cst_71 : f32 to vector<1x32xf32>
    %148 = arith.maximumf %146, %147 : vector<1x32xf32>
    %cst_72 = arith.constant 9.99999974E-6 : f32
    %149 = vector.broadcast %cst_72 : f32 to vector<1x32xf32>
    %150 = arith.addf %148, %149 : vector<1x32xf32>
    %151 = math.rsqrt %150 : vector<1x32xf32>
    %152 = arith.mulf %127, %151 : vector<1x32xf32>
    %153 = arith.mulf %143, %152 : vector<1x32xf32>
    %154 = arith.subf %128, %153 : vector<1x32xf32>
    %155 = vector.broadcast %152 : vector<1x32xf32> to vector<256x32xf32>
    %156 = arith.mulf %126, %155 : vector<256x32xf32>
    %157 = vector.broadcast %154 : vector<1x32xf32> to vector<256x32xf32>
    %158 = arith.addf %156, %157 : vector<256x32xf32>
    %cst_73 = arith.constant 0.000000e+00 : f32
    %159 = vector.broadcast %cst_73 : f32 to vector<256x32xf32>
    %160 = arith.maximumf %158, %159 : vector<256x32xf32>
    %161 = arith.truncf %160 : vector<256x32xf32> to vector<256x32xbf16>
    %c0_74 = arith.constant 0 : index
    %c0_75 = arith.constant 0 : index
    %162 = vector.load %arg5[%c0_74, %c0_75] : memref<32x64xbf16, #tpu.memory_space<vmem>>, vector<32x64xbf16>
    %cst_76 = arith.constant dense<0.000000e+00> : vector<256x64xf32>
    %163 = tpu.matmul %161, %162, %cst_76 {dimension_numbers = #tpu.dot_dimension_numbers<[1], [0], [0], [1], [0, 0, 1, 1], [], []>} : vector<256x32xbf16>, vector<32x64xbf16>, vector<256x64xf32> -> vector<256x64xf32>
    %cst_77 = arith.constant dense<0.000000e+00> : vector<64xf32>
    %164 = vector.multi_reduction <add>, %163, %cst_77 [0] : vector<256x64xf32> to vector<64xf32>
    %165 = vector.shape_cast %164 : vector<64xf32> to vector<1x64xf32>
    %cst_78 = arith.constant 2.560000e+02 : f32
    %166 = vector.broadcast %cst_78 : f32 to vector<1x64xf32>
    %167 = arith.divf %165, %166 : vector<1x64xf32>
    %168 = arith.mulf %163, %163 : vector<256x64xf32>
    %cst_79 = arith.constant dense<0.000000e+00> : vector<64xf32>
    %169 = vector.multi_reduction <add>, %168, %cst_79 [0] : vector<256x64xf32> to vector<64xf32>
    %170 = vector.shape_cast %169 : vector<64xf32> to vector<1x64xf32>
    %cst_80 = arith.constant 2.560000e+02 : f32
    %171 = vector.broadcast %cst_80 : f32 to vector<1x64xf32>
    %172 = arith.divf %170, %171 : vector<1x64xf32>
    %cst_81 = arith.constant dense<0.000000e+00> : vector<64xf32>
    %173 = vector.multi_reduction <add>, %6, %cst_81 [0] : vector<256x64xf32> to vector<64xf32>
    %174 = vector.shape_cast %173 : vector<64xf32> to vector<1x64xf32>
    %cst_82 = arith.constant 2.560000e+02 : f32
    %175 = vector.broadcast %cst_82 : f32 to vector<1x64xf32>
    %176 = arith.divf %174, %175 : vector<1x64xf32>
    %177 = arith.mulf %6, %6 : vector<256x64xf32>
    %cst_83 = arith.constant dense<0.000000e+00> : vector<64xf32>
    %178 = vector.multi_reduction <add>, %177, %cst_83 [0] : vector<256x64xf32> to vector<64xf32>
    %179 = vector.shape_cast %178 : vector<64xf32> to vector<1x64xf32>
    %cst_84 = arith.constant 2.560000e+02 : f32
    %180 = vector.broadcast %cst_84 : f32 to vector<1x64xf32>
    %181 = arith.divf %179, %180 : vector<1x64xf32>
    %182 = tpu.concatenate %167, %172, %176, %181 in 0 : vector<1x64xf32>, vector<1x64xf32>, vector<1x64xf32>, vector<1x64xf32> -> vector<4x64xf32>
    %c0_85 = arith.constant 0 : index
    %c0_86 = arith.constant 0 : index
    %183 = vector.load %arg16[%c0_85, %c0_86] : memref<64x32xf32, #tpu.memory_space<vmem>>, vector<64x32xf32>
    %cst_87 = arith.constant dense<0.000000e+00> : vector<4x32xf32>
    %184 = tpu.matmul %182, %183, %cst_87 {dimension_numbers = #tpu.dot_dimension_numbers<[1], [0], [0], [1], [0, 0, 1, 1], [], []>} : vector<4x64xf32>, vector<64x32xf32>, vector<4x32xf32> -> vector<4x32xf32>
    %c0_88 = arith.constant 0 : index
    %c0_89 = arith.constant 0 : index
    %185 = vector.load %arg17[%c0_88, %c0_89] : memref<32x64xf32, #tpu.memory_space<vmem>>, vector<32x64xf32>
    %cst_90 = arith.constant dense<0.000000e+00> : vector<4x64xf32>
    %186 = tpu.matmul %184, %185, %cst_90 {dimension_numbers = #tpu.dot_dimension_numbers<[1], [0], [0], [1], [0, 0, 1, 1], [], []>} : vector<4x32xf32>, vector<32x64xf32>, vector<4x64xf32> -> vector<4x64xf32>
    %187 = vector.extract_strided_slice %186 {offsets = [0, 0], sizes = [1, 64], strides = [1, 1]} : vector<4x64xf32> to vector<1x64xf32>
    %188 = vector.extract_strided_slice %186 {offsets = [1, 0], sizes = [1, 64], strides = [1, 1]} : vector<4x64xf32> to vector<1x64xf32>
    %189 = vector.extract_strided_slice %186 {offsets = [2, 0], sizes = [1, 64], strides = [1, 1]} : vector<4x64xf32> to vector<1x64xf32>
    %190 = vector.extract_strided_slice %186 {offsets = [3, 0], sizes = [1, 64], strides = [1, 1]} : vector<4x64xf32> to vector<1x64xf32>
    %c0_91 = arith.constant 0 : index
    %c0_92 = arith.constant 0 : index
    %191 = vector.load %arg10[%c0_91, %c0_92] : memref<1x64xf32, #tpu.memory_space<vmem>>, vector<1x64xf32>
    %192 = arith.mulf %187, %187 : vector<1x64xf32>
    %193 = arith.subf %188, %192 : vector<1x64xf32>
    %cst_93 = arith.constant 0.000000e+00 : f32
    %194 = vector.broadcast %cst_93 : f32 to vector<1x64xf32>
    %195 = arith.maximumf %193, %194 : vector<1x64xf32>
    %cst_94 = arith.constant 9.99999974E-6 : f32
    %196 = vector.broadcast %cst_94 : f32 to vector<1x64xf32>
    %197 = arith.addf %195, %196 : vector<1x64xf32>
    %198 = math.rsqrt %197 : vector<1x64xf32>
    %199 = arith.mulf %191, %198 : vector<1x64xf32>
    %c0_95 = arith.constant 0 : index
    %c0_96 = arith.constant 0 : index
    %200 = vector.load %arg11[%c0_95, %c0_96] : memref<1x64xf32, #tpu.memory_space<vmem>>, vector<1x64xf32>
    %201 = arith.mulf %187, %199 : vector<1x64xf32>
    %202 = arith.subf %200, %201 : vector<1x64xf32>
    %c0_97 = arith.constant 0 : index
    %c0_98 = arith.constant 0 : index
    %203 = vector.load %arg12[%c0_97, %c0_98] : memref<1x64xf32, #tpu.memory_space<vmem>>, vector<1x64xf32>
    %204 = arith.mulf %189, %189 : vector<1x64xf32>
    %205 = arith.subf %190, %204 : vector<1x64xf32>
    %cst_99 = arith.constant 0.000000e+00 : f32
    %206 = vector.broadcast %cst_99 : f32 to vector<1x64xf32>
    %207 = arith.maximumf %205, %206 : vector<1x64xf32>
    %cst_100 = arith.constant 9.99999974E-6 : f32
    %208 = vector.broadcast %cst_100 : f32 to vector<1x64xf32>
    %209 = arith.addf %207, %208 : vector<1x64xf32>
    %210 = math.rsqrt %209 : vector<1x64xf32>
    %211 = arith.mulf %203, %210 : vector<1x64xf32>
    %c0_101 = arith.constant 0 : index
    %c0_102 = arith.constant 0 : index
    %212 = vector.load %arg13[%c0_101, %c0_102] : memref<1x64xf32, #tpu.memory_space<vmem>>, vector<1x64xf32>
    %213 = arith.mulf %189, %211 : vector<1x64xf32>
    %214 = arith.subf %212, %213 : vector<1x64xf32>
    %215 = vector.broadcast %199 : vector<1x64xf32> to vector<256x64xf32>
    %216 = arith.mulf %163, %215 : vector<256x64xf32>
    %217 = vector.broadcast %202 : vector<1x64xf32> to vector<256x64xf32>
    %218 = arith.addf %216, %217 : vector<256x64xf32>
    %219 = vector.broadcast %211 : vector<1x64xf32> to vector<256x64xf32>
    %220 = arith.mulf %6, %219 : vector<256x64xf32>
    %221 = arith.addf %218, %220 : vector<256x64xf32>
    %222 = vector.broadcast %214 : vector<1x64xf32> to vector<256x64xf32>
    %223 = arith.addf %221, %222 : vector<256x64xf32>
    %cst_103 = arith.constant 0.000000e+00 : f32
    %224 = vector.broadcast %cst_103 : f32 to vector<256x64xf32>
    %225 = arith.maximumf %223, %224 : vector<256x64xf32>
    %c0_104 = arith.constant 0 : index
    %c0_105 = arith.constant 0 : index
    %c0_106 = arith.constant 0 : index
    %226 = vector.load %arg18[%c0_104, %c0_105, %c0_106] : memref<1x256x64xf32, #tpu.memory_space<vmem>>, vector<1x256x64xf32>
    %227 = vector.shape_cast %226 : vector<1x256x64xf32> to vector<256x64xf32>
    %228 = vector.shape_cast %225 : vector<256x64xf32> to vector<1x256x64xf32>
    tpu.vector_store %arg18[%c0_104, %c0_105, %c0_106], %228 {strides = array<i32>} : memref<1x256x64xf32, #tpu.memory_space<vmem>>, vector<1x256x64xf32>,
    return
  }
  func.func @transform_0(%arg0: i32) -> (i32, i32, i32) {
    %c0_i32 = arith.constant 0 : i32
    %c0_i32_0 = arith.constant 0 : i32
    %c0_i32_1 = arith.constant 0 : i32
    return %arg0, %c0_i32, %c0_i32_0 : i32, i32, i32
  }
  func.func @transform_1(%arg0: i32) -> (i32, i32) {
    %c0_i32 = arith.constant 0 : i32
    %c0_i32_0 = arith.constant 0 : i32
    %c0_i32_1 = arith.constant 0 : i32
    return %c0_i32, %c0_i32_0 : i32, i32
  }
  func.func @transform_2(%arg0: i32) -> (i32, i32) {
    %c0_i32 = arith.constant 0 : i32
    %c0_i32_0 = arith.constant 0 : i32
    %c0_i32_1 = arith.constant 0 : i32
    return %c0_i32, %c0_i32_0 : i32, i32
  }
  func.func @transform_3(%arg0: i32) -> (i32, i32, i32) {
    %c0_i32 = arith.constant 0 : i32
    %c0_i32_0 = arith.constant 0 : i32
    %c0_i32_1 = arith.constant 0 : i32
    %c0_i32_2 = arith.constant 0 : i32
    return %c0_i32, %c0_i32_0, %c0_i32_1 : i32, i32, i32
  }
  func.func @transform_4(%arg0: i32) -> (i32, i32) {
    %c0_i32 = arith.constant 0 : i32
    %c0_i32_0 = arith.constant 0 : i32
    %c0_i32_1 = arith.constant 0 : i32
    return %c0_i32, %c0_i32_0 : i32, i32
  }
  func.func @transform_5(%arg0: i32) -> (i32, i32) {
    %c0_i32 = arith.constant 0 : i32
    %c0_i32_0 = arith.constant 0 : i32
    %c0_i32_1 = arith.constant 0 : i32
    return %c0_i32, %c0_i32_0 : i32, i32
  }
  func.func @transform_6(%arg0: i32) -> (i32, i32) {
    %c0_i32 = arith.constant 0 : i32
    %c0_i32_0 = arith.constant 0 : i32
    %c0_i32_1 = arith.constant 0 : i32
    return %c0_i32, %c0_i32_0 : i32, i32
  }
  func.func @transform_7(%arg0: i32) -> (i32, i32) {
    %c0_i32 = arith.constant 0 : i32
    %c0_i32_0 = arith.constant 0 : i32
    %c0_i32_1 = arith.constant 0 : i32
    return %c0_i32, %c0_i32_0 : i32, i32
  }
  func.func @transform_8(%arg0: i32) -> (i32, i32) {
    %c0_i32 = arith.constant 0 : i32
    %c0_i32_0 = arith.constant 0 : i32
    %c0_i32_1 = arith.constant 0 : i32
    return %c0_i32, %c0_i32_0 : i32, i32
  }
  func.func @transform_9(%arg0: i32) -> (i32, i32) {
    %c0_i32 = arith.constant 0 : i32
    %c0_i32_0 = arith.constant 0 : i32
    %c0_i32_1 = arith.constant 0 : i32
    return %c0_i32, %c0_i32_0 : i32, i32
  }
  func.func @transform_10(%arg0: i32) -> (i32, i32) {
    %c0_i32 = arith.constant 0 : i32
    %c0_i32_0 = arith.constant 0 : i32
    %c0_i32_1 = arith.constant 0 : i32
    return %c0_i32, %c0_i32_0 : i32, i32
  }
  func.func @transform_11(%arg0: i32) -> (i32, i32) {
    %c0_i32 = arith.constant 0 : i32
    %c0_i32_0 = arith.constant 0 : i32
    %c0_i32_1 = arith.constant 0 : i32
    return %c0_i32, %c0_i32_0 : i32, i32
  }
  func.func @transform_12(%arg0: i32) -> (i32, i32) {
    %c0_i32 = arith.constant 0 : i32
    %c0_i32_0 = arith.constant 0 : i32
    %c0_i32_1 = arith.constant 0 : i32
    return %c0_i32, %c0_i32_0 : i32, i32
  }
  func.func @transform_13(%arg0: i32) -> (i32, i32) {
    %c0_i32 = arith.constant 0 : i32
    %c0_i32_0 = arith.constant 0 : i32
    %c0_i32_1 = arith.constant 0 : i32
    return %c0_i32, %c0_i32_0 : i32, i32
  }
  func.func @transform_14(%arg0: i32) -> (i32, i32) {
    %c0_i32 = arith.constant 0 : i32
    %c0_i32_0 = arith.constant 0 : i32
    %c0_i32_1 = arith.constant 0 : i32
    return %c0_i32, %c0_i32_0 : i32, i32
  }
  func.func @transform_15(%arg0: i32) -> (i32, i32) {
    %c0_i32 = arith.constant 0 : i32
    %c0_i32_0 = arith.constant 0 : i32
    %c0_i32_1 = arith.constant 0 : i32
    return %c0_i32, %c0_i32_0 : i32, i32
  }
  func.func @transform_16(%arg0: i32) -> (i32, i32) {
    %c0_i32 = arith.constant 0 : i32
    %c0_i32_0 = arith.constant 0 : i32
    %c0_i32_1 = arith.constant 0 : i32
    return %c0_i32, %c0_i32_0 : i32, i32
  }
  func.func @transform_17(%arg0: i32) -> (i32, i32, i32) {
    %c0_i32 = arith.constant 0 : i32
    %c0_i32_0 = arith.constant 0 : i32
    %c0_i32_1 = arith.constant 0 : i32
    return %arg0, %c0_i32, %c0_i32_0 : i32, i32, i32
  }
}

</mosaic_0001>

<llo_original>
// kernel: tpu_custom_call.1
$region0: #{tpu_custom_call.1}
  #allocation0 [shape = 'u32[]', space=smem, size = 0x4, offset = 0x4, fixed_abs, tag = 'smem constant byte address 0x4 - core index']
  #allocation1 [shape = 'u32[72,128]{1,0:T(1,128)}', space=vmem, size = 0x9000, scoped, tag = 'internal scratch']
  %s0 = inlined_call_operand.vmem [shape: f32[2,256,32], index: 0, kind: input, shape index: {}]
  %s1 = inlined_call_operand.vmem [shape: bf16[32,32], index: 1, kind: input, shape index: {}]
  %s2 = inlined_call_operand.vmem [shape: bf16[32,64], index: 2, kind: input, shape index: {}]
  %s3 = inlined_call_operand.vmem [shape: bf16[9,32,32], index: 3, kind: input, shape index: {}]
  %s4 = inlined_call_operand.vmem [shape: bf16[32,64], index: 4, kind: input, shape index: {}]
  %s5 = inlined_call_operand.vmem [shape: f32[1,32], index: 5, kind: input, shape index: {}]
  %s6 = inlined_call_operand.vmem [shape: f32[1,32], index: 6, kind: input, shape index: {}]
  %s7 = inlined_call_operand.vmem [shape: f32[1,32], index: 7, kind: input, shape index: {}]
  %s8 = inlined_call_operand.vmem [shape: f32[1,32], index: 8, kind: input, shape index: {}]
  %s9 = inlined_call_operand.vmem [shape: f32[1,64], index: 9, kind: input, shape index: {}]
  %s10 = inlined_call_operand.vmem [shape: f32[1,64], index: 10, kind: input, shape index: {}]
  %s11 = inlined_call_operand.vmem [shape: f32[1,64], index: 11, kind: input, shape index: {}]
  %s12 = inlined_call_operand.vmem [shape: f32[1,64], index: 12, kind: input, shape index: {}]
  %s13 = inlined_call_operand.vmem [shape: f32[32,32], index: 13, kind: input, shape index: {}]
  %s14 = inlined_call_operand.vmem [shape: f32[32,32], index: 14, kind: input, shape index: {}]
  %s15 = inlined_call_operand.vmem [shape: f32[64,32], index: 15, kind: input, shape index: {}]
  %s16 = inlined_call_operand.vmem [shape: f32[32,64], index: 16, kind: input, shape index: {}]
  %s17 = inlined_call_operand.vmem [shape: f32[2,256,64], index: 17, kind: output, shape index: {}]
  %s18 = sld [smem:[#allocation0]]
  $region101: #{tpu_custom_call.1} parent=0
    _
  %s20 = ssub.s32 1, %s18
  %s21 = scalar_select 0, %s20, %s18
  loop: start=0, step=1, limit=4
  $region2: #{tpu_custom_call.1} parent=0 // loop_pre_header
    _
  $region3: #{tpu_custom_call.1} parent=0 // loop_header
    %s23 = sphi 0, %s27
    %p24 = scmp.ge.s32.totalorder %s23, 4
    %s33 = sphi 0, %s35
    %s36 = sphi 0, %s33
    %s37 = sphi 0, %s36
    %s53 = sphi 0, %s37
    %s57 = sphi 0, %s57
    %s59 = sphi 0, %s57
    %s60 = sphi 0, %s59
    %s74 = sphi 0, %s60
    %s78 = sphi 0, %s78
    %s80 = sphi 0, %s78
    %s81 = sphi 0, %s80
    %s95 = sphi 0, %s81
    %s99 = sphi 0, %s99
    %s101 = sphi 0, %s99
    %s102 = sphi 0, %s101
    %s116 = sphi 0, %s102
    %s120 = sphi 0, %s120
    %s122 = sphi 0, %s120
    %s123 = sphi 0, %s122
    %s137 = sphi 0, %s123
    %s141 = sphi 0, %s141
    %s143 = sphi 0, %s141
    %s144 = sphi 0, %s143
    %s158 = sphi 0, %s144
    %s162 = sphi 0, %s162
    %s164 = sphi 0, %s162
    %s165 = sphi 0, %s164
    %s179 = sphi 0, %s165
    %s183 = sphi 0, %s183
    %s185 = sphi 0, %s183
    %s186 = sphi 0, %s185
    %s200 = sphi 0, %s186
    %s204 = sphi 0, %s204
    %s206 = sphi 0, %s204
    %s207 = sphi 0, %s206
    %s221 = sphi 0, %s207
    %s225 = sphi 0, %s225
    %s227 = sphi 0, %s225
    %s228 = sphi 0, %s227
    %s242 = sphi 0, %s228
    %s246 = sphi 0, %s246
    %s248 = sphi 0, %s246
    %s249 = sphi 0, %s248
    %s263 = sphi 0, %s249
    %s267 = sphi 0, %s267
    %s269 = sphi 0, %s267
    %s270 = sphi 0, %s269
    %s284 = sphi 0, %s270
    %s288 = sphi 0, %s288
    %s290 = sphi 0, %s288
    %s291 = sphi 0, %s290
    %s305 = sphi 0, %s291
    %s309 = sphi 0, %s309
    %s311 = sphi 0, %s309
    %s312 = sphi 0, %s311
    %s326 = sphi 0, %s312
    %s330 = sphi 0, %s330
    %s332 = sphi 0, %s330
    %s333 = sphi 0, %s332
    %s347 = sphi 0, %s333
    %s351 = sphi 0, %s351
    %s353 = sphi 0, %s351
    %s354 = sphi 0, %s353
    %s368 = sphi 0, %s354
    %s372 = sphi 0, %s372
    %s374 = sphi 0, %s372
    %s375 = sphi 0, %s374
    %s389 = sphi 0, %s375
    %s395 = sphi 0, %s397
    %s398 = sphi 0, %s395
    %s399 = sphi 0, %s398
    %s415 = sphi 0, %s399
  $region4: #{tpu_custom_call.1} parent=0 // loop_header_branch
    %26 = sbr.rel (%p24) target = $region8
  $region5: #{tpu_custom_call.1} parent=0 // loop_body
    %s28 = ssub.s32 %s23, 1
    %s29 = ssub.s32 %s23, 2
    %s30 = sadd.s32 %s23, 1
    %s31 = ssub.s32 %s23, %s30
    %p32 = scmp.eq.s32.totalorder %s31, 0
    %s34 = sadd.s32 %s33, 1
    %s35 = scalar_select %p32, %s33, %s34
    %p38 = pneg %p32
    %p39 = scmp.eq.s32.totalorder %s23, 1
    %p40 = por %p38, %p39
    %p41 = scmp.ne.s32.totalorder %s33, %s36
    %p42 = scmp.eq.s32.totalorder %s23, 0
    %p43 = por %p41, %p42
    %p44 = scmp.ne.s32.totalorder %s33, %s36
    %p45 = scmp.eq.s32.totalorder %s28, 1
    %p46 = por %p44, %p45
    %p47 = scmp.ne.s32.totalorder %s36, %s37
    %p48 = scmp.eq.s32.totalorder %s28, 0
    %p49 = por %p47, %p48
    %p50 = scmp.ne.s32.totalorder %s36, %s37
    %p51 = scmp.eq.s32.totalorder %s29, 1
    %p52 = por %p50, %p51
    %p54 = scmp.ne.s32.totalorder %s37, %s53
    %p55 = scmp.eq.s32.totalorder %s29, 0
    %p56 = por %p54, %p55
    %s58 = sadd.s32 %s57, 1
    %p61 = scmp.eq.s32.totalorder %s23, 1
    %p62 = scmp.ne.s32.totalorder %s57, %s59
    %p63 = scmp.eq.s32.totalorder %s23, 0
    %p64 = por %p62, %p63
    %p65 = scmp.ne.s32.totalorder %s57, %s59
    %p66 = scmp.eq.s32.totalorder %s28, 1
    %p67 = por %p65, %p66
    %p68 = scmp.ne.s32.totalorder %s59, %s60
    %p69 = scmp.eq.s32.totalorder %s28, 0
    %p70 = por %p68, %p69
    %p71 = scmp.ne.s32.totalorder %s59, %s60
    %p72 = scmp.eq.s32.totalorder %s29, 1
    %p73 = por %p71, %p72
    %p75 = scmp.ne.s32.totalorder %s60, %s74
    %p76 = scmp.eq.s32.totalorder %s29, 0
    %p77 = por %p75, %p76
    %s79 = sadd.s32 %s78, 1
    %p82 = scmp.eq.s32.totalorder %s23, 1
    %p83 = scmp.ne.s32.totalorder %s78, %s80
    %p84 = scmp.eq.s32.totalorder %s23, 0
    %p85 = por %p83, %p84
    %p86 = scmp.ne.s32.totalorder %s78, %s80
    %p87 = scmp.eq.s32.totalorder %s28, 1
    %p88 = por %p86, %p87
    %p89 = scmp.ne.s32.totalorder %s80, %s81
    %p90 = scmp.eq.s32.totalorder %s28, 0
    %p91 = por %p89, %p90
    %p92 = scmp.ne.s32.totalorder %s80, %s81
    %p93 = scmp.eq.s32.totalorder %s29, 1
    %p94 = por %p92, %p93
    %p96 = scmp.ne.s32.totalorder %s81, %s95
    %p97 = scmp.eq.s32.totalorder %s29, 0
    %p98 = por %p96, %p97
    %s100 = sadd.s32 %s99, 1
    %p103 = scmp.eq.s32.totalorder %s23, 1
    %p104 = scmp.ne.s32.totalorder %s99, %s101
    %p105 = scmp.eq.s32.totalorder %s23, 0
    %p106 = por %p104, %p105
    %p107 = scmp.ne.s32.totalorder %s99, %s101
    %p108 = scmp.eq.s32.totalorder %s28, 1
    %p109 = por %p107, %p108
    %p110 = scmp.ne.s32.totalorder %s101, %s102
    %p111 = scmp.eq.s32.totalorder %s28, 0
    %p112 = por %p110, %p111
    %p113 = scmp.ne.s32.totalorder %s101, %s102
    %p114 = scmp.eq.s32.totalorder %s29, 1
    %p115 = por %p113, %p114
    %p117 = scmp.ne.s32.totalorder %s102, %s116
    %p118 = scmp.eq.s32.totalorder %s29, 0
    %p119 = por %p117, %p118
    %s121 = sadd.s32 %s120, 1
    %p124 = scmp.eq.s32.totalorder %s23, 1
    %p125 = scmp.ne.s32.totalorder %s120, %s122
    %p126 = scmp.eq.s32.totalorder %s23, 0
    %p127 = por %p125, %p126
    %p128 = scmp.ne.s32.totalorder %s120, %s122
    %p129 = scmp.eq.s32.totalorder %s28, 1
    %p130 = por %p128, %p129
    %p131 = scmp.ne.s32.totalorder %s122, %s123
    %p132 = scmp.eq.s32.totalorder %s28, 0
    %p133 = por %p131, %p132
    %p134 = scmp.ne.s32.totalorder %s122, %s123
    %p135 = scmp.eq.s32.totalorder %s29, 1
    %p136 = por %p134, %p135
    %p138 = scmp.ne.s32.totalorder %s123, %s137
    %p139 = scmp.eq.s32.totalorder %s29, 0
    %p140 = por %p138, %p139
    %s142 = sadd.s32 %s141, 1
    %p145 = scmp.eq.s32.totalorder %s23, 1
    %p146 = scmp.ne.s32.totalorder %s141, %s143
    %p147 = scmp.eq.s32.totalorder %s23, 0
    %p148 = por %p146, %p147
    %p149 = scmp.ne.s32.totalorder %s141, %s143
    %p150 = scmp.eq.s32.totalorder %s28, 1
    %p151 = por %p149, %p150
    %p152 = scmp.ne.s32.totalorder %s143, %s144
    %p153 = scmp.eq.s32.totalorder %s28, 0
    %p154 = por %p152, %p153
    %p155 = scmp.ne.s32.totalorder %s143, %s144
    %p156 = scmp.eq.s32.totalorder %s29, 1
    %p157 = por %p155, %p156
    %p159 = scmp.ne.s32.totalorder %s144, %s158
    %p160 = scmp.eq.s32.totalorder %s29, 0
    %p161 = por %p159, %p160
    %s163 = sadd.s32 %s162, 1
    %p166 = scmp.eq.s32.totalorder %s23, 1
    %p167 = scmp.ne.s32.totalorder %s162, %s164
    %p168 = scmp.eq.s32.totalorder %s23, 0
    %p169 = por %p167, %p168
    %p170 = scmp.ne.s32.totalorder %s162, %s164
    %p171 = scmp.eq.s32.totalorder %s28, 1
    %p172 = por %p170, %p171
    %p173 = scmp.ne.s32.totalorder %s164, %s165
    %p174 = scmp.eq.s32.totalorder %s28, 0
    %p175 = por %p173, %p174
    %p176 = scmp.ne.s32.totalorder %s164, %s165
    %p177 = scmp.eq.s32.totalorder %s29, 1
    %p178 = por %p176, %p177
    %p180 = scmp.ne.s32.totalorder %s165, %s179
    %p181 = scmp.eq.s32.totalorder %s29, 0
    %p182 = por %p180, %p181
    %s184 = sadd.s32 %s183, 1
    %p187 = scmp.eq.s32.totalorder %s23, 1
    %p188 = scmp.ne.s32.totalorder %s183, %s185
    %p189 = scmp.eq.s32.totalorder %s23, 0
    %p190 = por %p188, %p189
    %p191 = scmp.ne.s32.totalorder %s183, %s185
    %p192 = scmp.eq.s32.totalorder %s28, 1
    %p193 = por %p191, %p192
    %p194 = scmp.ne.s32.totalorder %s185, %s186
    %p195 = scmp.eq.s32.totalorder %s28, 0
    %p196 = por %p194, %p195
    %p197 = scmp.ne.s32.totalorder %s185, %s186
    %p198 = scmp.eq.s32.totalorder %s29, 1
    %p199 = por %p197, %p198
    %p201 = scmp.ne.s32.totalorder %s186, %s200
    %p202 = scmp.eq.s32.totalorder %s29, 0
    %p203 = por %p201, %p202
    %s205 = sadd.s32 %s204, 1
    %p208 = scmp.eq.s32.totalorder %s23, 1
    %p209 = scmp.ne.s32.totalorder %s204, %s206
    %p210 = scmp.eq.s32.totalorder %s23, 0
    %p211 = por %p209, %p210
    %p212 = scmp.ne.s32.totalorder %s204, %s206
    %p213 = scmp.eq.s32.totalorder %s28, 1
    %p214 = por %p212, %p213
    %p215 = scmp.ne.s32.totalorder %s206, %s207
    %p216 = scmp.eq.s32.totalorder %s28, 0
    %p217 = por %p215, %p216
    %p218 = scmp.ne.s32.totalorder %s206, %s207
    %p219 = scmp.eq.s32.totalorder %s29, 1
    %p220 = por %p218, %p219
    %p222 = scmp.ne.s32.totalorder %s207, %s221
    %p223 = scmp.eq.s32.totalorder %s29, 0
    %p224 = por %p222, %p223
    %s226 = sadd.s32 %s225, 1
    %p229 = scmp.eq.s32.totalorder %s23, 1
    %p230 = scmp.ne.s32.totalorder %s225, %s227
    %p231 = scmp.eq.s32.totalorder %s23, 0
    %p232 = por %p230, %p231
    %p233 = scmp.ne.s32.totalorder %s225, %s227
    %p234 = scmp.eq.s32.totalorder %s28, 1
    %p235 = por %p233, %p234
    %p236 = scmp.ne.s32.totalorder %s227, %s228
    %p237 = scmp.eq.s32.totalorder %s28, 0
    %p238 = por %p236, %p237
    %p239 = scmp.ne.s32.totalorder %s227, %s228
    %p240 = scmp.eq.s32.totalorder %s29, 1
    %p241 = por %p239, %p240
    %p243 = scmp.ne.s32.totalorder %s228, %s242
    %p244 = scmp.eq.s32.totalorder %s29, 0
    %p245 = por %p243, %p244
    %s247 = sadd.s32 %s246, 1
    %p250 = scmp.eq.s32.totalorder %s23, 1
    %p251 = scmp.ne.s32.totalorder %s246, %s248
    %p252 = scmp.eq.s32.totalorder %s23, 0
    %p253 = por %p251, %p252
    %p254 = scmp.ne.s32.totalorder %s246, %s248
    %p255 = scmp.eq.s32.totalorder %s28, 1
    %p256 = por %p254, %p255
    %p257 = scmp.ne.s32.totalorder %s248, %s249
    %p258 = scmp.eq.s32.totalorder %s28, 0
    %p259 = por %p257, %p258
    %p260 = scmp.ne.s32.totalorder %s248, %s249
    %p261 = scmp.eq.s32.totalorder %s29, 1
    %p262 = por %p260, %p261
    %p264 = scmp.ne.s32.totalorder %s249, %s263
    %p265 = scmp.eq.s32.totalorder %s29, 0
    %p266 = por %p264, %p265
    %s268 = sadd.s32 %s267, 1
    %p271 = scmp.eq.s32.totalorder %s23, 1
    %p272 = scmp.ne.s32.totalorder %s267, %s269
    %p273 = scmp.eq.s32.totalorder %s23, 0
    %p274 = por %p272, %p273
    %p275 = scmp.ne.s32.totalorder %s267, %s269
    %p276 = scmp.eq.s32.totalorder %s28, 1
    %p277 = por %p275, %p276
    %p278 = scmp.ne.s32.totalorder %s269, %s270
    %p279 = scmp.eq.s32.totalorder %s28, 0
    %p280 = por %p278, %p279
    %p281 = scmp.ne.s32.totalorder %s269, %s270
    %p282 = scmp.eq.s32.totalorder %s29, 1
    %p283 = por %p281, %p282
    %p285 = scmp.ne.s32.totalorder %s270, %s284
    %p286 = scmp.eq.s32.totalorder %s29, 0
    %p287 = por %p285, %p286
    %s289 = sadd.s32 %s288, 1
    %p292 = scmp.eq.s32.totalorder %s23, 1
    %p293 = scmp.ne.s32.totalorder %s288, %s290
    %p294 = scmp.eq.s32.totalorder %s23, 0
    %p295 = por %p293, %p294
    %p296 = scmp.ne.s32.totalorder %s288, %s290
    %p297 = scmp.eq.s32.totalorder %s28, 1
    %p298 = por %p296, %p297
    %p299 = scmp.ne.s32.totalorder %s290, %s291
    %p300 = scmp.eq.s32.totalorder %s28, 0
    %p301 = por %p299, %p300
    %p302 = scmp.ne.s32.totalorder %s290, %s291
    %p303 = scmp.eq.s32.totalorder %s29, 1
    %p304 = por %p302, %p303
    %p306 = scmp.ne.s32.totalorder %s291, %s305
    %p307 = scmp.eq.s32.totalorder %s29, 0
    %p308 = por %p306, %p307
    %s310 = sadd.s32 %s309, 1
    %p313 = scmp.eq.s32.totalorder %s23, 1
    %p314 = scmp.ne.s32.totalorder %s309, %s311
    %p315 = scmp.eq.s32.totalorder %s23, 0
    %p316 = por %p314, %p315
    %p317 = scmp.ne.s32.totalorder %s309, %s311
    %p318 = scmp.eq.s32.totalorder %s28, 1
    %p319 = por %p317, %p318
    %p320 = scmp.ne.s32.totalorder %s311, %s312
    %p321 = scmp.eq.s32.totalorder %s28, 0
    %p322 = por %p320, %p321
    %p323 = scmp.ne.s32.totalorder %s311, %s312
    %p324 = scmp.eq.s32.totalorder %s29, 1
    %p325 = por %p323, %p324
    %p327 = scmp.ne.s32.totalorder %s312, %s326
    %p328 = scmp.eq.s32.totalorder %s29, 0
    %p329 = por %p327, %p328
    %s331 = sadd.s32 %s330, 1
    %p334 = scmp.eq.s32.totalorder %s23, 1
    %p335 = scmp.ne.s32.totalorder %s330, %s332
    %p336 = scmp.eq.s32.totalorder %s23, 0
    %p337 = por %p335, %p336
    %p338 = scmp.ne.s32.totalorder %s330, %s332
    %p339 = scmp.eq.s32.totalorder %s28, 1
    %p340 = por %p338, %p339
    %p341 = scmp.ne.s32.totalorder %s332, %s333
    %p342 = scmp.eq.s32.totalorder %s28, 0
    %p343 = por %p341, %p342
    %p344 = scmp.ne.s32.totalorder %s332, %s333
    %p345 = scmp.eq.s32.totalorder %s29, 1
    %p346 = por %p344, %p345
    %p348 = scmp.ne.s32.totalorder %s333, %s347
    %p349 = scmp.eq.s32.totalorder %s29, 0
    %p350 = por %p348, %p349
    %s352 = sadd.s32 %s351, 1
    %p355 = scmp.eq.s32.totalorder %s23, 1
    %p356 = scmp.ne.s32.totalorder %s351, %s353
    %p357 = scmp.eq.s32.totalorder %s23, 0
    %p358 = por %p356, %p357
    %p359 = scmp.ne.s32.totalorder %s351, %s353
    %p360 = scmp.eq.s32.totalorder %s28, 1
    %p361 = por %p359, %p360
    %p362 = scmp.ne.s32.totalorder %s353, %s354
    %p363 = scmp.eq.s32.totalorder %s28, 0
    %p364 = por %p362, %p363
    %p365 = scmp.ne.s32.totalorder %s353, %s354
    %p366 = scmp.eq.s32.totalorder %s29, 1
    %p367 = por %p365, %p366
    %p369 = scmp.ne.s32.totalorder %s354, %s368
    %p370 = scmp.eq.s32.totalorder %s29, 0
    %p371 = por %p369, %p370
    %s373 = sadd.s32 %s372, 1
    %p376 = scmp.eq.s32.totalorder %s23, 1
    %p377 = scmp.ne.s32.totalorder %s372, %s374
    %p378 = scmp.eq.s32.totalorder %s23, 0
    %p379 = por %p377, %p378
    %p380 = scmp.ne.s32.totalorder %s372, %s374
    %p381 = scmp.eq.s32.totalorder %s28, 1
    %p382 = por %p380, %p381
    %p383 = scmp.ne.s32.totalorder %s374, %s375
    %p384 = scmp.eq.s32.totalorder %s28, 0
    %p385 = por %p383, %p384
    %p386 = scmp.ne.s32.totalorder %s374, %s375
    %p387 = scmp.eq.s32.totalorder %s29, 1
    %p388 = por %p386, %p387
    %p390 = scmp.ne.s32.totalorder %s375, %s389
    %p391 = scmp.eq.s32.totalorder %s29, 0
    %p392 = por %p390, %p391
    %s393 = ssub.s32 %s23, %s30
    %p394 = scmp.eq.s32.totalorder %s393, 0
    %s396 = sadd.s32 %s395, 1
    %s397 = scalar_select %p394, %s395, %s396
    %p400 = pneg %p394
    %p401 = scmp.eq.s32.totalorder %s23, 1
    %p402 = por %p400, %p401
    %p403 = scmp.ne.s32.totalorder %s395, %s398
    %p404 = scmp.eq.s32.totalorder %s23, 0
    %p405 = por %p403, %p404
    %p406 = scmp.ne.s32.totalorder %s395, %s398
    %p407 = scmp.eq.s32.totalorder %s28, 1
    %p408 = por %p406, %p407
    %p409 = scmp.ne.s32.totalorder %s398, %s399
    %p410 = scmp.eq.s32.totalorder %s28, 0
    %p411 = por %p409, %p410
    %p412 = scmp.ne.s32.totalorder %s398, %s399
    %p413 = scmp.eq.s32.totalorder %s29, 1
    %p414 = por %p412, %p413
    %p416 = scmp.ne.s32.totalorder %s399, %s415
    %p417 = scmp.eq.s32.totalorder %s29, 0
    %p418 = por %p416, %p417
    %p419 = scmp.le.s32.totalorder 1, %s23
    %p420 = scmp.lt.s32.totalorder %s23, 3
    %p421 = pnand %p419, %p420
    %p422 = pneg %p421
    // Predicated region
    $region9: #{tpu_custom_call.1} parent=5 // pred_check
      _
    $region10: #{tpu_custom_call.1} parent=5 // pred_check_branch
      %424 = sbr.rel (%p421) target = $region12
    $region11: #{tpu_custom_call.1} parent=5 // pred_region
      %s425 = ssub.s32 %s23, 1
      // Predicated region
      $region13: #{tpu_custom_call.1} parent=11 // pred_check
        %p426 = pneg %p70
      $region14: #{tpu_custom_call.1} parent=11 // pred_check_branch
        %428 = sbr.rel (%p426) target = $region16
      $region15: #{tpu_custom_call.1} parent=11 // pred_region
        _
      $region16: #{tpu_custom_call.1} parent=11 // pred_fallthru
        _
      // Predicated region
      $region17: #{tpu_custom_call.1} parent=11 // pred_check
        %p429 = pneg %p91
      $region18: #{tpu_custom_call.1} parent=11 // pred_check_branch
        %431 = sbr.rel (%p429) target = $region20
      $region19: #{tpu_custom_call.1} parent=11 // pred_region
        _
      $region20: #{tpu_custom_call.1} parent=11 // pred_fallthru
        _
      // Predicated region
      $region21: #{tpu_custom_call.1} parent=11 // pred_check
        %p432 = pneg %p112
      $region22: #{tpu_custom_call.1} parent=11 // pred_check_branch
        %434 = sbr.rel (%p432) target = $region24
      $region23: #{tpu_custom_call.1} parent=11 // pred_region
        _
      $region24: #{tpu_custom_call.1} parent=11 // pred_fallthru
        _
      // Predicated region
      $region25: #{tpu_custom_call.1} parent=11 // pred_check
        %p435 = pneg %p133
      $region26: #{tpu_custom_call.1} parent=11 // pred_check_branch
        %437 = sbr.rel (%p435) target = $region28
      $region27: #{tpu_custom_call.1} parent=11 // pred_region
        _
      $region28: #{tpu_custom_call.1} parent=11 // pred_fallthru
        _
      // Predicated region
      $region29: #{tpu_custom_call.1} parent=11 // pred_check
        %p438 = pneg %p154
      $region30: #{tpu_custom_call.1} parent=11 // pred_check_branch
        %440 = sbr.rel (%p438) target = $region32
      $region31: #{tpu_custom_call.1} parent=11 // pred_region
        _
      $region32: #{tpu_custom_call.1} parent=11 // pred_fallthru
        _
      // Predicated region
      $region33: #{tpu_custom_call.1} parent=11 // pred_check
        %p441 = pneg %p175
      $region34: #{tpu_custom_call.1} parent=11 // pred_check_branch
        %443 = sbr.rel (%p441) target = $region36
      $region35: #{tpu_custom_call.1} parent=11 // pred_region
        _
      $region36: #{tpu_custom_call.1} parent=11 // pred_fallthru
        _
      // Predicated region
      $region37: #{tpu_custom_call.1} parent=11 // pred_check
        %p444 = pneg %p196
      $region38: #{tpu_custom_call.1} parent=11 // pred_check_branch
        %446 = sbr.rel (%p444) target = $region40
      $region39: #{tpu_custom_call.1} parent=11 // pred_region
        _
      $region40: #{tpu_custom_call.1} parent=11 // pred_fallthru
        _
      // Predicated region
      $region41: #{tpu_custom_call.1} parent=11 // pred_check
        %p447 = pneg %p217
      $region42: #{tpu_custom_call.1} parent=11 // pred_check_branch
        %449 = sbr.rel (%p447) target = $region44
      $region43: #{tpu_custom_call.1} parent=11 // pred_region
        _
      $region44: #{tpu_custom_call.1} parent=11 // pred_fallthru
        _
      // Predicated region
      $region45: #{tpu_custom_call.1} parent=11 // pred_check
        %p450 = pneg %p238
      $region46: #{tpu_custom_call.1} parent=11 // pred_check_branch
        %452 = sbr.rel (%p450) target = $region48
      $region47: #{tpu_custom_call.1} parent=11 // pred_region
        _
      $region48: #{tpu_custom_call.1} parent=11 // pred_fallthru
        _
      // Predicated region
      $region49: #{tpu_custom_call.1} parent=11 // pred_check
        %p453 = pneg %p259
      $region50: #{tpu_custom_call.1} parent=11 // pred_check_branch
        %455 = sbr.rel (%p453) target = $region52
      $region51: #{tpu_custom_call.1} parent=11 // pred_region
        _
      $region52: #{tpu_custom_call.1} parent=11 // pred_fallthru
        _
      // Predicated region
      $region53: #{tpu_custom_call.1} parent=11 // pred_check
        %p456 = pneg %p280
      $region54: #{tpu_custom_call.1} parent=11 // pred_check_branch
        %458 = sbr.rel (%p456) target = $region56
      $region55: #{tpu_custom_call.1} parent=11 // pred_region
        _
      $region56: #{tpu_custom_call.1} parent=11 // pred_fallthru
        _
      // Predicated region
      $region57: #{tpu_custom_call.1} parent=11 // pred_check
        %p459 = pneg %p301
      $region58: #{tpu_custom_call.1} parent=11 // pred_check_branch
        %461 = sbr.rel (%p459) target = $region60
      $region59: #{tpu_custom_call.1} parent=11 // pred_region
        _
      $region60: #{tpu_custom_call.1} parent=11 // pred_fallthru
        _
      // Predicated region
      $region61: #{tpu_custom_call.1} parent=11 // pred_check
        %p462 = pneg %p322
      $region62: #{tpu_custom_call.1} parent=11 // pred_check_branch
        %464 = sbr.rel (%p462) target = $region64
      $region63: #{tpu_custom_call.1} parent=11 // pred_region
        _
      $region64: #{tpu_custom_call.1} parent=11 // pred_fallthru
        _
      // Predicated region
      $region65: #{tpu_custom_call.1} parent=11 // pred_check
        %p465 = pneg %p343
      $region66: #{tpu_custom_call.1} parent=11 // pred_check_branch
        %467 = sbr.rel (%p465) target = $region68
      $region67: #{tpu_custom_call.1} parent=11 // pred_region
        _
      $region68: #{tpu_custom_call.1} parent=11 // pred_fallthru
        _
      // Predicated region
      $region69: #{tpu_custom_call.1} parent=11 // pred_check
        %p468 = pneg %p364
      $region70: #{tpu_custom_call.1} parent=11 // pred_check_branch
        %470 = sbr.rel (%p468) target = $region72
      $region71: #{tpu_custom_call.1} parent=11 // pred_region
        _
      $region72: #{tpu_custom_call.1} parent=11 // pred_fallthru
        _
      // Predicated region
      $region73: #{tpu_custom_call.1} parent=11 // pred_check
        %p471 = pneg %p385
      $region74: #{tpu_custom_call.1} parent=11 // pred_check_branch
        %473 = sbr.rel (%p471) target = $region76
      $region75: #{tpu_custom_call.1} parent=11 // pred_region
        _
      $region76: #{tpu_custom_call.1} parent=11 // pred_fallthru
        _
    $region12: #{tpu_custom_call.1} parent=5 // pred_fallthru
      _
    %p474 = scmp.lt.s32.totalorder %s23, 2
    // Predicated region
    $region77: #{tpu_custom_call.1} parent=5 // pred_check
      %p475 = pneg %p474
    $region78: #{tpu_custom_call.1} parent=5 // pred_check_branch
      %477 = sbr.rel (%p475) target = $region80
    $region79: #{tpu_custom_call.1} parent=5 // pred_region
      // Predicated region
      $region81: #{tpu_custom_call.1} parent=79 // pred_check
        %p478 = pneg %p43
      $region82: #{tpu_custom_call.1} parent=79 // pred_check_branch
        %480 = sbr.rel (%p478) target = $region84
      $region83: #{tpu_custom_call.1} parent=79 // pred_region
        %p481 = scmp.lt.s32.totalorder %s23, 1
        %s482 = scalar_select %p481, %s23, 1
        %s483 = smul.addr %s482, 32
        %s484 = smul.addr %s483, 8
        %s485 = scalar_lea.vmem %s0, %s484
      $region84: #{tpu_custom_call.1} parent=79 // pred_fallthru
        _
    $region80: #{tpu_custom_call.1} parent=5 // pred_fallthru
      _
    %p486 = scmp.le.s32.totalorder 1, %s23
    %p487 = scmp.lt.s32.totalorder %s23, 3
    %p488 = pnand %p486, %p487
    %p489 = pneg %p488
    // Predicated region
    $region85: #{tpu_custom_call.1} parent=5 // pred_check
      _
    $region86: #{tpu_custom_call.1} parent=5 // pred_check_branch
      %491 = sbr.rel (%p488) target = $region88
    $region87: #{tpu_custom_call.1} parent=5 // pred_region
      %s492 = ssub.s32 %s23, 1
      %p493 = scmp.lt.s32.totalorder %s28, 1
      %s494 = scalar_select %p493, %s28, 1
      %s495 = smul.addr %s494, 32
      %s496 = smul.addr %s495, 8
      %s497 = scalar_lea.vmem %s0, %s496
      %p498 = pneg %p49
      %p499 = pneg %p46
      %p500 = pneg %p70
      %p501 = pneg %p67
      %p502 = pneg %p91
      %p503 = pneg %p88
      %p504 = pneg %p112
      %p505 = pneg %p109
      %p506 = pneg %p133
      %p507 = pneg %p130
      %p508 = pneg %p154
      %p509 = pneg %p151
      %p510 = pneg %p175
      %p511 = pneg %p172
      %p512 = pneg %p196
      %p513 = pneg %p193
      %p514 = pneg %p217
      %p515 = pneg %p214
      %p516 = pneg %p238
      %p517 = pneg %p235
      %p518 = pneg %p259
      %p519 = pneg %p256
      %p520 = pneg %p280
      %p521 = pneg %p277
      %p522 = pneg %p301
      %p523 = pneg %p298
      %p524 = pneg %p322
      %p525 = pneg %p319
      %p526 = pneg %p343
      %p527 = pneg %p340
      %p528 = pneg %p364
      %p529 = pneg %p361
      %p530 = pneg %p385
      %p531 = pneg %p382
      %p532 = pneg %p411
      %p533 = pneg %p408
      %p534 = scmp.lt.s32.totalorder %s28, 1
      %s535 = scalar_select %p534, %s28, 1
      %s536 = smul.addr %s535, 32
      %s537 = smul.addr %s536, 8
      %s538 = scalar_lea.vmem %s17, %s537
      %p539 = scmp.lt.s32.totalorder %s28, 1
      %s540 = scalar_select %p539, %s28, 1
      %s541 = smul.addr %s540, 32
      %s542 = smul.addr %s541, 8
      %s543 = scalar_lea.vmem %s0, %s542
      %p544 = scmp.lt.s32.totalorder %s28, 1
      %s545 = scalar_select %p544, %s28, 1
      %s546 = smul.addr %s545, 32
      %s547 = smul.addr %s546, 8
      %s548 = scalar_lea.vmem %s17, %s547
      %v550 = vld [vmem:[%s543] sm:$0xff]
      %v551 = vld [vmem:[%s543 + $0x8] sm:$0xff]
      %v552 = vld [vmem:[%s543 + $0x10] sm:$0xff]
      %v553 = vld [vmem:[%s543 + $0x18] sm:$0xff]
      %v554 = vld [vmem:[%s543 + $0x20] sm:$0xff]
      %v555 = vld [vmem:[%s543 + $0x28] sm:$0xff]
      %v556 = vld [vmem:[%s543 + $0x30] sm:$0xff]
      %v557 = vld [vmem:[%s543 + $0x38] sm:$0xff]
      %v558 = vld [vmem:[%s543 + $0x40] sm:$0xff]
      %v559 = vld [vmem:[%s543 + $0x48] sm:$0xff]
      %v560 = vld [vmem:[%s543 + $0x50] sm:$0xff]
      %v561 = vld [vmem:[%s543 + $0x58] sm:$0xff]
      %v562 = vld [vmem:[%s543 + $0x60] sm:$0xff]
      %v563 = vld [vmem:[%s543 + $0x68] sm:$0xff]
      %v564 = vld [vmem:[%s543 + $0x70] sm:$0xff]
      %v565 = vld [vmem:[%s543 + $0x78] sm:$0xff]
      %v566 = vld [vmem:[%s543 + $0x80] sm:$0xff]
      %v567 = vld [vmem:[%s543 + $0x88] sm:$0xff]
      %v568 = vld [vmem:[%s543 + $0x90] sm:$0xff]
      %v569 = vld [vmem:[%s543 + $0x98] sm:$0xff]
      %v570 = vld [vmem:[%s543 + $0xa0] sm:$0xff]
      %v571 = vld [vmem:[%s543 + $0xa8] sm:$0xff]
      %v572 = vld [vmem:[%s543 + $0xb0] sm:$0xff]
      %v573 = vld [vmem:[%s543 + $0xb8] sm:$0xff]
      %v574 = vld [vmem:[%s543 + $0xc0] sm:$0xff]
      %v575 = vld [vmem:[%s543 + $0xc8] sm:$0xff]
      %v576 = vld [vmem:[%s543 + $0xd0] sm:$0xff]
      %v577 = vld [vmem:[%s543 + $0xd8] sm:$0xff]
      %v578 = vld [vmem:[%s543 + $0xe0] sm:$0xff]
      %v579 = vld [vmem:[%s543 + $0xe8] sm:$0xff]
      %v580 = vld [vmem:[%s543 + $0xf0] sm:$0xff]
      %v581 = vld [vmem:[%s543 + $0xf8] sm:$0xff]
      %v582 = vpack.c.bf16 %v551, %v550
      %v583 = vpack.c.bf16 %v553, %v552
      %v584 = vpack.c.bf16 %v555, %v554
      %v585 = vpack.c.bf16 %v557, %v556
      %v586 = vpack.c.bf16 %v559, %v558
      %v587 = vpack.c.bf16 %v561, %v560
      %v588 = vpack.c.bf16 %v563, %v562
      %v589 = vpack.c.bf16 %v565, %v564
      %v590 = vpack.c.bf16 %v567, %v566
      %v591 = vpack.c.bf16 %v569, %v568
      %v592 = vpack.c.bf16 %v571, %v570
      %v593 = vpack.c.bf16 %v573, %v572
      %v594 = vpack.c.bf16 %v575, %v574
      %v595 = vpack.c.bf16 %v577, %v576
      %v596 = vpack.c.bf16 %v579, %v578
      %v597 = vpack.c.bf16 %v581, %v580
      %v598 = vld [vmem:[%s1] sm:$0xf]
      %v599 = vld [vmem:[%s1 + $0x4] sm:$0xf]
      %v600 = vld [vmem:[%s1 + $0x8] sm:$0xf]
      %v601 = vld [vmem:[%s1 + $0xc] sm:$0xf]
      %v606 = vunpack.c.l.b16 %v598
      %v607 = vunpack.c.l.b16 %v599
      %v608 = vunpack.c.l.b16 %v600
      %v609 = vunpack.c.l.b16 %v601
      %v610 = vpack.c.b16 %v607, %v606
      %v611 = vpack.c.b16 %v609, %v608
      %vm614 = vcmask 261120
      %v616 = vsel %vm614, %v582, 0
      %v619 = vsel %vm614, %v583, 0
      %v622 = vsel %vm614, %v584, 0
      %v625 = vsel %vm614, %v585, 0
      %v628 = vsel %vm614, %v586, 0
      %v631 = vsel %vm614, %v587, 0
      %v634 = vsel %vm614, %v588, 0
      %v637 = vsel %vm614, %v589, 0
      %v640 = vsel %vm614, %v590, 0
      %v643 = vsel %vm614, %v591, 0
      %v646 = vsel %vm614, %v592, 0
      %v649 = vsel %vm614, %v593, 0
      %v652 = vsel %vm614, %v594, 0
      %v655 = vsel %vm614, %v595, 0
      %v658 = vsel %vm614, %v596, 0
      %v661 = vsel %vm614, %v597, 0
      %663 = vmatpush.bf16.msra.mxu0 0
      %664 = vmatpush.bf16.msra.mxu0 0
      %665 = vmatpush.bf16.msra.mxu0 0
      %666 = vmatpush.bf16.msra.mxu0 0
      %667 = vmatpush.bf16.msra.mxu0 0
      %668 = vmatpush.bf16.msra.mxu0 0
      %669 = vmatpush.bf16.msra.mxu0 %v611
      %670 = vmatpush.bf16.msra.mxu0 %v610
      %671 = vmatmul.bf16.gmra.mxu0 %v616
      %v672 = vpop.f32.mrf.mxu0
      %v673 = vadd.f32 0.0, %v672
      %v674 = vpop.f32.mrf.mxu0
      %v675 = vadd.f32 0.0, %v674
      %676 = vmatmul.bf16.gmra.mxu0 %v619
      %v677 = vpop.f32.mrf.mxu0
      %v678 = vadd.f32 0.0, %v677
      %v679 = vpop.f32.mrf.mxu0
      %v680 = vadd.f32 0.0, %v679
      %681 = vmatmul.bf16.gmra.mxu0 %v622
      %v682 = vpop.f32.mrf.mxu0
      %v683 = vadd.f32 0.0, %v682
      %v684 = vpop.f32.mrf.mxu0
      %v685 = vadd.f32 0.0, %v684
      %686 = vmatmul.bf16.gmra.mxu0 %v625
      %v687 = vpop.f32.mrf.mxu0
      %v688 = vadd.f32 0.0, %v687
      %v689 = vpop.f32.mrf.mxu0
      %v690 = vadd.f32 0.0, %v689
      %691 = vmatmul.bf16.gmra.mxu0 %v628
      %v692 = vpop.f32.mrf.mxu0
      %v693 = vadd.f32 0.0, %v692
      %v694 = vpop.f32.mrf.mxu0
      %v695 = vadd.f32 0.0, %v694
      %696 = vmatmul.bf16.gmra.mxu0 %v631
      %v697 = vpop.f32.mrf.mxu0
      %v698 = vadd.f32 0.0, %v697
      %v699 = vpop.f32.mrf.mxu0
      %v700 = vadd.f32 0.0, %v699
      %701 = vmatmul.bf16.gmra.mxu0 %v634
      %v702 = vpop.f32.mrf.mxu0
      %v703 = vadd.f32 0.0, %v702
      %v704 = vpop.f32.mrf.mxu0
      %v705 = vadd.f32 0.0, %v704
      %706 = vmatmul.bf16.gmra.mxu0 %v637
      %v707 = vpop.f32.mrf.mxu0
      %v708 = vadd.f32 0.0, %v707
      %v709 = vpop.f32.mrf.mxu0
      %v710 = vadd.f32 0.0, %v709
      %711 = vmatmul.bf16.gmra.mxu0 %v640
      %v712 = vpop.f32.mrf.mxu0
      %v713 = vadd.f32 0.0, %v712
      %v714 = vpop.f32.mrf.mxu0
      %v715 = vadd.f32 0.0, %v714
      %716 = vmatmul.bf16.gmra.mxu0 %v643
      %v717 = vpop.f32.mrf.mxu0
      %v718 = vadd.f32 0.0, %v717
      %v719 = vpop.f32.mrf.mxu0
      %v720 = vadd.f32 0.0, %v719
      %721 = vmatmul.bf16.gmra.mxu0 %v646
      %v722 = vpop.f32.mrf.mxu0
      %v723 = vadd.f32 0.0, %v722
      %v724 = vpop.f32.mrf.mxu0
      %v725 = vadd.f32 0.0, %v724
      %726 = vmatmul.bf16.gmra.mxu0 %v649
      %v727 = vpop.f32.mrf.mxu0
      %v728 = vadd.f32 0.0, %v727
      %v729 = vpop.f32.mrf.mxu0
      %v730 = vadd.f32 0.0, %v729
      %731 = vmatmul.bf16.gmra.mxu0 %v652
      %v732 = vpop.f32.mrf.mxu0
      %v733 = vadd.f32 0.0, %v732
      %v734 = vpop.f32.mrf.mxu0
      %v735 = vadd.f32 0.0, %v734
      %736 = vmatmul.bf16.gmra.mxu0 %v655
      %v737 = vpop.f32.mrf.mxu0
      %v738 = vadd.f32 0.0, %v737
      %v739 = vpop.f32.mrf.mxu0
      %v740 = vadd.f32 0.0, %v739
      %741 = vmatmul.bf16.gmra.mxu0 %v658
      %v742 = vpop.f32.mrf.mxu0
      %v743 = vadd.f32 0.0, %v742
      %v744 = vpop.f32.mrf.mxu0
      %v745 = vadd.f32 0.0, %v744
      %746 = vmatmul.bf16.gmra.mxu0 %v661
      %v747 = vpop.f32.mrf.mxu0
      %v748 = vadd.f32 0.0, %v747
      %v749 = vpop.f32.mrf.mxu0
      %v750 = vadd.f32 0.0, %v749
      %751 = vdwg.mxu0
      %v752 = vld [vmem:[%s2] sm:$0xf]
      %v753 = vld [vmem:[%s2 + $0x4] sm:$0xf]
      %v754 = vld [vmem:[%s2 + $0x8] sm:$0xf]
      %v755 = vld [vmem:[%s2 + $0xc] sm:$0xf]
      %v760 = vunpack.c.l.b16 %v752
      %v761 = vunpack.c.l.b16 %v753
      %v762 = vunpack.c.l.b16 %v754
      %v763 = vunpack.c.l.b16 %v755
      %v764 = vpack.c.b16 %v761, %v760
      %v765 = vpack.c.b16 %v763, %v762
      %768 = vmatpush.bf16.msra.mxu0 0
      %769 = vmatpush.bf16.msra.mxu0 0
      %770 = vmatpush.bf16.msra.mxu0 0
      %771 = vmatpush.bf16.msra.mxu0 0
      %772 = vmatpush.bf16.msra.mxu0 0
      %773 = vmatpush.bf16.msra.mxu0 0
      %774 = vmatpush.bf16.msra.mxu0 %v765
      %775 = vmatpush.bf16.msra.mxu0 %v764
      %776 = vmatmul.bf16.gmra.mxu0 %v616
      %v777 = vpop.f32.mrf.mxu0
      %v778 = vadd.f32 0.0, %v777
      %v779 = vpop.f32.mrf.mxu0
      %v780 = vadd.f32 0.0, %v779
      %781 = vmatmul.bf16.gmra.mxu0 %v619
      %v782 = vpop.f32.mrf.mxu0
      %v783 = vadd.f32 0.0, %v782
      %v784 = vpop.f32.mrf.mxu0
      %v785 = vadd.f32 0.0, %v784
      %786 = vmatmul.bf16.gmra.mxu0 %v622
      %v787 = vpop.f32.mrf.mxu0
      %v788 = vadd.f32 0.0, %v787
      %v789 = vpop.f32.mrf.mxu0
      %v790 = vadd.f32 0.0, %v789
      %791 = vmatmul.bf16.gmra.mxu0 %v625
      %v792 = vpop.f32.mrf.mxu0
      %v793 = vadd.f32 0.0, %v792
      %v794 = vpop.f32.mrf.mxu0
      %v795 = vadd.f32 0.0, %v794
      %796 = vmatmul.bf16.gmra.mxu0 %v628
      %v797 = vpop.f32.mrf.mxu0
      %v798 = vadd.f32 0.0, %v797
      %v799 = vpop.f32.mrf.mxu0
      %v800 = vadd.f32 0.0, %v799
      %801 = vmatmul.bf16.gmra.mxu0 %v631
      %v802 = vpop.f32.mrf.mxu0
      %v803 = vadd.f32 0.0, %v802
      %v804 = vpop.f32.mrf.mxu0
      %v805 = vadd.f32 0.0, %v804
      %806 = vmatmul.bf16.gmra.mxu0 %v634
      %v807 = vpop.f32.mrf.mxu0
      %v808 = vadd.f32 0.0, %v807
      %v809 = vpop.f32.mrf.mxu0
      %v810 = vadd.f32 0.0, %v809
      %811 = vmatmul.bf16.gmra.mxu0 %v637
      %v812 = vpop.f32.mrf.mxu0
      %v813 = vadd.f32 0.0, %v812
      %v814 = vpop.f32.mrf.mxu0
      %v815 = vadd.f32 0.0, %v814
      %816 = vmatmul.bf16.gmra.mxu0 %v640
      %v817 = vpop.f32.mrf.mxu0
      %v818 = vadd.f32 0.0, %v817
      %v819 = vpop.f32.mrf.mxu0
      %v820 = vadd.f32 0.0, %v819
      %821 = vmatmul.bf16.gmra.mxu0 %v643
      %v822 = vpop.f32.mrf.mxu0
      %v823 = vadd.f32 0.0, %v822
      %v824 = vpop.f32.mrf.mxu0
      %v825 = vadd.f32 0.0, %v824
      %826 = vmatmul.bf16.gmra.mxu0 %v646
      %v827 = vpop.f32.mrf.mxu0
      %v828 = vadd.f32 0.0, %v827
      %v829 = vpop.f32.mrf.mxu0
      %v830 = vadd.f32 0.0, %v829
      %831 = vmatmul.bf16.gmra.mxu0 %v649
      %v832 = vpop.f32.mrf.mxu0
      %v833 = vadd.f32 0.0, %v832
      %v834 = vpop.f32.mrf.mxu0
      %v835 = vadd.f32 0.0, %v834
      %836 = vmatmul.bf16.gmra.mxu0 %v652
      %v837 = vpop.f32.mrf.mxu0
      %v838 = vadd.f32 0.0, %v837
      %v839 = vpop.f32.mrf.mxu0
      %v840 = vadd.f32 0.0, %v839
      %841 = vmatmul.bf16.gmra.mxu0 %v655
      %v842 = vpop.f32.mrf.mxu0
      %v843 = vadd.f32 0.0, %v842
      %v844 = vpop.f32.mrf.mxu0
      %v845 = vadd.f32 0.0, %v844
      %846 = vmatmul.bf16.gmra.mxu0 %v658
      %v847 = vpop.f32.mrf.mxu0
      %v848 = vadd.f32 0.0, %v847
      %v849 = vpop.f32.mrf.mxu0
      %v850 = vadd.f32 0.0, %v849
      %851 = vmatmul.bf16.gmra.mxu0 %v661
      %v852 = vpop.f32.mrf.mxu0
      %v853 = vadd.f32 0.0, %v852
      %v854 = vpop.f32.mrf.mxu0
      %v855 = vadd.f32 0.0, %v854
      %856 = vdwg.mxu0
      %v857 = vld [vmem:[%s5] sm:$0x1]
      %v858 = vld [vmem:[%s6] sm:$0x1]
      %v859 = vld [vmem:[%s13] sm:$0xff]
      %v860 = vld [vmem:[%s13 + $0x8] sm:$0xff]
      %v861 = vld [vmem:[%s13 + $0x10] sm:$0xff]
      %v862 = vld [vmem:[%s13 + $0x18] sm:$0xff]
      %v863 = vld [vmem:[%s14] sm:$0xff]
      %v864 = vld [vmem:[%s14 + $0x8] sm:$0xff]
      %v865 = vld [vmem:[%s14 + $0x10] sm:$0xff]
      %v866 = vld [vmem:[%s14 + $0x18] sm:$0xff]
      %v867 = vsel %vm614, %v673, 0.0
      %v868 = vsel %vm614, %v675, 0.0
      %v869 = vadd.f32 %v867, %v868
      %v870 = vsel %vm614, %v678, 0.0
      %v871 = vadd.f32 %v869, %v870
      %v872 = vsel %vm614, %v680, 0.0
      %v873 = vadd.f32 %v871, %v872
      %v874 = vsel %vm614, %v683, 0.0
      %v875 = vadd.f32 %v873, %v874
      %v876 = vsel %vm614, %v685, 0.0
      %v877 = vadd.f32 %v875, %v876
      %v878 = vsel %vm614, %v688, 0.0
      %v879 = vadd.f32 %v877, %v878
      %v880 = vsel %vm614, %v690, 0.0
      %v881 = vadd.f32 %v879, %v880
      %v882 = vsel %vm614, %v693, 0.0
      %v883 = vadd.f32 %v881, %v882
      %v884 = vsel %vm614, %v695, 0.0
      %v885 = vadd.f32 %v883, %v884
      %v886 = vsel %vm614, %v698, 0.0
      %v887 = vadd.f32 %v885, %v886
      %v888 = vsel %vm614, %v700, 0.0
      %v889 = vadd.f32 %v887, %v888
      %v890 = vsel %vm614, %v703, 0.0
      %v891 = vadd.f32 %v889, %v890
      %v892 = vsel %vm614, %v705, 0.0
      %v893 = vadd.f32 %v891, %v892
      %v894 = vsel %vm614, %v708, 0.0
      %v895 = vadd.f32 %v893, %v894
      %v896 = vsel %vm614, %v710, 0.0
      %v897 = vadd.f32 %v895, %v896
      %v898 = vsel %vm614, %v713, 0.0
      %v899 = vadd.f32 %v897, %v898
      %v900 = vsel %vm614, %v715, 0.0
      %v901 = vadd.f32 %v899, %v900
      %v902 = vsel %vm614, %v718, 0.0
      %v903 = vadd.f32 %v901, %v902
      %v904 = vsel %vm614, %v720, 0.0
      %v905 = vadd.f32 %v903, %v904
      %v906 = vsel %vm614, %v723, 0.0
      %v907 = vadd.f32 %v905, %v906
      %v908 = vsel %vm614, %v725, 0.0
      %v909 = vadd.f32 %v907, %v908
      %v910 = vsel %vm614, %v728, 0.0
      %v911 = vadd.f32 %v909, %v910
      %v912 = vsel %vm614, %v730, 0.0
      %v913 = vadd.f32 %v911, %v912
      %v914 = vsel %vm614, %v733, 0.0
      %v915 = vadd.f32 %v913, %v914
      %v916 = vsel %vm614, %v735, 0.0
      %v917 = vadd.f32 %v915, %v916
      %v918 = vsel %vm614, %v738, 0.0
      %v919 = vadd.f32 %v917, %v918
      %v920 = vsel %vm614, %v740, 0.0
      %v921 = vadd.f32 %v919, %v920
      %v922 = vsel %vm614, %v743, 0.0
      %v923 = vadd.f32 %v921, %v922
      %v924 = vsel %vm614, %v745, 0.0
      %v925 = vadd.f32 %v923, %v924
      %v926 = vsel %vm614, %v748, 0.0
      %v927 = vadd.f32 %v925, %v926
      %v928 = vsel %vm614, %v750, 0.0
      %v929 = vadd.f32 %v927, %v928
      %v930 = vrot.slane %v929, 4
      %v931 = vadd.f32 %v929, %v930
      %v932 = vrot.slane %v931, 2
      %v933 = vadd.f32 %v931, %v932
      %v934 = vrot.slane %v933, 1
      %v935 = vadd.f32 %v933, %v934
      %v936 = vrcp.pop 256.0
      %v937 = vmul.f32 256.0, %v936
      %v938 = vsub.f32 1.0, %v937
      %v939 = vmul.f32 %v936, %v938
      %v940 = vadd.f32 %v936, %v939
      %vm941 = vweird.f32 %v936
      %v942 = vsel %vm941, %v936, %v940
      %v943 = vmul.f32 %v935, %v942
      %v944 = vmul.f32 %v673, %v673
      %v945 = vmul.f32 %v675, %v675
      %v946 = vmul.f32 %v678, %v678
      %v947 = vmul.f32 %v680, %v680
      %v948 = vmul.f32 %v683, %v683
      %v949 = vmul.f32 %v685, %v685
      %v950 = vmul.f32 %v688, %v688
      %v951 = vmul.f32 %v690, %v690
      %v952 = vmul.f32 %v693, %v693
      %v953 = vmul.f32 %v695, %v695
      %v954 = vmul.f32 %v698, %v698
      %v955 = vmul.f32 %v700, %v700
      %v956 = vmul.f32 %v703, %v703
      %v957 = vmul.f32 %v705, %v705
      %v958 = vmul.f32 %v708, %v708
      %v959 = vmul.f32 %v710, %v710
      %v960 = vmul.f32 %v713, %v713
      %v961 = vmul.f32 %v715, %v715
      %v962 = vmul.f32 %v718, %v718
      %v963 = vmul.f32 %v720, %v720
      %v964 = vmul.f32 %v723, %v723
      %v965 = vmul.f32 %v725, %v725
      %v966 = vmul.f32 %v728, %v728
      %v967 = vmul.f32 %v730, %v730
      %v968 = vmul.f32 %v733, %v733
      %v969 = vmul.f32 %v735, %v735
      %v970 = vmul.f32 %v738, %v738
      %v971 = vmul.f32 %v740, %v740
      %v972 = vmul.f32 %v743, %v743
      %v973 = vmul.f32 %v745, %v745
      %v974 = vmul.f32 %v748, %v748
      %v975 = vmul.f32 %v750, %v750
      %v976 = vsel %vm614, %v944, 0.0
      %v977 = vsel %vm614, %v945, 0.0
      %v978 = vadd.f32 %v976, %v977
      %v979 = vsel %vm614, %v946, 0.0
      %v980 = vadd.f32 %v978, %v979
      %v981 = vsel %vm614, %v947, 0.0
      %v982 = vadd.f32 %v980, %v981
      %v983 = vsel %vm614, %v948, 0.0
      %v984 = vadd.f32 %v982, %v983
      %v985 = vsel %vm614, %v949, 0.0
      %v986 = vadd.f32 %v984, %v985
      %v987 = vsel %vm614, %v950, 0.0
      %v988 = vadd.f32 %v986, %v987
      %v989 = vsel %vm614, %v951, 0.0
      %v990 = vadd.f32 %v988, %v989
      %v991 = vsel %vm614, %v952, 0.0
      %v992 = vadd.f32 %v990, %v991
      %v993 = vsel %vm614, %v953, 0.0
      %v994 = vadd.f32 %v992, %v993
      %v995 = vsel %vm614, %v954, 0.0
      %v996 = vadd.f32 %v994, %v995
      %v997 = vsel %vm614, %v955, 0.0
      %v998 = vadd.f32 %v996, %v997
      %v999 = vsel %vm614, %v956, 0.0
      %v1000 = vadd.f32 %v998, %v999
      %v1001 = vsel %vm614, %v957, 0.0
      %v1002 = vadd.f32 %v1000, %v1001
      %v1003 = vsel %vm614, %v958, 0.0
      %v1004 = vadd.f32 %v1002, %v1003
      %v1005 = vsel %vm614, %v959, 0.0
      %v1006 = vadd.f32 %v1004, %v1005
      %v1007 = vsel %vm614, %v960, 0.0
      %v1008 = vadd.f32 %v1006, %v1007
      %v1009 = vsel %vm614, %v961, 0.0
      %v1010 = vadd.f32 %v1008, %v1009
      %v1011 = vsel %vm614, %v962, 0.0
      %v1012 = vadd.f32 %v1010, %v1011
      %v1013 = vsel %vm614, %v963, 0.0
      %v1014 = vadd.f32 %v1012, %v1013
      %v1015 = vsel %vm614, %v964, 0.0
      %v1016 = vadd.f32 %v1014, %v1015
      %v1017 = vsel %vm614, %v965, 0.0
      %v1018 = vadd.f32 %v1016, %v1017
      %v1019 = vsel %vm614, %v966, 0.0
      %v1020 = vadd.f32 %v1018, %v1019
      %v1021 = vsel %vm614, %v967, 0.0
      %v1022 = vadd.f32 %v1020, %v1021
      %v1023 = vsel %vm614, %v968, 0.0
      %v1024 = vadd.f32 %v1022, %v1023
      %v1025 = vsel %vm614, %v969, 0.0
      %v1026 = vadd.f32 %v1024, %v1025
      %v1027 = vsel %vm614, %v970, 0.0
      %v1028 = vadd.f32 %v1026, %v1027
      %v1029 = vsel %vm614, %v971, 0.0
      %v1030 = vadd.f32 %v1028, %v1029
      %v1031 = vsel %vm614, %v972, 0.0
      %v1032 = vadd.f32 %v1030, %v1031
      %v1033 = vsel %vm614, %v973, 0.0
      %v1034 = vadd.f32 %v1032, %v1033
      %v1035 = vsel %vm614, %v974, 0.0
      %v1036 = vadd.f32 %v1034, %v1035
      %v1037 = vsel %vm614, %v975, 0.0
      %v1038 = vadd.f32 %v1036, %v1037
      %v1039 = vrot.slane %v1038, 4
      %v1040 = vadd.f32 %v1038, %v1039
      %v1041 = vrot.slane %v1040, 2
      %v1042 = vadd.f32 %v1040, %v1041
      %v1043 = vrot.slane %v1042, 1
      %v1044 = vadd.f32 %v1042, %v1043
      %v1045 = vmul.f32 %v1044, %v942
      %vm1046 = vcmask 1040384
      %v1047 = vsel %vm1046, %v943, %v1045
      %v1049 = vsel %vm614, %v1047, 0
      %1051 = vmatpush.msra.mxu0 0.0
      %1052 = vmatpush.msra.mxu0 0.0
      %1053 = vmatpush.msra.mxu0 0.0
      %1054 = vmatpush.msra.mxu0 0.0
      %1055 = vmatpush.msra.mxu0 0.0
      %1056 = vmatpush.msra.mxu0 0.0
      %1057 = vmatpush.msra.mxu0 0.0
      %1058 = vmatpush.msra.mxu0 0.0
      %1059 = vmatpush.msra.mxu0 0.0
      %1060 = vmatpush.msra.mxu0 0.0
      %1061 = vmatpush.msra.mxu0 0.0
      %1062 = vmatpush.msra.mxu0 0.0
      %1063 = vmatpush.msra.mxu0 %v862
      %1064 = vmatpush.msra.mxu0 %v861
      %1065 = vmatpush.msra.mxu0 %v860
      %1066 = vmatpush.msra.mxu0 %v859
      %1067 = vmatmul.f32.gmra.mxu0 %v1049
      %v1068 = vpop.f32.mrf.mxu0
      %v1069 = vadd.f32 0.0, %v1068
      %1070 = vdwg.mxu0
      %v1072 = vsel %vm614, %v1069, 0
      %1074 = vmatpush.msra.mxu0 0.0
      %1075 = vmatpush.msra.mxu0 0.0
      %1076 = vmatpush.msra.mxu0 0.0
      %1077 = vmatpush.msra.mxu0 0.0
      %1078 = vmatpush.msra.mxu0 0.0
      %1079 = vmatpush.msra.mxu0 0.0
      %1080 = vmatpush.msra.mxu0 0.0
      %1081 = vmatpush.msra.mxu0 0.0
      %1082 = vmatpush.msra.mxu0 0.0
      %1083 = vmatpush.msra.mxu0 0.0
      %1084 = vmatpush.msra.mxu0 0.0
      %1085 = vmatpush.msra.mxu0 0.0
      %1086 = vmatpush.msra.mxu0 %v866
      %1087 = vmatpush.msra.mxu0 %v865
      %1088 = vmatpush.msra.mxu0 %v864
      %1089 = vmatpush.msra.mxu0 %v863
      %1090 = vmatmul.f32.gmra.mxu0 %v1072
      %v1091 = vpop.f32.mrf.mxu0
      %v1092 = vadd.f32 0.0, %v1091
      %1093 = vdwg.mxu0
      %v1094 = vmul.f32 %v1092, %v1092
      %v1096 = vrot.slane %v1094, 7
      %v1098 = vsub.f32 %v1092, %v1096
      %v1099 = vmax.f32 %v1098, 0.0
      %v1100 = vadd.f32 %v1099, 1e-05
      %v1101 = vrsqrt.pop %v1100
      %v1102 = vmul.f32 %v1101, %v1100
      %v1103 = vmul.f32 %v1102, %v1101
      %v1104 = vmul.f32 0.5, %v1103
      %v1105 = vsub.f32 1.5, %v1104
      %v1106 = vmul.f32 %v1101, %v1105
      %vm1107 = vweird.f32 %v1100
      %vm1108 = vweird.f32 %v1101
      %vm1109 = vmor %vm1107, %vm1108
      %v1110 = vsel %vm1109, %v1101, %v1106
      %1112 = vst [vmem:[#allocation1] sm:$0xff] %v1110
      %s1113 = scalar_lea.vmem [#allocation1], 1
      %v1114 = vld [vmem:[%s1113] ss:$9 sm:$0xff]
      %v1116 = vmul.f32 %v857, %v1114
      %v1117 = vmul.f32 %v1092, %v1116
      %v1118 = vsub.f32 %v858, %v1117
      %v1120 = vperm.slane %v1116, 0
      %v1122 = vmul.f32 %v673, %v1120
      %v1123 = vmul.f32 %v675, %v1120
      %v1124 = vmul.f32 %v678, %v1120
      %v1125 = vmul.f32 %v680, %v1120
      %v1126 = vmul.f32 %v683, %v1120
      %v1127 = vmul.f32 %v685, %v1120
      %v1128 = vmul.f32 %v688, %v1120
      %v1129 = vmul.f32 %v690, %v1120
      %v1130 = vmul.f32 %v693, %v1120
      %v1131 = vmul.f32 %v695, %v1120
      %v1132 = vmul.f32 %v698, %v1120
      %v1133 = vmul.f32 %v700, %v1120
      %v1134 = vmul.f32 %v703, %v1120
      %v1135 = vmul.f32 %v705, %v1120
      %v1136 = vmul.f32 %v708, %v1120
      %v1137 = vmul.f32 %v710, %v1120
      %v1138 = vmul.f32 %v713, %v1120
      %v1139 = vmul.f32 %v715, %v1120
      %v1140 = vmul.f32 %v718, %v1120
      %v1141 = vmul.f32 %v720, %v1120
      %v1142 = vmul.f32 %v723, %v1120
      %v1143 = vmul.f32 %v725, %v1120
      %v1144 = vmul.f32 %v728, %v1120
      %v1145 = vmul.f32 %v730, %v1120
      %v1146 = vmul.f32 %v733, %v1120
      %v1147 = vmul.f32 %v735, %v1120
      %v1148 = vmul.f32 %v738, %v1120
      %v1149 = vmul.f32 %v740, %v1120
      %v1150 = vmul.f32 %v743, %v1120
      %v1151 = vmul.f32 %v745, %v1120
      %v1152 = vmul.f32 %v748, %v1120
      %v1153 = vmul.f32 %v750, %v1120
      %v1155 = vperm.slane %v1118, 0
      %v1157 = vadd.f32 %v1122, %v1155
      %v1158 = vadd.f32 %v1123, %v1155
      %v1159 = vadd.f32 %v1124, %v1155
      %v1160 = vadd.f32 %v1125, %v1155
      %v1161 = vadd.f32 %v1126, %v1155
      %v1162 = vadd.f32 %v1127, %v1155
      %v1163 = vadd.f32 %v1128, %v1155
      %v1164 = vadd.f32 %v1129, %v1155
      %v1165 = vadd.f32 %v1130, %v1155
      %v1166 = vadd.f32 %v1131, %v1155
      %v1167 = vadd.f32 %v1132, %v1155
      %v1168 = vadd.f32 %v1133, %v1155
      %v1169 = vadd.f32 %v1134, %v1155
      %v1170 = vadd.f32 %v1135, %v1155
      %v1171 = vadd.f32 %v1136, %v1155
      %v1172 = vadd.f32 %v1137, %v1155
      %v1173 = vadd.f32 %v1138, %v1155
      %v1174 = vadd.f32 %v1139, %v1155
      %v1175 = vadd.f32 %v1140, %v1155
      %v1176 = vadd.f32 %v1141, %v1155
      %v1177 = vadd.f32 %v1142, %v1155
      %v1178 = vadd.f32 %v1143, %v1155
      %v1179 = vadd.f32 %v1144, %v1155
      %v1180 = vadd.f32 %v1145, %v1155
      %v1181 = vadd.f32 %v1146, %v1155
      %v1182 = vadd.f32 %v1147, %v1155
      %v1183 = vadd.f32 %v1148, %v1155
      %v1184 = vadd.f32 %v1149, %v1155
      %v1185 = vadd.f32 %v1150, %v1155
      %v1186 = vadd.f32 %v1151, %v1155
      %v1187 = vadd.f32 %v1152, %v1155
      %v1188 = vadd.f32 %v1153, %v1155
      %v1189 = vmax.f32 %v1157, 0.0
      %v1190 = vmax.f32 %v1158, 0.0
      %v1191 = vmax.f32 %v1159, 0.0
      %v1192 = vmax.f32 %v1160, 0.0
      %v1193 = vmax.f32 %v1161, 0.0
      %v1194 = vmax.f32 %v1162, 0.0
      %v1195 = vmax.f32 %v1163, 0.0
      %v1196 = vmax.f32 %v1164, 0.0
      %v1197 = vmax.f32 %v1165, 0.0
      %v1198 = vmax.f32 %v1166, 0.0
      %v1199 = vmax.f32 %v1167, 0.0
      %v1200 = vmax.f32 %v1168, 0.0
      %v1201 = vmax.f32 %v1169, 0.0
      %v1202 = vmax.f32 %v1170, 0.0
      %v1203 = vmax.f32 %v1171, 0.0
      %v1204 = vmax.f32 %v1172, 0.0
      %v1205 = vmax.f32 %v1173, 0.0
      %v1206 = vmax.f32 %v1174, 0.0
      %v1207 = vmax.f32 %v1175, 0.0
      %v1208 = vmax.f32 %v1176, 0.0
      %v1209 = vmax.f32 %v1177, 0.0
      %v1210 = vmax.f32 %v1178, 0.0
      %v1211 = vmax.f32 %v1179, 0.0
      %v1212 = vmax.f32 %v1180, 0.0
      %v1213 = vmax.f32 %v1181, 0.0
      %v1214 = vmax.f32 %v1182, 0.0
      %v1215 = vmax.f32 %v1183, 0.0
      %v1216 = vmax.f32 %v1184, 0.0
      %v1217 = vmax.f32 %v1185, 0.0
      %v1218 = vmax.f32 %v1186, 0.0
      %v1219 = vmax.f32 %v1187, 0.0
      %v1220 = vmax.f32 %v1188, 0.0
      %v1221 = vpack.c.bf16 %v1189, %v1189
      %v1222 = vpack.c.bf16 %v1190, %v1190
      %v1223 = vpack.c.bf16 %v1191, %v1191
      %v1224 = vpack.c.bf16 %v1192, %v1192
      %v1225 = vpack.c.bf16 %v1193, %v1193
      %v1226 = vpack.c.bf16 %v1194, %v1194
      %v1227 = vpack.c.bf16 %v1195, %v1195
      %v1228 = vpack.c.bf16 %v1196, %v1196
      %v1229 = vpack.c.bf16 %v1197, %v1197
      %v1230 = vpack.c.bf16 %v1198, %v1198
      %v1231 = vpack.c.bf16 %v1199, %v1199
      %v1232 = vpack.c.bf16 %v1200, %v1200
      %v1233 = vpack.c.bf16 %v1201, %v1201
      %v1234 = vpack.c.bf16 %v1202, %v1202
      %v1235 = vpack.c.bf16 %v1203, %v1203
      %v1236 = vpack.c.bf16 %v1204, %v1204
      %v1237 = vpack.c.bf16 %v1205, %v1205
      %v1238 = vpack.c.bf16 %v1206, %v1206
      %v1239 = vpack.c.bf16 %v1207, %v1207
      %v1240 = vpack.c.bf16 %v1208, %v1208
      %v1241 = vpack.c.bf16 %v1209, %v1209
      %v1242 = vpack.c.bf16 %v1210, %v1210
      %v1243 = vpack.c.bf16 %v1211, %v1211
      %v1244 = vpack.c.bf16 %v1212, %v1212
      %v1245 = vpack.c.bf16 %v1213, %v1213
      %v1246 = vpack.c.bf16 %v1214, %v1214
      %v1247 = vpack.c.bf16 %v1215, %v1215
      %v1248 = vpack.c.bf16 %v1216, %v1216
      %v1249 = vpack.c.bf16 %v1217, %v1217
      %v1250 = vpack.c.bf16 %v1218, %v1218
      %v1251 = vpack.c.bf16 %v1219, %v1219
      %v1252 = vpack.c.bf16 %v1220, %v1220
      %v1253 = vlaneseq
      %v1254 = vshrl.u32 %v1253, 7
      %v1255 = vadd.s32 %v1254, 8
      %v1256 = vadd.s32 %v1254, 16
      %v1257 = vadd.s32 %v1254, 24
      %v1258 = vadd.s32 %v1254, 32
      %v1259 = vadd.s32 %v1254, 40
      %v1260 = vadd.s32 %v1254, 48
      %v1261 = vadd.s32 %v1254, 56
      %v1262 = vadd.s32 %v1254, 64
      %v1263 = vadd.s32 %v1254, 72
      %v1264 = vadd.s32 %v1254, 80
      %v1265 = vadd.s32 %v1254, 88
      %v1266 = vadd.s32 %v1254, 96
      %v1267 = vadd.s32 %v1254, 104
      %v1268 = vadd.s32 %v1254, 112
      %v1269 = vadd.s32 %v1254, 120
      %v1270 = vadd.s32 %v1254, 128
      %v1271 = vadd.s32 %v1254, 136
      %v1272 = vadd.s32 %v1254, 144
      %v1273 = vadd.s32 %v1254, 152
      %v1274 = vadd.s32 %v1254, 160
      %v1275 = vadd.s32 %v1254, 168
      %v1276 = vadd.s32 %v1254, 176
      %v1277 = vadd.s32 %v1254, 184
      %v1278 = vadd.s32 %v1254, 192
      %v1279 = vadd.s32 %v1254, 200
      %v1280 = vadd.s32 %v1254, 208
      %v1281 = vadd.s32 %v1254, 216
      %v1282 = vadd.s32 %v1254, 224
      %v1283 = vadd.s32 %v1254, 232
      %v1284 = vadd.s32 %v1254, 240
      %v1285 = vadd.s32 %v1254, 248
      %vm1286 = vcmp.lt.s32.totalorder %v1254, 0
      %v1287 = vsub.s32 0, %v1254
      %v1288 = vsel %vm1286, %v1287, %v1254
      %v1289 = vshrl.u32 %v1288, 4
      %v1290 = vand.u32 %v1288, 15
      %v1291 = vsub.s32 0, %v1290
      %v1292 = vsel %vm1286, %v1291, %v1290
      %vm1293 = vcmp.lt.s32.totalorder %v1255, 0
      %v1294 = vsub.s32 0, %v1255
      %v1295 = vsel %vm1293, %v1294, %v1255
      %v1296 = vshrl.u32 %v1295, 4
      %v1297 = vand.u32 %v1295, 15
      %v1298 = vsub.s32 0, %v1297
      %v1299 = vsel %vm1293, %v1298, %v1297
      %vm1300 = vcmp.lt.s32.totalorder %v1256, 0
      %v1301 = vsub.s32 0, %v1256
      %v1302 = vsel %vm1300, %v1301, %v1256
      %v1303 = vshrl.u32 %v1302, 4
      %v1304 = vand.u32 %v1302, 15
      %v1305 = vsub.s32 0, %v1304
      %v1306 = vsel %vm1300, %v1305, %v1304
      %vm1307 = vcmp.lt.s32.totalorder %v1257, 0
      %v1308 = vsub.s32 0, %v1257
      %v1309 = vsel %vm1307, %v1308, %v1257
      %v1310 = vshrl.u32 %v1309, 4
      %v1311 = vand.u32 %v1309, 15
      %v1312 = vsub.s32 0, %v1311
      %v1313 = vsel %vm1307, %v1312, %v1311
      %vm1314 = vcmp.lt.s32.totalorder %v1258, 0
      %v1315 = vsub.s32 0, %v1258
      %v1316 = vsel %vm1314, %v1315, %v1258
      %v1317 = vshrl.u32 %v1316, 4
      %v1318 = vand.u32 %v1316, 15
      %v1319 = vsub.s32 0, %v1318
      %v1320 = vsel %vm1314, %v1319, %v1318
      %vm1321 = vcmp.lt.s32.totalorder %v1259, 0
      %v1322 = vsub.s32 0, %v1259
      %v1323 = vsel %vm1321, %v1322, %v1259
      %v1324 = vshrl.u32 %v1323, 4
      %v1325 = vand.u32 %v1323, 15
      %v1326 = vsub.s32 0, %v1325
      %v1327 = vsel %vm1321, %v1326, %v1325
      %vm1328 = vcmp.lt.s32.totalorder %v1260, 0
      %v1329 = vsub.s32 0, %v1260
      %v1330 = vsel %vm1328, %v1329, %v1260
      %v1331 = vshrl.u32 %v1330, 4
      %v1332 = vand.u32 %v1330, 15
      %v1333 = vsub.s32 0, %v1332
      %v1334 = vsel %vm1328, %v1333, %v1332
      %vm1335 = vcmp.lt.s32.totalorder %v1261, 0
      %v1336 = vsub.s32 0, %v1261
      %v1337 = vsel %vm1335, %v1336, %v1261
      %v1338 = vshrl.u32 %v1337, 4
      %v1339 = vand.u32 %v1337, 15
      %v1340 = vsub.s32 0, %v1339
      %v1341 = vsel %vm1335, %v1340, %v1339
      %vm1342 = vcmp.lt.s32.totalorder %v1262, 0
      %v1343 = vsub.s32 0, %v1262
      %v1344 = vsel %vm1342, %v1343, %v1262
      %v1345 = vshrl.u32 %v1344, 4
      %v1346 = vand.u32 %v1344, 15
      %v1347 = vsub.s32 0, %v1346
      %v1348 = vsel %vm1342, %v1347, %v1346
      %vm1349 = vcmp.lt.s32.totalorder %v1263, 0
      %v1350 = vsub.s32 0, %v1263
      %v1351 = vsel %vm1349, %v1350, %v1263
      %v1352 = vshrl.u32 %v1351, 4
      %v1353 = vand.u32 %v1351, 15
      %v1354 = vsub.s32 0, %v1353
      %v1355 = vsel %vm1349, %v1354, %v1353
      %vm1356 = vcmp.lt.s32.totalorder %v1264, 0
      %v1357 = vsub.s32 0, %v1264
      %v1358 = vsel %vm1356, %v1357, %v1264
      %v1359 = vshrl.u32 %v1358, 4
      %v1360 = vand.u32 %v1358, 15
      %v1361 = vsub.s32 0, %v1360
      %v1362 = vsel %vm1356, %v1361, %v1360
      %vm1363 = vcmp.lt.s32.totalorder %v1265, 0
      %v1364 = vsub.s32 0, %v1265
      %v1365 = vsel %vm1363, %v1364, %v1265
      %v1366 = vshrl.u32 %v1365, 4
      %v1367 = vand.u32 %v1365, 15
      %v1368 = vsub.s32 0, %v1367
      %v1369 = vsel %vm1363, %v1368, %v1367
      %vm1370 = vcmp.lt.s32.totalorder %v1266, 0
      %v1371 = vsub.s32 0, %v1266
      %v1372 = vsel %vm1370, %v1371, %v1266
      %v1373 = vshrl.u32 %v1372, 4
      %v1374 = vand.u32 %v1372, 15
      %v1375 = vsub.s32 0, %v1374
      %v1376 = vsel %vm1370, %v1375, %v1374
      %vm1377 = vcmp.lt.s32.totalorder %v1267, 0
      %v1378 = vsub.s32 0, %v1267
      %v1379 = vsel %vm1377, %v1378, %v1267
      %v1380 = vshrl.u32 %v1379, 4
      %v1381 = vand.u32 %v1379, 15
      %v1382 = vsub.s32 0, %v1381
      %v1383 = vsel %vm1377, %v1382, %v1381
      %vm1384 = vcmp.lt.s32.totalorder %v1268, 0
      %v1385 = vsub.s32 0, %v1268
      %v1386 = vsel %vm1384, %v1385, %v1268
      %v1387 = vshrl.u32 %v1386, 4
      %v1388 = vand.u32 %v1386, 15
      %v1389 = vsub.s32 0, %v1388
      %v1390 = vsel %vm1384, %v1389, %v1388
      %vm1391 = vcmp.lt.s32.totalorder %v1269, 0
      %v1392 = vsub.s32 0, %v1269
      %v1393 = vsel %vm1391, %v1392, %v1269
      %v1394 = vshrl.u32 %v1393, 4
      %v1395 = vand.u32 %v1393, 15
      %v1396 = vsub.s32 0, %v1395
      %v1397 = vsel %vm1391, %v1396, %v1395
      %vm1398 = vcmp.lt.s32.totalorder %v1270, 0
      %v1399 = vsub.s32 0, %v1270
      %v1400 = vsel %vm1398, %v1399, %v1270
      %v1401 = vshrl.u32 %v1400, 4
      %v1402 = vand.u32 %v1400, 15
      %v1403 = vsub.s32 0, %v1402
      %v1404 = vsel %vm1398, %v1403, %v1402
      %vm1405 = vcmp.lt.s32.totalorder %v1271, 0
      %v1406 = vsub.s32 0, %v1271
      %v1407 = vsel %vm1405, %v1406, %v1271
      %v1408 = vshrl.u32 %v1407, 4
      %v1409 = vand.u32 %v1407, 15
      %v1410 = vsub.s32 0, %v1409
      %v1411 = vsel %vm1405, %v1410, %v1409
      %vm1412 = vcmp.lt.s32.totalorder %v1272, 0
      %v1413 = vsub.s32 0, %v1272
      %v1414 = vsel %vm1412, %v1413, %v1272
      %v1415 = vshrl.u32 %v1414, 4
      %v1416 = vand.u32 %v1414, 15
      %v1417 = vsub.s32 0, %v1416
      %v1418 = vsel %vm1412, %v1417, %v1416
      %vm1419 = vcmp.lt.s32.totalorder %v1273, 0
      %v1420 = vsub.s32 0, %v1273
      %v1421 = vsel %vm1419, %v1420, %v1273
      %v1422 = vshrl.u32 %v1421, 4
      %v1423 = vand.u32 %v1421, 15
      %v1424 = vsub.s32 0, %v1423
      %v1425 = vsel %vm1419, %v1424, %v1423
      %vm1426 = vcmp.lt.s32.totalorder %v1274, 0
      %v1427 = vsub.s32 0, %v1274
      %v1428 = vsel %vm1426, %v1427, %v1274
      %v1429 = vshrl.u32 %v1428, 4
      %v1430 = vand.u32 %v1428, 15
      %v1431 = vsub.s32 0, %v1430
      %v1432 = vsel %vm1426, %v1431, %v1430
      %vm1433 = vcmp.lt.s32.totalorder %v1275, 0
      %v1434 = vsub.s32 0, %v1275
      %v1435 = vsel %vm1433, %v1434, %v1275
      %v1436 = vshrl.u32 %v1435, 4
      %v1437 = vand.u32 %v1435, 15
      %v1438 = vsub.s32 0, %v1437
      %v1439 = vsel %vm1433, %v1438, %v1437
      %vm1440 = vcmp.lt.s32.totalorder %v1276, 0
      %v1441 = vsub.s32 0, %v1276
      %v1442 = vsel %vm1440, %v1441, %v1276
      %v1443 = vshrl.u32 %v1442, 4
      %v1444 = vand.u32 %v1442, 15
      %v1445 = vsub.s32 0, %v1444
      %v1446 = vsel %vm1440, %v1445, %v1444
      %vm1447 = vcmp.lt.s32.totalorder %v1277, 0
      %v1448 = vsub.s32 0, %v1277
      %v1449 = vsel %vm1447, %v1448, %v1277
      %v1450 = vshrl.u32 %v1449, 4
      %v1451 = vand.u32 %v1449, 15
      %v1452 = vsub.s32 0, %v1451
      %v1453 = vsel %vm1447, %v1452, %v1451
      %vm1454 = vcmp.lt.s32.totalorder %v1278, 0
      %v1455 = vsub.s32 0, %v1278
      %v1456 = vsel %vm1454, %v1455, %v1278
      %v1457 = vshrl.u32 %v1456, 4
      %v1458 = vand.u32 %v1456, 15
      %v1459 = vsub.s32 0, %v1458
      %v1460 = vsel %vm1454, %v1459, %v1458
      %vm1461 = vcmp.lt.s32.totalorder %v1279, 0
      %v1462 = vsub.s32 0, %v1279
      %v1463 = vsel %vm1461, %v1462, %v1279
      %v1464 = vshrl.u32 %v1463, 4
      %v1465 = vand.u32 %v1463, 15
      %v1466 = vsub.s32 0, %v1465
      %v1467 = vsel %vm1461, %v1466, %v1465
      %vm1468 = vcmp.lt.s32.totalorder %v1280, 0
      %v1469 = vsub.s32 0, %v1280
      %v1470 = vsel %vm1468, %v1469, %v1280
      %v1471 = vshrl.u32 %v1470, 4
      %v1472 = vand.u32 %v1470, 15
      %v1473 = vsub.s32 0, %v1472
      %v1474 = vsel %vm1468, %v1473, %v1472
      %vm1475 = vcmp.lt.s32.totalorder %v1281, 0
      %v1476 = vsub.s32 0, %v1281
      %v1477 = vsel %vm1475, %v1476, %v1281
      %v1478 = vshrl.u32 %v1477, 4
      %v1479 = vand.u32 %v1477, 15
      %v1480 = vsub.s32 0, %v1479
      %v1481 = vsel %vm1475, %v1480, %v1479
      %vm1482 = vcmp.lt.s32.totalorder %v1282, 0
      %v1483 = vsub.s32 0, %v1282
      %v1484 = vsel %vm1482, %v1483, %v1282
      %v1485 = vshrl.u32 %v1484, 4
      %v1486 = vand.u32 %v1484, 15
      %v1487 = vsub.s32 0, %v1486
      %v1488 = vsel %vm1482, %v1487, %v1486
      %vm1489 = vcmp.lt.s32.totalorder %v1283, 0
      %v1490 = vsub.s32 0, %v1283
      %v1491 = vsel %vm1489, %v1490, %v1283
      %v1492 = vshrl.u32 %v1491, 4
      %v1493 = vand.u32 %v1491, 15
      %v1494 = vsub.s32 0, %v1493
      %v1495 = vsel %vm1489, %v1494, %v1493
      %vm1496 = vcmp.lt.s32.totalorder %v1284, 0
      %v1497 = vsub.s32 0, %v1284
      %v1498 = vsel %vm1496, %v1497, %v1284
      %v1499 = vshrl.u32 %v1498, 4
      %v1500 = vand.u32 %v1498, 15
      %v1501 = vsub.s32 0, %v1500
      %v1502 = vsel %vm1496, %v1501, %v1500
      %vm1503 = vcmp.lt.s32.totalorder %v1285, 0
      %v1504 = vsub.s32 0, %v1285
      %v1505 = vsel %vm1503, %v1504, %v1285
      %v1506 = vshrl.u32 %v1505, 4
      %v1507 = vand.u32 %v1505, 15
      %v1508 = vsub.s32 0, %v1507
      %v1509 = vsel %vm1503, %v1508, %v1507
      %vm1510 = vcmp.ne.s32.totalorder %v1292, 0
      %vm1511 = vcmp.ne.s32.totalorder %v1299, 0
      %vm1512 = vcmp.ne.s32.totalorder %v1306, 0
      %vm1513 = vcmp.ne.s32.totalorder %v1313, 0
      %vm1514 = vcmp.ne.s32.totalorder %v1320, 0
      %vm1515 = vcmp.ne.s32.totalorder %v1327, 0
      %vm1516 = vcmp.ne.s32.totalorder %v1334, 0
      %vm1517 = vcmp.ne.s32.totalorder %v1341, 0
      %vm1518 = vcmp.ne.s32.totalorder %v1348, 0
      %vm1519 = vcmp.ne.s32.totalorder %v1355, 0
      %vm1520 = vcmp.ne.s32.totalorder %v1362, 0
      %vm1521 = vcmp.ne.s32.totalorder %v1369, 0
      %vm1522 = vcmp.ne.s32.totalorder %v1376, 0
      %vm1523 = vcmp.ne.s32.totalorder %v1383, 0
      %vm1524 = vcmp.ne.s32.totalorder %v1390, 0
      %vm1525 = vcmp.ne.s32.totalorder %v1397, 0
      %vm1526 = vcmp.ne.s32.totalorder %v1404, 0
      %vm1527 = vcmp.ne.s32.totalorder %v1411, 0
      %vm1528 = vcmp.ne.s32.totalorder %v1418, 0
      %vm1529 = vcmp.ne.s32.totalorder %v1425, 0
      %vm1530 = vcmp.ne.s32.totalorder %v1432, 0
      %vm1531 = vcmp.ne.s32.totalorder %v1439, 0
      %vm1532 = vcmp.ne.s32.totalorder %v1446, 0
      %vm1533 = vcmp.ne.s32.totalorder %v1453, 0
      %vm1534 = vcmp.ne.s32.totalorder %v1460, 0
      %vm1535 = vcmp.ne.s32.totalorder %v1467, 0
      %vm1536 = vcmp.ne.s32.totalorder %v1474, 0
      %vm1537 = vcmp.ne.s32.totalorder %v1481, 0
      %vm1538 = vcmp.ne.s32.totalorder %v1488, 0
      %vm1539 = vcmp.ne.s32.totalorder %v1495, 0
      %vm1540 = vcmp.ne.s32.totalorder %v1502, 0
      %vm1541 = vcmp.ne.s32.totalorder %v1509, 0
      %vm1542 = vcmp.lt.s32.totalorder %v1292, 0
      %vm1543 = vcmp.lt.s32.totalorder %v1299, 0
      %vm1544 = vcmp.lt.s32.totalorder %v1306, 0
      %vm1545 = vcmp.lt.s32.totalorder %v1313, 0
      %vm1546 = vcmp.lt.s32.totalorder %v1320, 0
      %vm1547 = vcmp.lt.s32.totalorder %v1327, 0
      %vm1548 = vcmp.lt.s32.totalorder %v1334, 0
      %vm1549 = vcmp.lt.s32.totalorder %v1341, 0
      %vm1550 = vcmp.lt.s32.totalorder %v1348, 0
      %vm1551 = vcmp.lt.s32.totalorder %v1355, 0
      %vm1552 = vcmp.lt.s32.totalorder %v1362, 0
      %vm1553 = vcmp.lt.s32.totalorder %v1369, 0
      %vm1554 = vcmp.lt.s32.totalorder %v1376, 0
      %vm1555 = vcmp.lt.s32.totalorder %v1383, 0
      %vm1556 = vcmp.lt.s32.totalorder %v1390, 0
      %vm1557 = vcmp.lt.s32.totalorder %v1397, 0
      %vm1558 = vcmp.lt.s32.totalorder %v1404, 0
      %vm1559 = vcmp.lt.s32.totalorder %v1411, 0
      %vm1560 = vcmp.lt.s32.totalorder %v1418, 0
      %vm1561 = vcmp.lt.s32.totalorder %v1425, 0
      %vm1562 = vcmp.lt.s32.totalorder %v1432, 0
      %vm1563 = vcmp.lt.s32.totalorder %v1439, 0
      %vm1564 = vcmp.lt.s32.totalorder %v1446, 0
      %vm1565 = vcmp.lt.s32.totalorder %v1453, 0
      %vm1566 = vcmp.lt.s32.totalorder %v1460, 0
      %vm1567 = vcmp.lt.s32.totalorder %v1467, 0
      %vm1568 = vcmp.lt.s32.totalorder %v1474, 0
      %vm1569 = vcmp.lt.s32.totalorder %v1481, 0
      %vm1570 = vcmp.lt.s32.totalorder %v1488, 0
      %vm1571 = vcmp.lt.s32.totalorder %v1495, 0
      %vm1572 = vcmp.lt.s32.totalorder %v1502, 0
      %vm1573 = vcmp.lt.s32.totalorder %v1509, 0
      %vm1574 = vmand %vm1542, %vm1510
      %vm1575 = vmand %vm1543, %vm1511
      %vm1576 = vmand %vm1544, %vm1512
      %vm1577 = vmand %vm1545, %vm1513
      %vm1578 = vmand %vm1546, %vm1514
      %vm1579 = vmand %vm1547, %vm1515
      %vm1580 = vmand %vm1548, %vm1516
      %vm1581 = vmand %vm1549, %vm1517
      %vm1582 = vmand %vm1550, %vm1518
      %vm1583 = vmand %vm1551, %vm1519
      %vm1584 = vmand %vm1552, %vm1520
      %vm1585 = vmand %vm1553, %vm1521
      %vm1586 = vmand %vm1554, %vm1522
      %vm1587 = vmand %vm1555, %vm1523
      %vm1588 = vmand %vm1556, %vm1524
      %vm1589 = vmand %vm1557, %vm1525
      %vm1590 = vmand %vm1558, %vm1526
      %vm1591 = vmand %vm1559, %vm1527
      %vm1592 = vmand %vm1560, %vm1528
      %vm1593 = vmand %vm1561, %vm1529
      %vm1594 = vmand %vm1562, %vm1530
      %vm1595 = vmand %vm1563, %vm1531
      %vm1596 = vmand %vm1564, %vm1532
      %vm1597 = vmand %vm1565, %vm1533
      %vm1598 = vmand %vm1566, %vm1534
      %vm1599 = vmand %vm1567, %vm1535
      %vm1600 = vmand %vm1568, %vm1536
      %vm1601 = vmand %vm1569, %vm1537
      %vm1602 = vmand %vm1570, %vm1538
      %vm1603 = vmand %vm1571, %vm1539
      %vm1604 = vmand %vm1572, %vm1540
      %vm1605 = vmand %vm1573, %vm1541
      %v1606 = vadd.s32 %v1292, 16
      %v1607 = vadd.s32 %v1299, 16
      %v1608 = vadd.s32 %v1306, 16
      %v1609 = vadd.s32 %v1313, 16
      %v1610 = vadd.s32 %v1320, 16
      %v1611 = vadd.s32 %v1327, 16
      %v1612 = vadd.s32 %v1334, 16
      %v1613 = vadd.s32 %v1341, 16
      %v1614 = vadd.s32 %v1348, 16
      %v1615 = vadd.s32 %v1355, 16
      %v1616 = vadd.s32 %v1362, 16
      %v1617 = vadd.s32 %v1369, 16
      %v1618 = vadd.s32 %v1376, 16
      %v1619 = vadd.s32 %v1383, 16
      %v1620 = vadd.s32 %v1390, 16
      %v1621 = vadd.s32 %v1397, 16
      %v1622 = vadd.s32 %v1404, 16
      %v1623 = vadd.s32 %v1411, 16
      %v1624 = vadd.s32 %v1418, 16
      %v1625 = vadd.s32 %v1425, 16
      %v1626 = vadd.s32 %v1432, 16
      %v1627 = vadd.s32 %v1439, 16
      %v1628 = vadd.s32 %v1446, 16
      %v1629 = vadd.s32 %v1453, 16
      %v1630 = vadd.s32 %v1460, 16
      %v1631 = vadd.s32 %v1467, 16
      %v1632 = vadd.s32 %v1474, 16
      %v1633 = vadd.s32 %v1481, 16
      %v1634 = vadd.s32 %v1488, 16
      %v1635 = vadd.s32 %v1495, 16
      %v1636 = vadd.s32 %v1502, 16
      %v1637 = vadd.s32 %v1509, 16
      %v1638 = vsel %vm1574, %v1606, %v1292
      %v1639 = vsel %vm1575, %v1607, %v1299
      %v1640 = vsel %vm1576, %v1608, %v1306
      %v1641 = vsel %vm1577, %v1609, %v1313
      %v1642 = vsel %vm1578, %v1610, %v1320
      %v1643 = vsel %vm1579, %v1611, %v1327
      %v1644 = vsel %vm1580, %v1612, %v1334
      %v1645 = vsel %vm1581, %v1613, %v1341
      %v1646 = vsel %vm1582, %v1614, %v1348
      %v1647 = vsel %vm1583, %v1615, %v1355
      %v1648 = vsel %vm1584, %v1616, %v1362
      %v1649 = vsel %vm1585, %v1617, %v1369
      %v1650 = vsel %vm1586, %v1618, %v1376
      %v1651 = vsel %vm1587, %v1619, %v1383
      %v1652 = vsel %vm1588, %v1620, %v1390
      %v1653 = vsel %vm1589, %v1621, %v1397
      %v1654 = vsel %vm1590, %v1622, %v1404
      %v1655 = vsel %vm1591, %v1623, %v1411
      %v1656 = vsel %vm1592, %v1624, %v1418
      %v1657 = vsel %vm1593, %v1625, %v1425
      %v1658 = vsel %vm1594, %v1626, %v1432
      %v1659 = vsel %vm1595, %v1627, %v1439
      %v1660 = vsel %vm1596, %v1628, %v1446
      %v1661 = vsel %vm1597, %v1629, %v1453
      %v1662 = vsel %vm1598, %v1630, %v1460
      %v1663 = vsel %vm1599, %v1631, %v1467
      %v1664 = vsel %vm1600, %v1632, %v1474
      %v1665 = vsel %vm1601, %v1633, %v1481
      %v1666 = vsel %vm1602, %v1634, %v1488
      %v1667 = vsel %vm1603, %v1635, %v1495
      %v1668 = vsel %vm1604, %v1636, %v1502
      %v1669 = vsel %vm1605, %v1637, %v1509
      %vm1670 = vcmp.ge.s32.totalorder %v1638, 1
      %vm1671 = vcmp.ge.s32.totalorder %v1639, 1
      %vm1672 = vcmp.ge.s32.totalorder %v1640, 1
      %vm1673 = vcmp.ge.s32.totalorder %v1641, 1
      %vm1674 = vcmp.ge.s32.totalorder %v1642, 1
      %vm1675 = vcmp.ge.s32.totalorder %v1643, 1
      %vm1676 = vcmp.ge.s32.totalorder %v1644, 1
      %vm1677 = vcmp.ge.s32.totalorder %v1645, 1
      %vm1678 = vcmp.ge.s32.totalorder %v1646, 1
      %vm1679 = vcmp.ge.s32.totalorder %v1647, 1
      %vm1680 = vcmp.ge.s32.totalorder %v1648, 1
      %vm1681 = vcmp.ge.s32.totalorder %v1649, 1
      %vm1682 = vcmp.ge.s32.totalorder %v1650, 1
      %vm1683 = vcmp.ge.s32.totalorder %v1651, 1
      %vm1684 = vcmp.ge.s32.totalorder %v1652, 1
      %vm1685 = vcmp.ge.s32.totalorder %v1653, 1
      %vm1686 = vcmp.ge.s32.totalorder %v1654, 1
      %vm1687 = vcmp.ge.s32.totalorder %v1655, 1
      %vm1688 = vcmp.ge.s32.totalorder %v1656, 1
      %vm1689 = vcmp.ge.s32.totalorder %v1657, 1
      %vm1690 = vcmp.ge.s32.totalorder %v1658, 1
      %vm1691 = vcmp.ge.s32.totalorder %v1659, 1
      %vm1692 = vcmp.ge.s32.totalorder %v1660, 1
      %vm1693 = vcmp.ge.s32.totalorder %v1661, 1
      %vm1694 = vcmp.ge.s32.totalorder %v1662, 1
      %vm1695 = vcmp.ge.s32.totalorder %v1663, 1
      %vm1696 = vcmp.ge.s32.totalorder %v1664, 1
      %vm1697 = vcmp.ge.s32.totalorder %v1665, 1
      %vm1698 = vcmp.ge.s32.totalorder %v1666, 1
      %vm1699 = vcmp.ge.s32.totalorder %v1667, 1
      %vm1700 = vcmp.ge.s32.totalorder %v1668, 1
      %vm1701 = vcmp.ge.s32.totalorder %v1669, 1
      %v1702 = vsel %vm1670, 1, 0
      %v1703 = vsel %vm1671, 1, 0
      %v1704 = vsel %vm1672, 1, 0
      %v1705 = vsel %vm1673, 1, 0
      %v1706 = vsel %vm1674, 1, 0
      %v1707 = vsel %vm1675, 1, 0
      %v1708 = vsel %vm1676, 1, 0
      %v1709 = vsel %vm1677, 1, 0
      %v1710 = vsel %vm1678, 1, 0
      %v1711 = vsel %vm1679, 1, 0
      %v1712 = vsel %vm1680, 1, 0
      %v1713 = vsel %vm1681, 1, 0
      %v1714 = vsel %vm1682, 1, 0
      %v1715 = vsel %vm1683, 1, 0
      %v1716 = vsel %vm1684, 1, 0
      %v1717 = vsel %vm1685, 1, 0
      %v1718 = vsel %vm1686, 1, 0
      %v1719 = vsel %vm1687, 1, 0
      %v1720 = vsel %vm1688, 1, 0
      %v1721 = vsel %vm1689, 1, 0
      %v1722 = vsel %vm1690, 1, 0
      %v1723 = vsel %vm1691, 1, 0
      %v1724 = vsel %vm1692, 1, 0
      %v1725 = vsel %vm1693, 1, 0
      %v1726 = vsel %vm1694, 1, 0
      %v1727 = vsel %vm1695, 1, 0
      %v1728 = vsel %vm1696, 1, 0
      %v1729 = vsel %vm1697, 1, 0
      %v1730 = vsel %vm1698, 1, 0
      %v1731 = vsel %vm1699, 1, 0
      %v1732 = vsel %vm1700, 1, 0
      %v1733 = vsel %vm1701, 1, 0
      %v1734 = vcvt.s32.f32 %v1702
      %v1735 = vcvt.s32.f32 %v1703
      %v1736 = vcvt.s32.f32 %v1704
      %v1737 = vcvt.s32.f32 %v1705
      %v1738 = vcvt.s32.f32 %v1706
      %v1739 = vcvt.s32.f32 %v1707
      %v1740 = vcvt.s32.f32 %v1708
      %v1741 = vcvt.s32.f32 %v1709
      %v1742 = vcvt.s32.f32 %v1710
      %v1743 = vcvt.s32.f32 %v1711
      %v1744 = vcvt.s32.f32 %v1712
      %v1745 = vcvt.s32.f32 %v1713
      %v1746 = vcvt.s32.f32 %v1714
      %v1747 = vcvt.s32.f32 %v1715
      %v1748 = vcvt.s32.f32 %v1716
      %v1749 = vcvt.s32.f32 %v1717
      %v1750 = vcvt.s32.f32 %v1718
      %v1751 = vcvt.s32.f32 %v1719
      %v1752 = vcvt.s32.f32 %v1720
      %v1753 = vcvt.s32.f32 %v1721
      %v1754 = vcvt.s32.f32 %v1722
      %v1755 = vcvt.s32.f32 %v1723
      %v1756 = vcvt.s32.f32 %v1724
      %v1757 = vcvt.s32.f32 %v1725
      %v1758 = vcvt.s32.f32 %v1726
      %v1759 = vcvt.s32.f32 %v1727
      %v1760 = vcvt.s32.f32 %v1728
      %v1761 = vcvt.s32.f32 %v1729
      %v1762 = vcvt.s32.f32 %v1730
      %v1763 = vcvt.s32.f32 %v1731
      %v1764 = vcvt.s32.f32 %v1732
      %v1765 = vcvt.s32.f32 %v1733
      %v1766 = vpack.c.bf16 %v1734, %v1734
      %v1767 = vpack.c.bf16 %v1735, %v1735
      %v1768 = vpack.c.bf16 %v1736, %v1736
      %v1769 = vpack.c.bf16 %v1737, %v1737
      %v1770 = vpack.c.bf16 %v1738, %v1738
      %v1771 = vpack.c.bf16 %v1739, %v1739
      %v1772 = vpack.c.bf16 %v1740, %v1740
      %v1773 = vpack.c.bf16 %v1741, %v1741
      %v1774 = vpack.c.bf16 %v1742, %v1742
      %v1775 = vpack.c.bf16 %v1743, %v1743
      %v1776 = vpack.c.bf16 %v1744, %v1744
      %v1777 = vpack.c.bf16 %v1745, %v1745
      %v1778 = vpack.c.bf16 %v1746, %v1746
      %v1779 = vpack.c.bf16 %v1747, %v1747
      %v1780 = vpack.c.bf16 %v1748, %v1748
      %v1781 = vpack.c.bf16 %v1749, %v1749
      %v1782 = vpack.c.bf16 %v1750, %v1750
      %v1783 = vpack.c.bf16 %v1751, %v1751
      %v1784 = vpack.c.bf16 %v1752, %v1752
      %v1785 = vpack.c.bf16 %v1753, %v1753
      %v1786 = vpack.c.bf16 %v1754, %v1754
      %v1787 = vpack.c.bf16 %v1755, %v1755
      %v1788 = vpack.c.bf16 %v1756, %v1756
      %v1789 = vpack.c.bf16 %v1757, %v1757
      %v1790 = vpack.c.bf16 %v1758, %v1758
      %v1791 = vpack.c.bf16 %v1759, %v1759
      %v1792 = vpack.c.bf16 %v1760, %v1760
      %v1793 = vpack.c.bf16 %v1761, %v1761
      %v1794 = vpack.c.bf16 %v1762, %v1762
      %v1795 = vpack.c.bf16 %v1763, %v1763
      %v1796 = vpack.c.bf16 %v1764, %v1764
      %v1797 = vpack.c.bf16 %v1765, %v1765
      %vm1798 = vcmp.lt.s32.totalorder %v1638, 15
      %vm1799 = vcmp.lt.s32.totalorder %v1639, 15
      %vm1800 = vcmp.lt.s32.totalorder %v1640, 15
      %vm1801 = vcmp.lt.s32.totalorder %v1641, 15
      %vm1802 = vcmp.lt.s32.totalorder %v1642, 15
      %vm1803 = vcmp.lt.s32.totalorder %v1643, 15
      %vm1804 = vcmp.lt.s32.totalorder %v1644, 15
      %vm1805 = vcmp.lt.s32.totalorder %v1645, 15
      %vm1806 = vcmp.lt.s32.totalorder %v1646, 15
      %vm1807 = vcmp.lt.s32.totalorder %v1647, 15
      %vm1808 = vcmp.lt.s32.totalorder %v1648, 15
      %vm1809 = vcmp.lt.s32.totalorder %v1649, 15
      %vm1810 = vcmp.lt.s32.totalorder %v1650, 15
      %vm1811 = vcmp.lt.s32.totalorder %v1651, 15
      %vm1812 = vcmp.lt.s32.totalorder %v1652, 15
      %vm1813 = vcmp.lt.s32.totalorder %v1653, 15
      %vm1814 = vcmp.lt.s32.totalorder %v1654, 15
      %vm1815 = vcmp.lt.s32.totalorder %v1655, 15
      %vm1816 = vcmp.lt.s32.totalorder %v1656, 15
      %vm1817 = vcmp.lt.s32.totalorder %v1657, 15
      %vm1818 = vcmp.lt.s32.totalorder %v1658, 15
      %vm1819 = vcmp.lt.s32.totalorder %v1659, 15
      %vm1820 = vcmp.lt.s32.totalorder %v1660, 15
      %vm1821 = vcmp.lt.s32.totalorder %v1661, 15
      %vm1822 = vcmp.lt.s32.totalorder %v1662, 15
      %vm1823 = vcmp.lt.s32.totalorder %v1663, 15
      %vm1824 = vcmp.lt.s32.totalorder %v1664, 15
      %vm1825 = vcmp.lt.s32.totalorder %v1665, 15
      %vm1826 = vcmp.lt.s32.totalorder %v1666, 15
      %vm1827 = vcmp.lt.s32.totalorder %v1667, 15
      %vm1828 = vcmp.lt.s32.totalorder %v1668, 15
      %vm1829 = vcmp.lt.s32.totalorder %v1669, 15
      %v1830 = vsel %vm1798, 1, 0
      %v1831 = vsel %vm1799, 1, 0
      %v1832 = vsel %vm1800, 1, 0
      %v1833 = vsel %vm1801, 1, 0
      %v1834 = vsel %vm1802, 1, 0
      %v1835 = vsel %vm1803, 1, 0
      %v1836 = vsel %vm1804, 1, 0
      %v1837 = vsel %vm1805, 1, 0
      %v1838 = vsel %vm1806, 1, 0
      %v1839 = vsel %vm1807, 1, 0
      %v1840 = vsel %vm1808, 1, 0
      %v1841 = vsel %vm1809, 1, 0
      %v1842 = vsel %vm1810, 1, 0
      %v1843 = vsel %vm1811, 1, 0
      %v1844 = vsel %vm1812, 1, 0
      %v1845 = vsel %vm1813, 1, 0
      %v1846 = vsel %vm1814, 1, 0
      %v1847 = vsel %vm1815, 1, 0
      %v1848 = vsel %vm1816, 1, 0
      %v1849 = vsel %vm1817, 1, 0
      %v1850 = vsel %vm1818, 1, 0
      %v1851 = vsel %vm1819, 1, 0
      %v1852 = vsel %vm1820, 1, 0
      %v1853 = vsel %vm1821, 1, 0
      %v1854 = vsel %vm1822, 1, 0
      %v1855 = vsel %vm1823, 1, 0
      %v1856 = vsel %vm1824, 1, 0
      %v1857 = vsel %vm1825, 1, 0
      %v1858 = vsel %vm1826, 1, 0
      %v1859 = vsel %vm1827, 1, 0
      %v1860 = vsel %vm1828, 1, 0
      %v1861 = vsel %vm1829, 1, 0
      %v1862 = vcvt.s32.f32 %v1830
      %v1863 = vcvt.s32.f32 %v1831
      %v1864 = vcvt.s32.f32 %v1832
      %v1865 = vcvt.s32.f32 %v1833
      %v1866 = vcvt.s32.f32 %v1834
      %v1867 = vcvt.s32.f32 %v1835
      %v1868 = vcvt.s32.f32 %v1836
      %v1869 = vcvt.s32.f32 %v1837
      %v1870 = vcvt.s32.f32 %v1838
      %v1871 = vcvt.s32.f32 %v1839
      %v1872 = vcvt.s32.f32 %v1840
      %v1873 = vcvt.s32.f32 %v1841
      %v1874 = vcvt.s32.f32 %v1842
      %v1875 = vcvt.s32.f32 %v1843
      %v1876 = vcvt.s32.f32 %v1844
      %v1877 = vcvt.s32.f32 %v1845
      %v1878 = vcvt.s32.f32 %v1846
      %v1879 = vcvt.s32.f32 %v1847
      %v1880 = vcvt.s32.f32 %v1848
      %v1881 = vcvt.s32.f32 %v1849
      %v1882 = vcvt.s32.f32 %v1850
      %v1883 = vcvt.s32.f32 %v1851
      %v1884 = vcvt.s32.f32 %v1852
      %v1885 = vcvt.s32.f32 %v1853
      %v1886 = vcvt.s32.f32 %v1854
      %v1887 = vcvt.s32.f32 %v1855
      %v1888 = vcvt.s32.f32 %v1856
      %v1889 = vcvt.s32.f32 %v1857
      %v1890 = vcvt.s32.f32 %v1858
      %v1891 = vcvt.s32.f32 %v1859
      %v1892 = vcvt.s32.f32 %v1860
      %v1893 = vcvt.s32.f32 %v1861
      %v1894 = vpack.c.bf16 %v1862, %v1862
      %v1895 = vpack.c.bf16 %v1863, %v1863
      %v1896 = vpack.c.bf16 %v1864, %v1864
      %v1897 = vpack.c.bf16 %v1865, %v1865
      %v1898 = vpack.c.bf16 %v1866, %v1866
      %v1899 = vpack.c.bf16 %v1867, %v1867
      %v1900 = vpack.c.bf16 %v1868, %v1868
      %v1901 = vpack.c.bf16 %v1869, %v1869
      %v1902 = vpack.c.bf16 %v1870, %v1870
      %v1903 = vpack.c.bf16 %v1871, %v1871
      %v1904 = vpack.c.bf16 %v1872, %v1872
      %v1905 = vpack.c.bf16 %v1873, %v1873
      %v1906 = vpack.c.bf16 %v1874, %v1874
      %v1907 = vpack.c.bf16 %v1875, %v1875
      %v1908 = vpack.c.bf16 %v1876, %v1876
      %v1909 = vpack.c.bf16 %v1877, %v1877
      %v1910 = vpack.c.bf16 %v1878, %v1878
      %v1911 = vpack.c.bf16 %v1879, %v1879
      %v1912 = vpack.c.bf16 %v1880, %v1880
      %v1913 = vpack.c.bf16 %v1881, %v1881
      %v1914 = vpack.c.bf16 %v1882, %v1882
      %v1915 = vpack.c.bf16 %v1883, %v1883
      %v1916 = vpack.c.bf16 %v1884, %v1884
      %v1917 = vpack.c.bf16 %v1885, %v1885
      %v1918 = vpack.c.bf16 %v1886, %v1886
      %v1919 = vpack.c.bf16 %v1887, %v1887
      %v1920 = vpack.c.bf16 %v1888, %v1888
      %v1921 = vpack.c.bf16 %v1889, %v1889
      %v1922 = vpack.c.bf16 %v1890, %v1890
      %v1923 = vpack.c.bf16 %v1891, %v1891
      %v1924 = vpack.c.bf16 %v1892, %v1892
      %v1925 = vpack.c.bf16 %v1893, %v1893
      %v1958 = vunpack.c.l.b16 %v1221
      %v1959 = vunpack.c.l.b16 %v1222
      %v1960 = vunpack.c.l.b16 %v1223
      %v1961 = vunpack.c.l.b16 %v1224
      %v1962 = vunpack.c.l.b16 %v1225
      %v1963 = vunpack.c.l.b16 %v1226
      %v1964 = vunpack.c.l.b16 %v1227
      %v1965 = vunpack.c.l.b16 %v1228
      %v1966 = vunpack.c.l.b16 %v1229
      %v1967 = vunpack.c.l.b16 %v1230
      %v1968 = vunpack.c.l.b16 %v1231
      %v1969 = vunpack.c.l.b16 %v1232
      %v1970 = vunpack.c.l.b16 %v1233
      %v1971 = vunpack.c.l.b16 %v1234
      %v1972 = vunpack.c.l.b16 %v1235
      %v1973 = vunpack.c.l.b16 %v1236
      %v1974 = vunpack.c.l.b16 %v1237
      %v1975 = vunpack.c.l.b16 %v1238
      %v1976 = vunpack.c.l.b16 %v1239
      %v1977 = vunpack.c.l.b16 %v1240
      %v1978 = vunpack.c.l.b16 %v1241
      %v1979 = vunpack.c.l.b16 %v1242
      %v1980 = vunpack.c.l.b16 %v1243
      %v1981 = vunpack.c.l.b16 %v1244
      %v1982 = vunpack.c.l.b16 %v1245
      %v1983 = vunpack.c.l.b16 %v1246
      %v1984 = vunpack.c.l.b16 %v1247
      %v1985 = vunpack.c.l.b16 %v1248
      %v1986 = vunpack.c.l.b16 %v1249
      %v1987 = vunpack.c.l.b16 %v1250
      %v1988 = vunpack.c.l.b16 %v1251
      %v1989 = vunpack.c.l.b16 %v1252
      %v1990 = vpack.c.b16 %v1959, %v1958
      %v1991 = vpack.c.b16 %v1961, %v1960
      %v1992 = vpack.c.b16 %v1963, %v1962
      %v1993 = vpack.c.b16 %v1965, %v1964
      %v1994 = vpack.c.b16 %v1967, %v1966
      %v1995 = vpack.c.b16 %v1969, %v1968
      %v1996 = vpack.c.b16 %v1971, %v1970
      %v1997 = vpack.c.b16 %v1973, %v1972
      %v1998 = vpack.c.b16 %v1975, %v1974
      %v1999 = vpack.c.b16 %v1977, %v1976
      %v2000 = vpack.c.b16 %v1979, %v1978
      %v2001 = vpack.c.b16 %v1981, %v1980
      %v2002 = vpack.c.b16 %v1983, %v1982
      %v2003 = vpack.c.b16 %v1985, %v1984
      %v2004 = vpack.c.b16 %v1987, %v1986
      %v2005 = vpack.c.b16 %v1989, %v1988
      %vm2006 = vsmask.f32 256
      %v2008 = vshrl.u32 %v1990, 16
      %v2010 = vrot.slane %v2008, 7
      %v2011 = vshll.u32 %v1990, 16
      %v2013 = vor.u32 %v2010, %v2011
      %v2015 = vshrl.u32 %v1991, 16
      %v2017 = vrot.slane %v2015, 7
      %v2018 = vshll.u32 %v1991, 16
      %v2020 = vor.u32 %v2017, %v2018
      %v2021 = vsel %vm2006, %v2010, %v2020
      %v2023 = vshrl.u32 %v1992, 16
      %v2025 = vrot.slane %v2023, 7
      %v2026 = vshll.u32 %v1992, 16
      %v2028 = vor.u32 %v2025, %v2026
      %v2029 = vsel %vm2006, %v2017, %v2028
      %v2031 = vshrl.u32 %v1993, 16
      %v2033 = vrot.slane %v2031, 7
      %v2034 = vshll.u32 %v1993, 16
      %v2036 = vor.u32 %v2033, %v2034
      %v2037 = vsel %vm2006, %v2025, %v2036
      %v2039 = vshrl.u32 %v1994, 16
      %v2041 = vrot.slane %v2039, 7
      %v2042 = vshll.u32 %v1994, 16
      %v2044 = vor.u32 %v2041, %v2042
      %v2045 = vsel %vm2006, %v2033, %v2044
      %v2047 = vshrl.u32 %v1995, 16
      %v2049 = vrot.slane %v2047, 7
      %v2050 = vshll.u32 %v1995, 16
      %v2052 = vor.u32 %v2049, %v2050
      %v2053 = vsel %vm2006, %v2041, %v2052
      %v2055 = vshrl.u32 %v1996, 16
      %v2057 = vrot.slane %v2055, 7
      %v2058 = vshll.u32 %v1996, 16
      %v2060 = vor.u32 %v2057, %v2058
      %v2061 = vsel %vm2006, %v2049, %v2060
      %v2063 = vshrl.u32 %v1997, 16
      %v2065 = vrot.slane %v2063, 7
      %v2066 = vshll.u32 %v1997, 16
      %v2068 = vor.u32 %v2065, %v2066
      %v2069 = vsel %vm2006, %v2057, %v2068
      %v2071 = vshrl.u32 %v1998, 16
      %v2073 = vrot.slane %v2071, 7
      %v2074 = vshll.u32 %v1998, 16
      %v2076 = vor.u32 %v2073, %v2074
      %v2077 = vsel %vm2006, %v2065, %v2076
      %v2079 = vshrl.u32 %v1999, 16
      %v2081 = vrot.slane %v2079, 7
      %v2082 = vshll.u32 %v1999, 16
      %v2084 = vor.u32 %v2081, %v2082
      %v2085 = vsel %vm2006, %v2073, %v2084
      %v2087 = vshrl.u32 %v2000, 16
      %v2089 = vrot.slane %v2087, 7
      %v2090 = vshll.u32 %v2000, 16
      %v2092 = vor.u32 %v2089, %v2090
      %v2093 = vsel %vm2006, %v2081, %v2092
      %v2095 = vshrl.u32 %v2001, 16
      %v2097 = vrot.slane %v2095, 7
      %v2098 = vshll.u32 %v2001, 16
      %v2100 = vor.u32 %v2097, %v2098
      %v2101 = vsel %vm2006, %v2089, %v2100
      %v2103 = vshrl.u32 %v2002, 16
      %v2105 = vrot.slane %v2103, 7
      %v2106 = vshll.u32 %v2002, 16
      %v2108 = vor.u32 %v2105, %v2106
      %v2109 = vsel %vm2006, %v2097, %v2108
      %v2111 = vshrl.u32 %v2003, 16
      %v2113 = vrot.slane %v2111, 7
      %v2114 = vshll.u32 %v2003, 16
      %v2116 = vor.u32 %v2113, %v2114
      %v2117 = vsel %vm2006, %v2105, %v2116
      %v2119 = vshrl.u32 %v2004, 16
      %v2121 = vrot.slane %v2119, 7
      %v2122 = vshll.u32 %v2004, 16
      %v2124 = vor.u32 %v2121, %v2122
      %v2125 = vsel %vm2006, %v2113, %v2124
      %v2127 = vshrl.u32 %v2005, 16
      %v2129 = vrot.slane %v2127, 7
      %v2130 = vshll.u32 %v2005, 16
      %v2132 = vor.u32 %v2129, %v2130
      %v2133 = vsel %vm2006, %v2121, %v2132
      %vm2151 = vcmask 1040384
      %vm2152 = vmand %vm2151, %vm2006
      %v2153 = vsel %vm2152, 0, %v2013
      %v2154 = vsel %vm2152, %v2129, 0
      %v2155 = vunpack.c.l.bf16 0
      %v2156 = vunpack.c.h.bf16 0
      %v2157 = vunpack.c.l.bf16 %v2153
      %v2158 = vunpack.c.h.bf16 %v2153
      %v2159 = vunpack.c.l.bf16 %v2021
      %v2160 = vunpack.c.h.bf16 %v2021
      %v2161 = vunpack.c.l.bf16 %v2029
      %v2162 = vunpack.c.h.bf16 %v2029
      %v2163 = vunpack.c.l.bf16 %v2037
      %v2164 = vunpack.c.h.bf16 %v2037
      %v2165 = vunpack.c.l.bf16 %v2045
      %v2166 = vunpack.c.h.bf16 %v2045
      %v2167 = vunpack.c.l.bf16 %v2053
      %v2168 = vunpack.c.h.bf16 %v2053
      %v2169 = vunpack.c.l.bf16 %v2061
      %v2170 = vunpack.c.h.bf16 %v2061
      %v2171 = vunpack.c.l.bf16 %v2069
      %v2172 = vunpack.c.h.bf16 %v2069
      %v2173 = vunpack.c.l.bf16 %v2077
      %v2174 = vunpack.c.h.bf16 %v2077
      %v2175 = vunpack.c.l.bf16 %v2085
      %v2176 = vunpack.c.h.bf16 %v2085
      %v2177 = vunpack.c.l.bf16 %v2093
      %v2178 = vunpack.c.h.bf16 %v2093
      %v2179 = vunpack.c.l.bf16 %v2101
      %v2180 = vunpack.c.h.bf16 %v2101
      %v2181 = vunpack.c.l.bf16 %v2109
      %v2182 = vunpack.c.h.bf16 %v2109
      %v2183 = vunpack.c.l.bf16 %v2117
      %v2184 = vunpack.c.h.bf16 %v2117
      %v2185 = vunpack.c.l.bf16 %v2125
      %v2186 = vunpack.c.h.bf16 %v2125
      %v2187 = vunpack.c.l.bf16 %v1766
      %v2188 = vunpack.c.l.bf16 %v1767
      %v2189 = vunpack.c.l.bf16 %v1768
      %v2190 = vunpack.c.l.bf16 %v1769
      %v2191 = vunpack.c.l.bf16 %v1770
      %v2192 = vunpack.c.l.bf16 %v1771
      %v2193 = vunpack.c.l.bf16 %v1772
      %v2194 = vunpack.c.l.bf16 %v1773
      %v2195 = vunpack.c.l.bf16 %v1774
      %v2196 = vunpack.c.l.bf16 %v1775
      %v2197 = vunpack.c.l.bf16 %v1776
      %v2198 = vunpack.c.l.bf16 %v1777
      %v2199 = vunpack.c.l.bf16 %v1778
      %v2200 = vunpack.c.l.bf16 %v1779
      %v2201 = vunpack.c.l.bf16 %v1780
      %v2202 = vunpack.c.l.bf16 %v1781
      %v2203 = vunpack.c.l.bf16 %v1782
      %v2204 = vunpack.c.l.bf16 %v1783
      %v2205 = vunpack.c.l.bf16 %v1784
      %v2206 = vunpack.c.l.bf16 %v1785
      %v2207 = vunpack.c.l.bf16 %v1786
      %v2208 = vunpack.c.l.bf16 %v1787
      %v2209 = vunpack.c.l.bf16 %v1788
      %v2210 = vunpack.c.l.bf16 %v1789
      %v2211 = vunpack.c.l.bf16 %v1790
      %v2212 = vunpack.c.l.bf16 %v1791
      %v2213 = vunpack.c.l.bf16 %v1792
      %v2214 = vunpack.c.l.bf16 %v1793
      %v2215 = vunpack.c.l.bf16 %v1794
      %v2216 = vunpack.c.l.bf16 %v1795
      %v2217 = vunpack.c.l.bf16 %v1796
      %v2218 = vunpack.c.l.bf16 %v1797
      %v2219 = vmul.f32 %v2155, %v2187
      %v2220 = vmul.f32 %v2156, %v2188
      %v2221 = vmul.f32 %v2157, %v2189
      %v2222 = vmul.f32 %v2158, %v2190
      %v2223 = vmul.f32 %v2159, %v2191
      %v2224 = vmul.f32 %v2160, %v2192
      %v2225 = vmul.f32 %v2161, %v2193
      %v2226 = vmul.f32 %v2162, %v2194
      %v2227 = vmul.f32 %v2163, %v2195
      %v2228 = vmul.f32 %v2164, %v2196
      %v2229 = vmul.f32 %v2165, %v2197
      %v2230 = vmul.f32 %v2166, %v2198
      %v2231 = vmul.f32 %v2167, %v2199
      %v2232 = vmul.f32 %v2168, %v2200
      %v2233 = vmul.f32 %v2169, %v2201
      %v2234 = vmul.f32 %v2170, %v2202
      %v2235 = vmul.f32 %v2171, %v2203
      %v2236 = vmul.f32 %v2172, %v2204
      %v2237 = vmul.f32 %v2173, %v2205
      %v2238 = vmul.f32 %v2174, %v2206
      %v2239 = vmul.f32 %v2175, %v2207
      %v2240 = vmul.f32 %v2176, %v2208
      %v2241 = vmul.f32 %v2177, %v2209
      %v2242 = vmul.f32 %v2178, %v2210
      %v2243 = vmul.f32 %v2179, %v2211
      %v2244 = vmul.f32 %v2180, %v2212
      %v2245 = vmul.f32 %v2181, %v2213
      %v2246 = vmul.f32 %v2182, %v2214
      %v2247 = vmul.f32 %v2183, %v2215
      %v2248 = vmul.f32 %v2184, %v2216
      %v2249 = vmul.f32 %v2185, %v2217
      %v2250 = vmul.f32 %v2186, %v2218
      %v2251 = vpack.c.bf16 %v2220, %v2219
      %v2252 = vpack.c.bf16 %v2222, %v2221
      %v2253 = vpack.c.bf16 %v2224, %v2223
      %v2254 = vpack.c.bf16 %v2226, %v2225
      %v2255 = vpack.c.bf16 %v2228, %v2227
      %v2256 = vpack.c.bf16 %v2230, %v2229
      %v2257 = vpack.c.bf16 %v2232, %v2231
      %v2258 = vpack.c.bf16 %v2234, %v2233
      %v2259 = vpack.c.bf16 %v2236, %v2235
      %v2260 = vpack.c.bf16 %v2238, %v2237
      %v2261 = vpack.c.bf16 %v2240, %v2239
      %v2262 = vpack.c.bf16 %v2242, %v2241
      %v2263 = vpack.c.bf16 %v2244, %v2243
      %v2264 = vpack.c.bf16 %v2246, %v2245
      %v2265 = vpack.c.bf16 %v2248, %v2247
      %v2266 = vpack.c.bf16 %v2250, %v2249
      %v2267 = vld [vmem:[%s3] sm:$0xf]
      %v2268 = vld [vmem:[%s3 + $0x4] sm:$0xf]
      %v2269 = vld [vmem:[%s3 + $0x8] sm:$0xf]
      %v2270 = vld [vmem:[%s3 + $0xc] sm:$0xf]
      %s2271 = scalar_lea.vmem %s3, 16
      %v2272 = vld [vmem:[%s2271] sm:$0xf]
      %v2273 = vld [vmem:[%s2271 + $0x4] sm:$0xf]
      %v2274 = vld [vmem:[%s2271 + $0x8] sm:$0xf]
      %v2275 = vld [vmem:[%s2271 + $0xc] sm:$0xf]
      %vm2276 = vsmask.f32 7424
      %v2278 = vshrl.u32 0, 16
      %v2280 = vshll.u32 0, 16
      %v2282 = vrot.slane %v2280, 1
      %v2283 = vor.u32 %v2278, %v2282
      %v2285 = vshll.u32 %v2153, 16
      %v2287 = vrot.slane %v2285, 1
      %v2288 = vsel %vm2276, %v2283, %v2287
      %v2289 = vshrl.u32 %v2153, 16
      %v2291 = vor.u32 %v2289, %v2287
      %v2293 = vshll.u32 %v2021, 16
      %v2295 = vrot.slane %v2293, 1
      %v2296 = vsel %vm2276, %v2291, %v2295
      %v2297 = vshrl.u32 %v2021, 16
      %v2299 = vor.u32 %v2297, %v2295
      %v2301 = vshll.u32 %v2029, 16
      %v2303 = vrot.slane %v2301, 1
      %v2304 = vsel %vm2276, %v2299, %v2303
      %v2305 = vshrl.u32 %v2029, 16
      %v2307 = vor.u32 %v2305, %v2303
      %v2309 = vshll.u32 %v2037, 16
      %v2311 = vrot.slane %v2309, 1
      %v2312 = vsel %vm2276, %v2307, %v2311
      %v2313 = vshrl.u32 %v2037, 16
      %v2315 = vor.u32 %v2313, %v2311
      %v2317 = vshll.u32 %v2045, 16
      %v2319 = vrot.slane %v2317, 1
      %v2320 = vsel %vm2276, %v2315, %v2319
      %v2321 = vshrl.u32 %v2045, 16
      %v2323 = vor.u32 %v2321, %v2319
      %v2325 = vshll.u32 %v2053, 16
      %v2327 = vrot.slane %v2325, 1
      %v2328 = vsel %vm2276, %v2323, %v2327
      %v2329 = vshrl.u32 %v2053, 16
      %v2331 = vor.u32 %v2329, %v2327
      %v2333 = vshll.u32 %v2061, 16
      %v2335 = vrot.slane %v2333, 1
      %v2336 = vsel %vm2276, %v2331, %v2335
      %v2337 = vshrl.u32 %v2061, 16
      %v2339 = vor.u32 %v2337, %v2335
      %v2341 = vshll.u32 %v2069, 16
      %v2343 = vrot.slane %v2341, 1
      %v2344 = vsel %vm2276, %v2339, %v2343
      %v2345 = vshrl.u32 %v2069, 16
      %v2347 = vor.u32 %v2345, %v2343
      %v2349 = vshll.u32 %v2077, 16
      %v2351 = vrot.slane %v2349, 1
      %v2352 = vsel %vm2276, %v2347, %v2351
      %v2353 = vshrl.u32 %v2077, 16
      %v2355 = vor.u32 %v2353, %v2351
      %v2357 = vshll.u32 %v2085, 16
      %v2359 = vrot.slane %v2357, 1
      %v2360 = vsel %vm2276, %v2355, %v2359
      %v2361 = vshrl.u32 %v2085, 16
      %v2363 = vor.u32 %v2361, %v2359
      %v2365 = vshll.u32 %v2093, 16
      %v2367 = vrot.slane %v2365, 1
      %v2368 = vsel %vm2276, %v2363, %v2367
      %v2369 = vshrl.u32 %v2093, 16
      %v2371 = vor.u32 %v2369, %v2367
      %v2373 = vshll.u32 %v2101, 16
      %v2375 = vrot.slane %v2373, 1
      %v2376 = vsel %vm2276, %v2371, %v2375
      %v2377 = vshrl.u32 %v2101, 16
      %v2379 = vor.u32 %v2377, %v2375
      %v2381 = vshll.u32 %v2109, 16
      %v2383 = vrot.slane %v2381, 1
      %v2384 = vsel %vm2276, %v2379, %v2383
      %v2385 = vshrl.u32 %v2109, 16
      %v2387 = vor.u32 %v2385, %v2383
      %v2389 = vshll.u32 %v2117, 16
      %v2391 = vrot.slane %v2389, 1
      %v2392 = vsel %vm2276, %v2387, %v2391
      %v2393 = vshrl.u32 %v2117, 16
      %v2395 = vor.u32 %v2393, %v2391
      %v2397 = vshll.u32 %v2125, 16
      %v2399 = vrot.slane %v2397, 1
      %v2400 = vsel %vm2276, %v2395, %v2399
      %v2401 = vshrl.u32 %v2125, 16
      %v2403 = vor.u32 %v2401, %v2399
      %v2405 = vshll.u32 %v2133, 16
      %v2407 = vrot.slane %v2405, 1
      %v2408 = vsel %vm2276, %v2403, %v2407
      %v2413 = vunpack.c.l.b16 %v2272
      %v2414 = vunpack.c.l.b16 %v2273
      %v2415 = vunpack.c.l.b16 %v2274
      %v2416 = vunpack.c.l.b16 %v2275
      %v2417 = vpack.c.b16 %v2414, %v2413
      %v2418 = vpack.c.b16 %v2416, %v2415
      %v2422 = vsel %vm614, %v2288, 0
      %v2425 = vsel %vm614, %v2296, 0
      %v2428 = vsel %vm614, %v2304, 0
      %v2431 = vsel %vm614, %v2312, 0
      %v2434 = vsel %vm614, %v2320, 0
      %v2437 = vsel %vm614, %v2328, 0
      %v2440 = vsel %vm614, %v2336, 0
      %v2443 = vsel %vm614, %v2344, 0
      %v2446 = vsel %vm614, %v2352, 0
      %v2449 = vsel %vm614, %v2360, 0
      %v2452 = vsel %vm614, %v2368, 0
      %v2455 = vsel %vm614, %v2376, 0
      %v2458 = vsel %vm614, %v2384, 0
      %v2461 = vsel %vm614, %v2392, 0
      %v2464 = vsel %vm614, %v2400, 0
      %v2467 = vsel %vm614, %v2408, 0
      %2469 = vmatpush.bf16.msra.mxu0 0
      %2470 = vmatpush.bf16.msra.mxu0 0
      %2471 = vmatpush.bf16.msra.mxu0 0
      %2472 = vmatpush.bf16.msra.mxu0 0
      %2473 = vmatpush.bf16.msra.mxu0 0
      %2474 = vmatpush.bf16.msra.mxu0 0
      %2475 = vmatpush.bf16.msra.mxu0 %v2418
      %2476 = vmatpush.bf16.msra.mxu0 %v2417
      %2477 = vmatmul.bf16.gmra.mxu0 %v2422
      %v2478 = vpop.f32.mrf.mxu0
      %v2479 = vadd.f32 0.0, %v2478
      %v2480 = vpop.f32.mrf.mxu0
      %v2481 = vadd.f32 0.0, %v2480
      %2482 = vmatmul.bf16.gmra.mxu0 %v2425
      %v2483 = vpop.f32.mrf.mxu0
      %v2484 = vadd.f32 0.0, %v2483
      %v2485 = vpop.f32.mrf.mxu0
      %v2486 = vadd.f32 0.0, %v2485
      %2487 = vmatmul.bf16.gmra.mxu0 %v2428
      %v2488 = vpop.f32.mrf.mxu0
      %v2489 = vadd.f32 0.0, %v2488
      %v2490 = vpop.f32.mrf.mxu0
      %v2491 = vadd.f32 0.0, %v2490
      %2492 = vmatmul.bf16.gmra.mxu0 %v2431
      %v2493 = vpop.f32.mrf.mxu0
      %v2494 = vadd.f32 0.0, %v2493
      %v2495 = vpop.f32.mrf.mxu0
      %v2496 = vadd.f32 0.0, %v2495
      %2497 = vmatmul.bf16.gmra.mxu0 %v2434
      %v2498 = vpop.f32.mrf.mxu0
      %v2499 = vadd.f32 0.0, %v2498
      %v2500 = vpop.f32.mrf.mxu0
      %v2501 = vadd.f32 0.0, %v2500
      %2502 = vmatmul.bf16.gmra.mxu0 %v2437
      %v2503 = vpop.f32.mrf.mxu0
      %v2504 = vadd.f32 0.0, %v2503
      %v2505 = vpop.f32.mrf.mxu0
      %v2506 = vadd.f32 0.0, %v2505
      %2507 = vmatmul.bf16.gmra.mxu0 %v2440
      %v2508 = vpop.f32.mrf.mxu0
      %v2509 = vadd.f32 0.0, %v2508
      %v2510 = vpop.f32.mrf.mxu0
      %v2511 = vadd.f32 0.0, %v2510
      %2512 = vmatmul.bf16.gmra.mxu0 %v2443
      %v2513 = vpop.f32.mrf.mxu0
      %v2514 = vadd.f32 0.0, %v2513
      %v2515 = vpop.f32.mrf.mxu0
      %v2516 = vadd.f32 0.0, %v2515
      %2517 = vmatmul.bf16.gmra.mxu0 %v2446
      %v2518 = vpop.f32.mrf.mxu0
      %v2519 = vadd.f32 0.0, %v2518
      %v2520 = vpop.f32.mrf.mxu0
      %v2521 = vadd.f32 0.0, %v2520
      %2522 = vmatmul.bf16.gmra.mxu0 %v2449
      %v2523 = vpop.f32.mrf.mxu0
      %v2524 = vadd.f32 0.0, %v2523
      %v2525 = vpop.f32.mrf.mxu0
      %v2526 = vadd.f32 0.0, %v2525
      %2527 = vmatmul.bf16.gmra.mxu0 %v2452
      %v2528 = vpop.f32.mrf.mxu0
      %v2529 = vadd.f32 0.0, %v2528
      %v2530 = vpop.f32.mrf.mxu0
      %v2531 = vadd.f32 0.0, %v2530
      %2532 = vmatmul.bf16.gmra.mxu0 %v2455
      %v2533 = vpop.f32.mrf.mxu0
      %v2534 = vadd.f32 0.0, %v2533
      %v2535 = vpop.f32.mrf.mxu0
      %v2536 = vadd.f32 0.0, %v2535
      %2537 = vmatmul.bf16.gmra.mxu0 %v2458
      %v2538 = vpop.f32.mrf.mxu0
      %v2539 = vadd.f32 0.0, %v2538
      %v2540 = vpop.f32.mrf.mxu0
      %v2541 = vadd.f32 0.0, %v2540
      %2542 = vmatmul.bf16.gmra.mxu0 %v2461
      %v2543 = vpop.f32.mrf.mxu0
      %v2544 = vadd.f32 0.0, %v2543
      %v2545 = vpop.f32.mrf.mxu0
      %v2546 = vadd.f32 0.0, %v2545
      %2547 = vmatmul.bf16.gmra.mxu0 %v2464
      %v2548 = vpop.f32.mrf.mxu0
      %v2549 = vadd.f32 0.0, %v2548
      %v2550 = vpop.f32.mrf.mxu0
      %v2551 = vadd.f32 0.0, %v2550
      %2552 = vmatmul.bf16.gmra.mxu0 %v2467
      %v2553 = vpop.f32.mrf.mxu0
      %v2554 = vadd.f32 0.0, %v2553
      %v2555 = vpop.f32.mrf.mxu0
      %v2556 = vadd.f32 0.0, %v2555
      %2557 = vdwg.mxu0
      %v2562 = vunpack.c.l.b16 %v2267
      %v2563 = vunpack.c.l.b16 %v2268
      %v2564 = vunpack.c.l.b16 %v2269
      %v2565 = vunpack.c.l.b16 %v2270
      %v2566 = vpack.c.b16 %v2563, %v2562
      %v2567 = vpack.c.b16 %v2565, %v2564
      %v2571 = vsel %vm614, %v2251, 0
      %v2574 = vsel %vm614, %v2252, 0
      %v2577 = vsel %vm614, %v2253, 0
      %v2580 = vsel %vm614, %v2254, 0
      %v2583 = vsel %vm614, %v2255, 0
      %v2586 = vsel %vm614, %v2256, 0
      %v2589 = vsel %vm614, %v2257, 0
      %v2592 = vsel %vm614, %v2258, 0
      %v2595 = vsel %vm614, %v2259, 0
      %v2598 = vsel %vm614, %v2260, 0
      %v2601 = vsel %vm614, %v2261, 0
      %v2604 = vsel %vm614, %v2262, 0
      %v2607 = vsel %vm614, %v2263, 0
      %v2610 = vsel %vm614, %v2264, 0
      %v2613 = vsel %vm614, %v2265, 0
      %v2616 = vsel %vm614, %v2266, 0
      %2618 = vmatpush.bf16.msra.mxu0 0
      %2619 = vmatpush.bf16.msra.mxu0 0
      %2620 = vmatpush.bf16.msra.mxu0 0
      %2621 = vmatpush.bf16.msra.mxu0 0
      %2622 = vmatpush.bf16.msra.mxu0 0
      %2623 = vmatpush.bf16.msra.mxu0 0
      %2624 = vmatpush.bf16.msra.mxu0 %v2567
      %2625 = vmatpush.bf16.msra.mxu0 %v2566
      %2626 = vmatmul.bf16.gmra.mxu0 %v2571
      %v2627 = vpop.f32.mrf.mxu0
      %v2628 = vadd.f32 %v2479, %v2627
      %v2629 = vpop.f32.mrf.mxu0
      %v2630 = vadd.f32 %v2481, %v2629
      %2631 = vmatmul.bf16.gmra.mxu0 %v2574
      %v2632 = vpop.f32.mrf.mxu0
      %v2633 = vadd.f32 %v2484, %v2632
      %v2634 = vpop.f32.mrf.mxu0
      %v2635 = vadd.f32 %v2486, %v2634
      %2636 = vmatmul.bf16.gmra.mxu0 %v2577
      %v2637 = vpop.f32.mrf.mxu0
      %v2638 = vadd.f32 %v2489, %v2637
      %v2639 = vpop.f32.mrf.mxu0
      %v2640 = vadd.f32 %v2491, %v2639
      %2641 = vmatmul.bf16.gmra.mxu0 %v2580
      %v2642 = vpop.f32.mrf.mxu0
      %v2643 = vadd.f32 %v2494, %v2642
      %v2644 = vpop.f32.mrf.mxu0
      %v2645 = vadd.f32 %v2496, %v2644
      %2646 = vmatmul.bf16.gmra.mxu0 %v2583
      %v2647 = vpop.f32.mrf.mxu0
      %v2648 = vadd.f32 %v2499, %v2647
      %v2649 = vpop.f32.mrf.mxu0
      %v2650 = vadd.f32 %v2501, %v2649
      %2651 = vmatmul.bf16.gmra.mxu0 %v2586
      %v2652 = vpop.f32.mrf.mxu0
      %v2653 = vadd.f32 %v2504, %v2652
      %v2654 = vpop.f32.mrf.mxu0
      %v2655 = vadd.f32 %v2506, %v2654
      %2656 = vmatmul.bf16.gmra.mxu0 %v2589
      %v2657 = vpop.f32.mrf.mxu0
      %v2658 = vadd.f32 %v2509, %v2657
      %v2659 = vpop.f32.mrf.mxu0
      %v2660 = vadd.f32 %v2511, %v2659
      %2661 = vmatmul.bf16.gmra.mxu0 %v2592
      %v2662 = vpop.f32.mrf.mxu0
      %v2663 = vadd.f32 %v2514, %v2662
      %v2664 = vpop.f32.mrf.mxu0
      %v2665 = vadd.f32 %v2516, %v2664
      %2666 = vmatmul.bf16.gmra.mxu0 %v2595
      %v2667 = vpop.f32.mrf.mxu0
      %v2668 = vadd.f32 %v2519, %v2667
      %v2669 = vpop.f32.mrf.mxu0
      %v2670 = vadd.f32 %v2521, %v2669
      %2671 = vmatmul.bf16.gmra.mxu0 %v2598
      %v2672 = vpop.f32.mrf.mxu0
      %v2673 = vadd.f32 %v2524, %v2672
      %v2674 = vpop.f32.mrf.mxu0
      %v2675 = vadd.f32 %v2526, %v2674
      %2676 = vmatmul.bf16.gmra.mxu0 %v2601
      %v2677 = vpop.f32.mrf.mxu0
      %v2678 = vadd.f32 %v2529, %v2677
      %v2679 = vpop.f32.mrf.mxu0
      %v2680 = vadd.f32 %v2531, %v2679
      %2681 = vmatmul.bf16.gmra.mxu0 %v2604
      %v2682 = vpop.f32.mrf.mxu0
      %v2683 = vadd.f32 %v2534, %v2682
      %v2684 = vpop.f32.mrf.mxu0
      %v2685 = vadd.f32 %v2536, %v2684
      %2686 = vmatmul.bf16.gmra.mxu0 %v2607
      %v2687 = vpop.f32.mrf.mxu0
      %v2688 = vadd.f32 %v2539, %v2687
      %v2689 = vpop.f32.mrf.mxu0
      %v2690 = vadd.f32 %v2541, %v2689
      %2691 = vmatmul.bf16.gmra.mxu0 %v2610
      %v2692 = vpop.f32.mrf.mxu0
      %v2693 = vadd.f32 %v2544, %v2692
      %v2694 = vpop.f32.mrf.mxu0
      %v2695 = vadd.f32 %v2546, %v2694
      %2696 = vmatmul.bf16.gmra.mxu0 %v2613
      %v2697 = vpop.f32.mrf.mxu0
      %v2698 = vadd.f32 %v2549, %v2697
      %v2699 = vpop.f32.mrf.mxu0
      %v2700 = vadd.f32 %v2551, %v2699
      %2701 = vmatmul.bf16.gmra.mxu0 %v2616
      %v2702 = vpop.f32.mrf.mxu0
      %v2703 = vadd.f32 %v2554, %v2702
      %v2704 = vpop.f32.mrf.mxu0
      %v2705 = vadd.f32 %v2556, %v2704
      %2706 = vdwg.mxu0
      %v2707 = vunpack.c.l.bf16 %v2133
      %v2708 = vunpack.c.l.bf16 %v1894
      %v2709 = vunpack.c.l.bf16 %v1895
      %v2710 = vunpack.c.l.bf16 %v1896
      %v2711 = vunpack.c.l.bf16 %v1897
      %v2712 = vunpack.c.l.bf16 %v1898
      %v2713 = vunpack.c.l.bf16 %v1899
      %v2714 = vunpack.c.l.bf16 %v1900
      %v2715 = vunpack.c.l.bf16 %v1901
      %v2716 = vunpack.c.l.bf16 %v1902
      %v2717 = vunpack.c.l.bf16 %v1903
      %v2718 = vunpack.c.l.bf16 %v1904
      %v2719 = vunpack.c.l.bf16 %v1905
      %v2720 = vunpack.c.l.bf16 %v1906
      %v2721 = vunpack.c.l.bf16 %v1907
      %v2722 = vunpack.c.l.bf16 %v1908
      %v2723 = vunpack.c.l.bf16 %v1909
      %v2724 = vunpack.c.l.bf16 %v1910
      %v2725 = vunpack.c.l.bf16 %v1911
      %v2726 = vunpack.c.l.bf16 %v1912
      %v2727 = vunpack.c.l.bf16 %v1913
      %v2728 = vunpack.c.l.bf16 %v1914
      %v2729 = vunpack.c.l.bf16 %v1915
      %v2730 = vunpack.c.l.bf16 %v1916
      %v2731 = vunpack.c.l.bf16 %v1917
      %v2732 = vunpack.c.l.bf16 %v1918
      %v2733 = vunpack.c.l.bf16 %v1919
      %v2734 = vunpack.c.l.bf16 %v1920
      %v2735 = vunpack.c.l.bf16 %v1921
      %v2736 = vunpack.c.l.bf16 %v1922
      %v2737 = vunpack.c.l.bf16 %v1923
      %v2738 = vunpack.c.l.bf16 %v1924
      %v2739 = vunpack.c.l.bf16 %v1925
      %vm2772 = vcmask 1041408
      %v2773 = vrot.slane %v2708, 6
      %v2774 = vrot.slane %v2709, 6
      %v2775 = vsel %vm2772, %v2773, %v2774
      %v2776 = vrot.slane %v2710, 6
      %v2777 = vsel %vm2772, %v2774, %v2776
      %v2778 = vrot.slane %v2711, 6
      %v2779 = vsel %vm2772, %v2776, %v2778
      %v2780 = vrot.slane %v2712, 6
      %v2781 = vsel %vm2772, %v2778, %v2780
      %v2782 = vrot.slane %v2713, 6
      %v2783 = vsel %vm2772, %v2780, %v2782
      %v2784 = vrot.slane %v2714, 6
      %v2785 = vsel %vm2772, %v2782, %v2784
      %v2786 = vrot.slane %v2715, 6
      %v2787 = vsel %vm2772, %v2784, %v2786
      %v2788 = vrot.slane %v2716, 6
      %v2789 = vsel %vm2772, %v2786, %v2788
      %v2790 = vrot.slane %v2717, 6
      %v2791 = vsel %vm2772, %v2788, %v2790
      %v2792 = vrot.slane %v2718, 6
      %v2793 = vsel %vm2772, %v2790, %v2792
      %v2794 = vrot.slane %v2719, 6
      %v2795 = vsel %vm2772, %v2792, %v2794
      %v2796 = vrot.slane %v2720, 6
      %v2797 = vsel %vm2772, %v2794, %v2796
      %v2798 = vrot.slane %v2721, 6
      %v2799 = vsel %vm2772, %v2796, %v2798
      %v2800 = vrot.slane %v2722, 6
      %v2801 = vsel %vm2772, %v2798, %v2800
      %v2802 = vrot.slane %v2723, 6
      %v2803 = vsel %vm2772, %v2800, %v2802
      %v2804 = vrot.slane %v2724, 6
      %v2805 = vsel %vm2772, %v2802, %v2804
      %v2806 = vrot.slane %v2725, 6
      %v2807 = vsel %vm2772, %v2804, %v2806
      %v2808 = vrot.slane %v2726, 6
      %v2809 = vsel %vm2772, %v2806, %v2808
      %v2810 = vrot.slane %v2727, 6
      %v2811 = vsel %vm2772, %v2808, %v2810
      %v2812 = vrot.slane %v2728, 6
      %v2813 = vsel %vm2772, %v2810, %v2812
      %v2814 = vrot.slane %v2729, 6
      %v2815 = vsel %vm2772, %v2812, %v2814
      %v2816 = vrot.slane %v2730, 6
      %v2817 = vsel %vm2772, %v2814, %v2816
      %v2818 = vrot.slane %v2731, 6
      %v2819 = vsel %vm2772, %v2816, %v2818
      %v2820 = vrot.slane %v2732, 6
      %v2821 = vsel %vm2772, %v2818, %v2820
      %v2822 = vrot.slane %v2733, 6
      %v2823 = vsel %vm2772, %v2820, %v2822
      %v2824 = vrot.slane %v2734, 6
      %v2825 = vsel %vm2772, %v2822, %v2824
      %v2826 = vrot.slane %v2735, 6
      %v2827 = vsel %vm2772, %v2824, %v2826
      %v2828 = vrot.slane %v2736, 6
      %v2829 = vsel %vm2772, %v2826, %v2828
      %v2830 = vrot.slane %v2737, 6
      %v2831 = vsel %vm2772, %v2828, %v2830
      %v2832 = vrot.slane %v2738, 6
      %v2833 = vsel %vm2772, %v2830, %v2832
      %v2834 = vrot.slane %v2739, 6
      %v2835 = vsel %vm2772, %v2832, %v2834
      %v2869 = vmul.f32 %v2155, %v2773
      %v2870 = vmul.f32 %v2156, %v2775
      %v2871 = vmul.f32 %v2157, %v2777
      %v2872 = vmul.f32 %v2158, %v2779
      %v2873 = vmul.f32 %v2159, %v2781
      %v2874 = vmul.f32 %v2160, %v2783
      %v2875 = vmul.f32 %v2161, %v2785
      %v2876 = vmul.f32 %v2162, %v2787
      %v2877 = vmul.f32 %v2163, %v2789
      %v2878 = vmul.f32 %v2164, %v2791
      %v2879 = vmul.f32 %v2165, %v2793
      %v2880 = vmul.f32 %v2166, %v2795
      %v2881 = vmul.f32 %v2167, %v2797
      %v2882 = vmul.f32 %v2168, %v2799
      %v2883 = vmul.f32 %v2169, %v2801
      %v2884 = vmul.f32 %v2170, %v2803
      %v2885 = vmul.f32 %v2171, %v2805
      %v2886 = vmul.f32 %v2172, %v2807
      %v2887 = vmul.f32 %v2173, %v2809
      %v2888 = vmul.f32 %v2174, %v2811
      %v2889 = vmul.f32 %v2175, %v2813
      %v2890 = vmul.f32 %v2176, %v2815
      %v2891 = vmul.f32 %v2177, %v2817
      %v2892 = vmul.f32 %v2178, %v2819
      %v2893 = vmul.f32 %v2179, %v2821
      %v2894 = vmul.f32 %v2180, %v2823
      %v2895 = vmul.f32 %v2181, %v2825
      %v2896 = vmul.f32 %v2182, %v2827
      %v2897 = vmul.f32 %v2183, %v2829
      %v2898 = vmul.f32 %v2184, %v2831
      %v2899 = vmul.f32 %v2185, %v2833
      %v2900 = vmul.f32 %v2186, %v2835
      %v2901 = vmul.f32 %v2707, %v2834
      %v2902 = vpack.c.bf16 %v2870, %v2869
      %v2903 = vpack.c.bf16 %v2872, %v2871
      %v2904 = vpack.c.bf16 %v2874, %v2873
      %v2905 = vpack.c.bf16 %v2876, %v2875
      %v2906 = vpack.c.bf16 %v2878, %v2877
      %v2907 = vpack.c.bf16 %v2880, %v2879
      %v2908 = vpack.c.bf16 %v2882, %v2881
      %v2909 = vpack.c.bf16 %v2884, %v2883
      %v2910 = vpack.c.bf16 %v2886, %v2885
      %v2911 = vpack.c.bf16 %v2888, %v2887
      %v2912 = vpack.c.bf16 %v2890, %v2889
      %v2913 = vpack.c.bf16 %v2892, %v2891
      %v2914 = vpack.c.bf16 %v2894, %v2893
      %v2915 = vpack.c.bf16 %v2896, %v2895
      %v2916 = vpack.c.bf16 %v2898, %v2897
      %v2917 = vpack.c.bf16 %v2900, %v2899
      %v2918 = vpack.c.bf16 %v2901, %v2901
      %s2919 = scalar_lea.vmem %s3, 32
      %v2920 = vld [vmem:[%s2919] sm:$0xf]
      %v2921 = vld [vmem:[%s2919 + $0x4] sm:$0xf]
      %v2922 = vld [vmem:[%s2919 + $0x8] sm:$0xf]
      %v2923 = vld [vmem:[%s2919 + $0xc] sm:$0xf]
      %vm2941 = vcmask 1046528
      %v2942 = vrot.slane %v2902, 1
      %v2943 = vrot.slane %v2903, 1
      %v2944 = vsel %vm2941, %v2942, %v2943
      %v2945 = vrot.slane %v2904, 1
      %v2946 = vsel %vm2941, %v2943, %v2945
      %v2947 = vrot.slane %v2905, 1
      %v2948 = vsel %vm2941, %v2945, %v2947
      %v2949 = vrot.slane %v2906, 1
      %v2950 = vsel %vm2941, %v2947, %v2949
      %v2951 = vrot.slane %v2907, 1
      %v2952 = vsel %vm2941, %v2949, %v2951
      %v2953 = vrot.slane %v2908, 1
      %v2954 = vsel %vm2941, %v2951, %v2953
      %v2955 = vrot.slane %v2909, 1
      %v2956 = vsel %vm2941, %v2953, %v2955
      %v2957 = vrot.slane %v2910, 1
      %v2958 = vsel %vm2941, %v2955, %v2957
      %v2959 = vrot.slane %v2911, 1
      %v2960 = vsel %vm2941, %v2957, %v2959
      %v2961 = vrot.slane %v2912, 1
      %v2962 = vsel %vm2941, %v2959, %v2961
      %v2963 = vrot.slane %v2913, 1
      %v2964 = vsel %vm2941, %v2961, %v2963
      %v2965 = vrot.slane %v2914, 1
      %v2966 = vsel %vm2941, %v2963, %v2965
      %v2967 = vrot.slane %v2915, 1
      %v2968 = vsel %vm2941, %v2965, %v2967
      %v2969 = vrot.slane %v2916, 1
      %v2970 = vsel %vm2941, %v2967, %v2969
      %v2971 = vrot.slane %v2917, 1
      %v2972 = vsel %vm2941, %v2969, %v2971
      %v2973 = vrot.slane %v2918, 1
      %v2974 = vsel %vm2941, %v2971, %v2973
      %v2979 = vunpack.c.l.b16 %v2920
      %v2980 = vunpack.c.l.b16 %v2921
      %v2981 = vunpack.c.l.b16 %v2922
      %v2982 = vunpack.c.l.b16 %v2923
      %v2983 = vpack.c.b16 %v2980, %v2979
      %v2984 = vpack.c.b16 %v2982, %v2981
      %v2988 = vsel %vm614, %v2944, 0
      %v2991 = vsel %vm614, %v2946, 0
      %v2994 = vsel %vm614, %v2948, 0
      %v2997 = vsel %vm614, %v2950, 0
      %v3000 = vsel %vm614, %v2952, 0
      %v3003 = vsel %vm614, %v2954, 0
      %v3006 = vsel %vm614, %v2956, 0
      %v3009 = vsel %vm614, %v2958, 0
      %v3012 = vsel %vm614, %v2960, 0
      %v3015 = vsel %vm614, %v2962, 0
      %v3018 = vsel %vm614, %v2964, 0
      %v3021 = vsel %vm614, %v2966, 0
      %v3024 = vsel %vm614, %v2968, 0
      %v3027 = vsel %vm614, %v2970, 0
      %v3030 = vsel %vm614, %v2972, 0
      %v3033 = vsel %vm614, %v2974, 0
      %3035 = vmatpush.bf16.msra.mxu0 0
      %3036 = vmatpush.bf16.msra.mxu0 0
      %3037 = vmatpush.bf16.msra.mxu0 0
      %3038 = vmatpush.bf16.msra.mxu0 0
      %3039 = vmatpush.bf16.msra.mxu0 0
      %3040 = vmatpush.bf16.msra.mxu0 0
      %3041 = vmatpush.bf16.msra.mxu0 %v2984
      %3042 = vmatpush.bf16.msra.mxu0 %v2983
      %3043 = vmatmul.bf16.gmra.mxu0 %v2988
      %v3044 = vpop.f32.mrf.mxu0
      %v3045 = vadd.f32 0.0, %v3044
      %v3046 = vpop.f32.mrf.mxu0
      %v3047 = vadd.f32 0.0, %v3046
      %3048 = vmatmul.bf16.gmra.mxu0 %v2991
      %v3049 = vpop.f32.mrf.mxu0
      %v3050 = vadd.f32 0.0, %v3049
      %v3051 = vpop.f32.mrf.mxu0
      %v3052 = vadd.f32 0.0, %v3051
      %3053 = vmatmul.bf16.gmra.mxu0 %v2994
      %v3054 = vpop.f32.mrf.mxu0
      %v3055 = vadd.f32 0.0, %v3054
      %v3056 = vpop.f32.mrf.mxu0
      %v3057 = vadd.f32 0.0, %v3056
      %3058 = vmatmul.bf16.gmra.mxu0 %v2997
      %v3059 = vpop.f32.mrf.mxu0
      %v3060 = vadd.f32 0.0, %v3059
      %v3061 = vpop.f32.mrf.mxu0
      %v3062 = vadd.f32 0.0, %v3061
      %3063 = vmatmul.bf16.gmra.mxu0 %v3000
      %v3064 = vpop.f32.mrf.mxu0
      %v3065 = vadd.f32 0.0, %v3064
      %v3066 = vpop.f32.mrf.mxu0
      %v3067 = vadd.f32 0.0, %v3066
      %3068 = vmatmul.bf16.gmra.mxu0 %v3003
      %v3069 = vpop.f32.mrf.mxu0
      %v3070 = vadd.f32 0.0, %v3069
      %v3071 = vpop.f32.mrf.mxu0
      %v3072 = vadd.f32 0.0, %v3071
      %3073 = vmatmul.bf16.gmra.mxu0 %v3006
      %v3074 = vpop.f32.mrf.mxu0
      %v3075 = vadd.f32 0.0, %v3074
      %v3076 = vpop.f32.mrf.mxu0
      %v3077 = vadd.f32 0.0, %v3076
      %3078 = vmatmul.bf16.gmra.mxu0 %v3009
      %v3079 = vpop.f32.mrf.mxu0
      %v3080 = vadd.f32 0.0, %v3079
      %v3081 = vpop.f32.mrf.mxu0
      %v3082 = vadd.f32 0.0, %v3081
      %3083 = vmatmul.bf16.gmra.mxu0 %v3012
      %v3084 = vpop.f32.mrf.mxu0
      %v3085 = vadd.f32 0.0, %v3084
      %v3086 = vpop.f32.mrf.mxu0
      %v3087 = vadd.f32 0.0, %v3086
      %3088 = vmatmul.bf16.gmra.mxu0 %v3015
      %v3089 = vpop.f32.mrf.mxu0
      %v3090 = vadd.f32 0.0, %v3089
      %v3091 = vpop.f32.mrf.mxu0
      %v3092 = vadd.f32 0.0, %v3091
      %3093 = vmatmul.bf16.gmra.mxu0 %v3018
      %v3094 = vpop.f32.mrf.mxu0
      %v3095 = vadd.f32 0.0, %v3094
      %v3096 = vpop.f32.mrf.mxu0
      %v3097 = vadd.f32 0.0, %v3096
      %3098 = vmatmul.bf16.gmra.mxu0 %v3021
      %v3099 = vpop.f32.mrf.mxu0
      %v3100 = vadd.f32 0.0, %v3099
      %v3101 = vpop.f32.mrf.mxu0
      %v3102 = vadd.f32 0.0, %v3101
      %3103 = vmatmul.bf16.gmra.mxu0 %v3024
      %v3104 = vpop.f32.mrf.mxu0
      %v3105 = vadd.f32 0.0, %v3104
      %v3106 = vpop.f32.mrf.mxu0
      %v3107 = vadd.f32 0.0, %v3106
      %3108 = vmatmul.bf16.gmra.mxu0 %v3027
      %v3109 = vpop.f32.mrf.mxu0
      %v3110 = vadd.f32 0.0, %v3109
      %v3111 = vpop.f32.mrf.mxu0
      %v3112 = vadd.f32 0.0, %v3111
      %3113 = vmatmul.bf16.gmra.mxu0 %v3030
      %v3114 = vpop.f32.mrf.mxu0
      %v3115 = vadd.f32 0.0, %v3114
      %v3116 = vpop.f32.mrf.mxu0
      %v3117 = vadd.f32 0.0, %v3116
      %3118 = vmatmul.bf16.gmra.mxu0 %v3033
      %v3119 = vpop.f32.mrf.mxu0
      %v3120 = vadd.f32 0.0, %v3119
      %v3121 = vpop.f32.mrf.mxu0
      %v3122 = vadd.f32 0.0, %v3121
      %3123 = vdwg.mxu0
      %v3124 = vadd.f32 %v2628, %v3045
      %v3125 = vadd.f32 %v2630, %v3047
      %v3126 = vadd.f32 %v2633, %v3050
      %v3127 = vadd.f32 %v2635, %v3052
      %v3128 = vadd.f32 %v2638, %v3055
      %v3129 = vadd.f32 %v2640, %v3057
      %v3130 = vadd.f32 %v2643, %v3060
      %v3131 = vadd.f32 %v2645, %v3062
      %v3132 = vadd.f32 %v2648, %v3065
      %v3133 = vadd.f32 %v2650, %v3067
      %v3134 = vadd.f32 %v2653, %v3070
      %v3135 = vadd.f32 %v2655, %v3072
      %v3136 = vadd.f32 %v2658, %v3075
      %v3137 = vadd.f32 %v2660, %v3077
      %v3138 = vadd.f32 %v2663, %v3080
      %v3139 = vadd.f32 %v2665, %v3082
      %v3140 = vadd.f32 %v2668, %v3085
      %v3141 = vadd.f32 %v2670, %v3087
      %v3142 = vadd.f32 %v2673, %v3090
      %v3143 = vadd.f32 %v2675, %v3092
      %v3144 = vadd.f32 %v2678, %v3095
      %v3145 = vadd.f32 %v2680, %v3097
      %v3146 = vadd.f32 %v2683, %v3100
      %v3147 = vadd.f32 %v2685, %v3102
      %v3148 = vadd.f32 %v2688, %v3105
      %v3149 = vadd.f32 %v2690, %v3107
      %v3150 = vadd.f32 %v2693, %v3110
      %v3151 = vadd.f32 %v2695, %v3112
      %v3152 = vadd.f32 %v2698, %v3115
      %v3153 = vadd.f32 %v2700, %v3117
      %v3154 = vadd.f32 %v2703, %v3120
      %v3155 = vadd.f32 %v2705, %v3122
      %v3156 = vunpack.c.h.bf16 %v2133
      %v3157 = vmul.f32 %v2157, %v2187
      %v3158 = vmul.f32 %v2158, %v2188
      %v3159 = vmul.f32 %v2159, %v2189
      %v3160 = vmul.f32 %v2160, %v2190
      %v3161 = vmul.f32 %v2161, %v2191
      %v3162 = vmul.f32 %v2162, %v2192
      %v3163 = vmul.f32 %v2163, %v2193
      %v3164 = vmul.f32 %v2164, %v2194
      %v3165 = vmul.f32 %v2165, %v2195
      %v3166 = vmul.f32 %v2166, %v2196
      %v3167 = vmul.f32 %v2167, %v2197
      %v3168 = vmul.f32 %v2168, %v2198
      %v3169 = vmul.f32 %v2169, %v2199
      %v3170 = vmul.f32 %v2170, %v2200
      %v3171 = vmul.f32 %v2171, %v2201
      %v3172 = vmul.f32 %v2172, %v2202
      %v3173 = vmul.f32 %v2173, %v2203
      %v3174 = vmul.f32 %v2174, %v2204
      %v3175 = vmul.f32 %v2175, %v2205
      %v3176 = vmul.f32 %v2176, %v2206
      %v3177 = vmul.f32 %v2177, %v2207
      %v3178 = vmul.f32 %v2178, %v2208
      %v3179 = vmul.f32 %v2179, %v2209
      %v3180 = vmul.f32 %v2180, %v2210
      %v3181 = vmul.f32 %v2181, %v2211
      %v3182 = vmul.f32 %v2182, %v2212
      %v3183 = vmul.f32 %v2183, %v2213
      %v3184 = vmul.f32 %v2184, %v2214
      %v3185 = vmul.f32 %v2185, %v2215
      %v3186 = vmul.f32 %v2186, %v2216
      %v3187 = vmul.f32 %v2707, %v2217
      %v3188 = vmul.f32 %v3156, %v2218
      %v3189 = vpack.c.bf16 %v3158, %v3157
      %v3190 = vpack.c.bf16 %v3160, %v3159
      %v3191 = vpack.c.bf16 %v3162, %v3161
      %v3192 = vpack.c.bf16 %v3164, %v3163
      %v3193 = vpack.c.bf16 %v3166, %v3165
      %v3194 = vpack.c.bf16 %v3168, %v3167
      %v3195 = vpack.c.bf16 %v3170, %v3169
      %v3196 = vpack.c.bf16 %v3172, %v3171
      %v3197 = vpack.c.bf16 %v3174, %v3173
      %v3198 = vpack.c.bf16 %v3176, %v3175
      %v3199 = vpack.c.bf16 %v3178, %v3177
      %v3200 = vpack.c.bf16 %v3180, %v3179
      %v3201 = vpack.c.bf16 %v3182, %v3181
      %v3202 = vpack.c.bf16 %v3184, %v3183
      %v3203 = vpack.c.bf16 %v3186, %v3185
      %v3204 = vpack.c.bf16 %v3188, %v3187
      %s3205 = scalar_lea.vmem %s3, 48
      %v3206 = vld [vmem:[%s3205] sm:$0xf]
      %v3207 = vld [vmem:[%s3205 + $0x4] sm:$0xf]
      %v3208 = vld [vmem:[%s3205 + $0x8] sm:$0xf]
      %v3209 = vld [vmem:[%s3205 + $0xc] sm:$0xf]
      %v3214 = vunpack.c.l.b16 %v3206
      %v3215 = vunpack.c.l.b16 %v3207
      %v3216 = vunpack.c.l.b16 %v3208
      %v3217 = vunpack.c.l.b16 %v3209
      %v3218 = vpack.c.b16 %v3215, %v3214
      %v3219 = vpack.c.b16 %v3217, %v3216
      %v3223 = vsel %vm614, %v3189, 0
      %v3226 = vsel %vm614, %v3190, 0
      %v3229 = vsel %vm614, %v3191, 0
      %v3232 = vsel %vm614, %v3192, 0
      %v3235 = vsel %vm614, %v3193, 0
      %v3238 = vsel %vm614, %v3194, 0
      %v3241 = vsel %vm614, %v3195, 0
      %v3244 = vsel %vm614, %v3196, 0
      %v3247 = vsel %vm614, %v3197, 0
      %v3250 = vsel %vm614, %v3198, 0
      %v3253 = vsel %vm614, %v3199, 0
      %v3256 = vsel %vm614, %v3200, 0
      %v3259 = vsel %vm614, %v3201, 0
      %v3262 = vsel %vm614, %v3202, 0
      %v3265 = vsel %vm614, %v3203, 0
      %v3268 = vsel %vm614, %v3204, 0
      %3270 = vmatpush.bf16.msra.mxu0 0
      %3271 = vmatpush.bf16.msra.mxu0 0
      %3272 = vmatpush.bf16.msra.mxu0 0
      %3273 = vmatpush.bf16.msra.mxu0 0
      %3274 = vmatpush.bf16.msra.mxu0 0
      %3275 = vmatpush.bf16.msra.mxu0 0
      %3276 = vmatpush.bf16.msra.mxu0 %v3219
      %3277 = vmatpush.bf16.msra.mxu0 %v3218
      %3278 = vmatmul.bf16.gmra.mxu0 %v3223
      %v3279 = vpop.f32.mrf.mxu0
      %v3280 = vadd.f32 0.0, %v3279
      %v3281 = vpop.f32.mrf.mxu0
      %v3282 = vadd.f32 0.0, %v3281
      %3283 = vmatmul.bf16.gmra.mxu0 %v3226
      %v3284 = vpop.f32.mrf.mxu0
      %v3285 = vadd.f32 0.0, %v3284
      %v3286 = vpop.f32.mrf.mxu0
      %v3287 = vadd.f32 0.0, %v3286
      %3288 = vmatmul.bf16.gmra.mxu0 %v3229
      %v3289 = vpop.f32.mrf.mxu0
      %v3290 = vadd.f32 0.0, %v3289
      %v3291 = vpop.f32.mrf.mxu0
      %v3292 = vadd.f32 0.0, %v3291
      %3293 = vmatmul.bf16.gmra.mxu0 %v3232
      %v3294 = vpop.f32.mrf.mxu0
      %v3295 = vadd.f32 0.0, %v3294
      %v3296 = vpop.f32.mrf.mxu0
      %v3297 = vadd.f32 0.0, %v3296
      %3298 = vmatmul.bf16.gmra.mxu0 %v3235
      %v3299 = vpop.f32.mrf.mxu0
      %v3300 = vadd.f32 0.0, %v3299
      %v3301 = vpop.f32.mrf.mxu0
      %v3302 = vadd.f32 0.0, %v3301
      %3303 = vmatmul.bf16.gmra.mxu0 %v3238
      %v3304 = vpop.f32.mrf.mxu0
      %v3305 = vadd.f32 0.0, %v3304
      %v3306 = vpop.f32.mrf.mxu0
      %v3307 = vadd.f32 0.0, %v3306
      %3308 = vmatmul.bf16.gmra.mxu0 %v3241
      %v3309 = vpop.f32.mrf.mxu0
      %v3310 = vadd.f32 0.0, %v3309
      %v3311 = vpop.f32.mrf.mxu0
      %v3312 = vadd.f32 0.0, %v3311
      %3313 = vmatmul.bf16.gmra.mxu0 %v3244
      %v3314 = vpop.f32.mrf.mxu0
      %v3315 = vadd.f32 0.0, %v3314
      %v3316 = vpop.f32.mrf.mxu0
      %v3317 = vadd.f32 0.0, %v3316
      %3318 = vmatmul.bf16.gmra.mxu0 %v3247
      %v3319 = vpop.f32.mrf.mxu0
      %v3320 = vadd.f32 0.0, %v3319
      %v3321 = vpop.f32.mrf.mxu0
      %v3322 = vadd.f32 0.0, %v3321
      %3323 = vmatmul.bf16.gmra.mxu0 %v3250
      %v3324 = vpop.f32.mrf.mxu0
      %v3325 = vadd.f32 0.0, %v3324
      %v3326 = vpop.f32.mrf.mxu0
      %v3327 = vadd.f32 0.0, %v3326
      %3328 = vmatmul.bf16.gmra.mxu0 %v3253
      %v3329 = vpop.f32.mrf.mxu0
      %v3330 = vadd.f32 0.0, %v3329
      %v3331 = vpop.f32.mrf.mxu0
      %v3332 = vadd.f32 0.0, %v3331
      %3333 = vmatmul.bf16.gmra.mxu0 %v3256
      %v3334 = vpop.f32.mrf.mxu0
      %v3335 = vadd.f32 0.0, %v3334
      %v3336 = vpop.f32.mrf.mxu0
      %v3337 = vadd.f32 0.0, %v3336
      %3338 = vmatmul.bf16.gmra.mxu0 %v3259
      %v3339 = vpop.f32.mrf.mxu0
      %v3340 = vadd.f32 0.0, %v3339
      %v3341 = vpop.f32.mrf.mxu0
      %v3342 = vadd.f32 0.0, %v3341
      %3343 = vmatmul.bf16.gmra.mxu0 %v3262
      %v3344 = vpop.f32.mrf.mxu0
      %v3345 = vadd.f32 0.0, %v3344
      %v3346 = vpop.f32.mrf.mxu0
      %v3347 = vadd.f32 0.0, %v3346
      %3348 = vmatmul.bf16.gmra.mxu0 %v3265
      %v3349 = vpop.f32.mrf.mxu0
      %v3350 = vadd.f32 0.0, %v3349
      %v3351 = vpop.f32.mrf.mxu0
      %v3352 = vadd.f32 0.0, %v3351
      %3353 = vmatmul.bf16.gmra.mxu0 %v3268
      %v3354 = vpop.f32.mrf.mxu0
      %v3355 = vadd.f32 0.0, %v3354
      %v3356 = vpop.f32.mrf.mxu0
      %v3357 = vadd.f32 0.0, %v3356
      %3358 = vdwg.mxu0
      %v3359 = vadd.f32 %v3124, %v3280
      %v3360 = vadd.f32 %v3125, %v3282
      %v3361 = vadd.f32 %v3126, %v3285
      %v3362 = vadd.f32 %v3127, %v3287
      %v3363 = vadd.f32 %v3128, %v3290
      %v3364 = vadd.f32 %v3129, %v3292
      %v3365 = vadd.f32 %v3130, %v3295
      %v3366 = vadd.f32 %v3131, %v3297
      %v3367 = vadd.f32 %v3132, %v3300
      %v3368 = vadd.f32 %v3133, %v3302
      %v3369 = vadd.f32 %v3134, %v3305
      %v3370 = vadd.f32 %v3135, %v3307
      %v3371 = vadd.f32 %v3136, %v3310
      %v3372 = vadd.f32 %v3137, %v3312
      %v3373 = vadd.f32 %v3138, %v3315
      %v3374 = vadd.f32 %v3139, %v3317
      %v3375 = vadd.f32 %v3140, %v3320
      %v3376 = vadd.f32 %v3141, %v3322
      %v3377 = vadd.f32 %v3142, %v3325
      %v3378 = vadd.f32 %v3143, %v3327
      %v3379 = vadd.f32 %v3144, %v3330
      %v3380 = vadd.f32 %v3145, %v3332
      %v3381 = vadd.f32 %v3146, %v3335
      %v3382 = vadd.f32 %v3147, %v3337
      %v3383 = vadd.f32 %v3148, %v3340
      %v3384 = vadd.f32 %v3149, %v3342
      %v3385 = vadd.f32 %v3150, %v3345
      %v3386 = vadd.f32 %v3151, %v3347
      %v3387 = vadd.f32 %v3152, %v3350
      %v3388 = vadd.f32 %v3153, %v3352
      %v3389 = vadd.f32 %v3154, %v3355
      %v3390 = vadd.f32 %v3155, %v3357
      %s3391 = scalar_lea.vmem %s3, 64
      %v3392 = vld [vmem:[%s3391] sm:$0xf]
      %v3393 = vld [vmem:[%s3391 + $0x4] sm:$0xf]
      %v3394 = vld [vmem:[%s3391 + $0x8] sm:$0xf]
      %v3395 = vld [vmem:[%s3391 + $0xc] sm:$0xf]
      %v3396 = vshrl.u32 %v2133, 16
      %v3398 = vor.u32 %v3396, %v2407
      %v3400 = vshll.u32 %v2154, 16
      %v3402 = vrot.slane %v3400, 1
      %v3403 = vsel %vm2276, %v3398, %v3402
      %v3408 = vunpack.c.l.b16 %v3392
      %v3409 = vunpack.c.l.b16 %v3393
      %v3410 = vunpack.c.l.b16 %v3394
      %v3411 = vunpack.c.l.b16 %v3395
      %v3412 = vpack.c.b16 %v3409, %v3408
      %v3413 = vpack.c.b16 %v3411, %v3410
      %v3417 = vsel %vm614, %v3403, 0
      %3419 = vmatpush.bf16.msra.mxu0 0
      %3420 = vmatpush.bf16.msra.mxu0 0
      %3421 = vmatpush.bf16.msra.mxu0 0
      %3422 = vmatpush.bf16.msra.mxu0 0
      %3423 = vmatpush.bf16.msra.mxu0 0
      %3424 = vmatpush.bf16.msra.mxu0 0
      %3425 = vmatpush.bf16.msra.mxu0 %v3413
      %3426 = vmatpush.bf16.msra.mxu0 %v3412
      %3427 = vmatmul.bf16.gmra.mxu0 %v2425
      %v3428 = vpop.f32.mrf.mxu0
      %v3429 = vadd.f32 0.0, %v3428
      %v3430 = vpop.f32.mrf.mxu0
      %v3431 = vadd.f32 0.0, %v3430
      %3432 = vmatmul.bf16.gmra.mxu0 %v2428
      %v3433 = vpop.f32.mrf.mxu0
      %v3434 = vadd.f32 0.0, %v3433
      %v3435 = vpop.f32.mrf.mxu0
      %v3436 = vadd.f32 0.0, %v3435
      %3437 = vmatmul.bf16.gmra.mxu0 %v2431
      %v3438 = vpop.f32.mrf.mxu0
      %v3439 = vadd.f32 0.0, %v3438
      %v3440 = vpop.f32.mrf.mxu0
      %v3441 = vadd.f32 0.0, %v3440
      %3442 = vmatmul.bf16.gmra.mxu0 %v2434
      %v3443 = vpop.f32.mrf.mxu0
      %v3444 = vadd.f32 0.0, %v3443
      %v3445 = vpop.f32.mrf.mxu0
      %v3446 = vadd.f32 0.0, %v3445
      %3447 = vmatmul.bf16.gmra.mxu0 %v2437
      %v3448 = vpop.f32.mrf.mxu0
      %v3449 = vadd.f32 0.0, %v3448
      %v3450 = vpop.f32.mrf.mxu0
      %v3451 = vadd.f32 0.0, %v3450
      %3452 = vmatmul.bf16.gmra.mxu0 %v2440
      %v3453 = vpop.f32.mrf.mxu0
      %v3454 = vadd.f32 0.0, %v3453
      %v3455 = vpop.f32.mrf.mxu0
      %v3456 = vadd.f32 0.0, %v3455
      %3457 = vmatmul.bf16.gmra.mxu0 %v2443
      %v3458 = vpop.f32.mrf.mxu0
      %v3459 = vadd.f32 0.0, %v3458
      %v3460 = vpop.f32.mrf.mxu0
      %v3461 = vadd.f32 0.0, %v3460
      %3462 = vmatmul.bf16.gmra.mxu0 %v2446
      %v3463 = vpop.f32.mrf.mxu0
      %v3464 = vadd.f32 0.0, %v3463
      %v3465 = vpop.f32.mrf.mxu0
      %v3466 = vadd.f32 0.0, %v3465
      %3467 = vmatmul.bf16.gmra.mxu0 %v2449
      %v3468 = vpop.f32.mrf.mxu0
      %v3469 = vadd.f32 0.0, %v3468
      %v3470 = vpop.f32.mrf.mxu0
      %v3471 = vadd.f32 0.0, %v3470
      %3472 = vmatmul.bf16.gmra.mxu0 %v2452
      %v3473 = vpop.f32.mrf.mxu0
      %v3474 = vadd.f32 0.0, %v3473
      %v3475 = vpop.f32.mrf.mxu0
      %v3476 = vadd.f32 0.0, %v3475
      %3477 = vmatmul.bf16.gmra.mxu0 %v2455
      %v3478 = vpop.f32.mrf.mxu0
      %v3479 = vadd.f32 0.0, %v3478
      %v3480 = vpop.f32.mrf.mxu0
      %v3481 = vadd.f32 0.0, %v3480
      %3482 = vmatmul.bf16.gmra.mxu0 %v2458
      %v3483 = vpop.f32.mrf.mxu0
      %v3484 = vadd.f32 0.0, %v3483
      %v3485 = vpop.f32.mrf.mxu0
      %v3486 = vadd.f32 0.0, %v3485
      %3487 = vmatmul.bf16.gmra.mxu0 %v2461
      %v3488 = vpop.f32.mrf.mxu0
      %v3489 = vadd.f32 0.0, %v3488
      %v3490 = vpop.f32.mrf.mxu0
      %v3491 = vadd.f32 0.0, %v3490
      %3492 = vmatmul.bf16.gmra.mxu0 %v2464
      %v3493 = vpop.f32.mrf.mxu0
      %v3494 = vadd.f32 0.0, %v3493
      %v3495 = vpop.f32.mrf.mxu0
      %v3496 = vadd.f32 0.0, %v3495
      %3497 = vmatmul.bf16.gmra.mxu0 %v2467
      %v3498 = vpop.f32.mrf.mxu0
      %v3499 = vadd.f32 0.0, %v3498
      %v3500 = vpop.f32.mrf.mxu0
      %v3501 = vadd.f32 0.0, %v3500
      %3502 = vmatmul.bf16.gmra.mxu0 %v3417
      %v3503 = vpop.f32.mrf.mxu0
      %v3504 = vadd.f32 0.0, %v3503
      %v3505 = vpop.f32.mrf.mxu0
      %v3506 = vadd.f32 0.0, %v3505
      %3507 = vdwg.mxu0
      %v3508 = vadd.f32 %v3359, %v3429
      %v3509 = vadd.f32 %v3360, %v3431
      %v3510 = vadd.f32 %v3361, %v3434
      %v3511 = vadd.f32 %v3362, %v3436
      %v3512 = vadd.f32 %v3363, %v3439
      %v3513 = vadd.f32 %v3364, %v3441
      %v3514 = vadd.f32 %v3365, %v3444
      %v3515 = vadd.f32 %v3366, %v3446
      %v3516 = vadd.f32 %v3367, %v3449
      %v3517 = vadd.f32 %v3368, %v3451
      %v3518 = vadd.f32 %v3369, %v3454
      %v3519 = vadd.f32 %v3370, %v3456
      %v3520 = vadd.f32 %v3371, %v3459
      %v3521 = vadd.f32 %v3372, %v3461
      %v3522 = vadd.f32 %v3373, %v3464
      %v3523 = vadd.f32 %v3374, %v3466
      %v3524 = vadd.f32 %v3375, %v3469
      %v3525 = vadd.f32 %v3376, %v3471
      %v3526 = vadd.f32 %v3377, %v3474
      %v3527 = vadd.f32 %v3378, %v3476
      %v3528 = vadd.f32 %v3379, %v3479
      %v3529 = vadd.f32 %v3380, %v3481
      %v3530 = vadd.f32 %v3381, %v3484
      %v3531 = vadd.f32 %v3382, %v3486
      %v3532 = vadd.f32 %v3383, %v3489
      %v3533 = vadd.f32 %v3384, %v3491
      %v3534 = vadd.f32 %v3385, %v3494
      %v3535 = vadd.f32 %v3386, %v3496
      %v3536 = vadd.f32 %v3387, %v3499
      %v3537 = vadd.f32 %v3388, %v3501
      %v3538 = vadd.f32 %v3389, %v3504
      %v3539 = vadd.f32 %v3390, %v3506
      %v3540 = vunpack.c.l.bf16 %v2154
      %v3541 = vmul.f32 %v2157, %v2773
      %v3542 = vmul.f32 %v2158, %v2775
      %v3543 = vmul.f32 %v2159, %v2777
      %v3544 = vmul.f32 %v2160, %v2779
      %v3545 = vmul.f32 %v2161, %v2781
      %v3546 = vmul.f32 %v2162, %v2783
      %v3547 = vmul.f32 %v2163, %v2785
      %v3548 = vmul.f32 %v2164, %v2787
      %v3549 = vmul.f32 %v2165, %v2789
      %v3550 = vmul.f32 %v2166, %v2791
      %v3551 = vmul.f32 %v2167, %v2793
      %v3552 = vmul.f32 %v2168, %v2795
      %v3553 = vmul.f32 %v2169, %v2797
      %v3554 = vmul.f32 %v2170, %v2799
      %v3555 = vmul.f32 %v2171, %v2801
      %v3556 = vmul.f32 %v2172, %v2803
      %v3557 = vmul.f32 %v2173, %v2805
      %v3558 = vmul.f32 %v2174, %v2807
      %v3559 = vmul.f32 %v2175, %v2809
      %v3560 = vmul.f32 %v2176, %v2811
      %v3561 = vmul.f32 %v2177, %v2813
      %v3562 = vmul.f32 %v2178, %v2815
      %v3563 = vmul.f32 %v2179, %v2817
      %v3564 = vmul.f32 %v2180, %v2819
      %v3565 = vmul.f32 %v2181, %v2821
      %v3566 = vmul.f32 %v2182, %v2823
      %v3567 = vmul.f32 %v2183, %v2825
      %v3568 = vmul.f32 %v2184, %v2827
      %v3569 = vmul.f32 %v2185, %v2829
      %v3570 = vmul.f32 %v2186, %v2831
      %v3571 = vmul.f32 %v2707, %v2833
      %v3572 = vmul.f32 %v3156, %v2835
      %v3573 = vmul.f32 %v3540, %v2834
      %v3574 = vpack.c.bf16 %v3542, %v3541
      %v3575 = vpack.c.bf16 %v3544, %v3543
      %v3576 = vpack.c.bf16 %v3546, %v3545
      %v3577 = vpack.c.bf16 %v3548, %v3547
      %v3578 = vpack.c.bf16 %v3550, %v3549
      %v3579 = vpack.c.bf16 %v3552, %v3551
      %v3580 = vpack.c.bf16 %v3554, %v3553
      %v3581 = vpack.c.bf16 %v3556, %v3555
      %v3582 = vpack.c.bf16 %v3558, %v3557
      %v3583 = vpack.c.bf16 %v3560, %v3559
      %v3584 = vpack.c.bf16 %v3562, %v3561
      %v3585 = vpack.c.bf16 %v3564, %v3563
      %v3586 = vpack.c.bf16 %v3566, %v3565
      %v3587 = vpack.c.bf16 %v3568, %v3567
      %v3588 = vpack.c.bf16 %v3570, %v3569
      %v3589 = vpack.c.bf16 %v3572, %v3571
      %v3590 = vpack.c.bf16 %v3573, %v3573
      %s3591 = scalar_lea.vmem %s3, 80
      %v3592 = vld [vmem:[%s3591] sm:$0xf]
      %v3593 = vld [vmem:[%s3591 + $0x4] sm:$0xf]
      %v3594 = vld [vmem:[%s3591 + $0x8] sm:$0xf]
      %v3595 = vld [vmem:[%s3591 + $0xc] sm:$0xf]
      %v3613 = vrot.slane %v3574, 1
      %v3614 = vrot.slane %v3575, 1
      %v3615 = vsel %vm2941, %v3613, %v3614
      %v3616 = vrot.slane %v3576, 1
      %v3617 = vsel %vm2941, %v3614, %v3616
      %v3618 = vrot.slane %v3577, 1
      %v3619 = vsel %vm2941, %v3616, %v3618
      %v3620 = vrot.slane %v3578, 1
      %v3621 = vsel %vm2941, %v3618, %v3620
      %v3622 = vrot.slane %v3579, 1
      %v3623 = vsel %vm2941, %v3620, %v3622
      %v3624 = vrot.slane %v3580, 1
      %v3625 = vsel %vm2941, %v3622, %v3624
      %v3626 = vrot.slane %v3581, 1
      %v3627 = vsel %vm2941, %v3624, %v3626
      %v3628 = vrot.slane %v3582, 1
      %v3629 = vsel %vm2941, %v3626, %v3628
      %v3630 = vrot.slane %v3583, 1
      %v3631 = vsel %vm2941, %v3628, %v3630
      %v3632 = vrot.slane %v3584, 1
      %v3633 = vsel %vm2941, %v3630, %v3632
      %v3634 = vrot.slane %v3585, 1
      %v3635 = vsel %vm2941, %v3632, %v3634
      %v3636 = vrot.slane %v3586, 1
      %v3637 = vsel %vm2941, %v3634, %v3636
      %v3638 = vrot.slane %v3587, 1
      %v3639 = vsel %vm2941, %v3636, %v3638
      %v3640 = vrot.slane %v3588, 1
      %v3641 = vsel %vm2941, %v3638, %v3640
      %v3642 = vrot.slane %v3589, 1
      %v3643 = vsel %vm2941, %v3640, %v3642
      %v3644 = vrot.slane %v3590, 1
      %v3645 = vsel %vm2941, %v3642, %v3644
      %v3650 = vunpack.c.l.b16 %v3592
      %v3651 = vunpack.c.l.b16 %v3593
      %v3652 = vunpack.c.l.b16 %v3594
      %v3653 = vunpack.c.l.b16 %v3595
      %v3654 = vpack.c.b16 %v3651, %v3650
      %v3655 = vpack.c.b16 %v3653, %v3652
      %v3659 = vsel %vm614, %v3615, 0
      %v3662 = vsel %vm614, %v3617, 0
      %v3665 = vsel %vm614, %v3619, 0
      %v3668 = vsel %vm614, %v3621, 0
      %v3671 = vsel %vm614, %v3623, 0
      %v3674 = vsel %vm614, %v3625, 0
      %v3677 = vsel %vm614, %v3627, 0
      %v3680 = vsel %vm614, %v3629, 0
      %v3683 = vsel %vm614, %v3631, 0
      %v3686 = vsel %vm614, %v3633, 0
      %v3689 = vsel %vm614, %v3635, 0
      %v3692 = vsel %vm614, %v3637, 0
      %v3695 = vsel %vm614, %v3639, 0
      %v3698 = vsel %vm614, %v3641, 0
      %v3701 = vsel %vm614, %v3643, 0
      %v3704 = vsel %vm614, %v3645, 0
      %3706 = vmatpush.bf16.msra.mxu0 0
      %3707 = vmatpush.bf16.msra.mxu0 0
      %3708 = vmatpush.bf16.msra.mxu0 0
      %3709 = vmatpush.bf16.msra.mxu0 0
      %3710 = vmatpush.bf16.msra.mxu0 0
      %3711 = vmatpush.bf16.msra.mxu0 0
      %3712 = vmatpush.bf16.msra.mxu0 %v3655
      %3713 = vmatpush.bf16.msra.mxu0 %v3654
      %3714 = vmatmul.bf16.gmra.mxu0 %v3659
      %v3715 = vpop.f32.mrf.mxu0
      %v3716 = vadd.f32 0.0, %v3715
      %v3717 = vpop.f32.mrf.mxu0
      %v3718 = vadd.f32 0.0, %v3717
      %3719 = vmatmul.bf16.gmra.mxu0 %v3662
      %v3720 = vpop.f32.mrf.mxu0
      %v3721 = vadd.f32 0.0, %v3720
      %v3722 = vpop.f32.mrf.mxu0
      %v3723 = vadd.f32 0.0, %v3722
      %3724 = vmatmul.bf16.gmra.mxu0 %v3665
      %v3725 = vpop.f32.mrf.mxu0
      %v3726 = vadd.f32 0.0, %v3725
      %v3727 = vpop.f32.mrf.mxu0
      %v3728 = vadd.f32 0.0, %v3727
      %3729 = vmatmul.bf16.gmra.mxu0 %v3668
      %v3730 = vpop.f32.mrf.mxu0
      %v3731 = vadd.f32 0.0, %v3730
      %v3732 = vpop.f32.mrf.mxu0
      %v3733 = vadd.f32 0.0, %v3732
      %3734 = vmatmul.bf16.gmra.mxu0 %v3671
      %v3735 = vpop.f32.mrf.mxu0
      %v3736 = vadd.f32 0.0, %v3735
      %v3737 = vpop.f32.mrf.mxu0
      %v3738 = vadd.f32 0.0, %v3737
      %3739 = vmatmul.bf16.gmra.mxu0 %v3674
      %v3740 = vpop.f32.mrf.mxu0
      %v3741 = vadd.f32 0.0, %v3740
      %v3742 = vpop.f32.mrf.mxu0
      %v3743 = vadd.f32 0.0, %v3742
      %3744 = vmatmul.bf16.gmra.mxu0 %v3677
      %v3745 = vpop.f32.mrf.mxu0
      %v3746 = vadd.f32 0.0, %v3745
      %v3747 = vpop.f32.mrf.mxu0
      %v3748 = vadd.f32 0.0, %v3747
      %3749 = vmatmul.bf16.gmra.mxu0 %v3680
      %v3750 = vpop.f32.mrf.mxu0
      %v3751 = vadd.f32 0.0, %v3750
      %v3752 = vpop.f32.mrf.mxu0
      %v3753 = vadd.f32 0.0, %v3752
      %3754 = vmatmul.bf16.gmra.mxu0 %v3683
      %v3755 = vpop.f32.mrf.mxu0
      %v3756 = vadd.f32 0.0, %v3755
      %v3757 = vpop.f32.mrf.mxu0
      %v3758 = vadd.f32 0.0, %v3757
      %3759 = vmatmul.bf16.gmra.mxu0 %v3686
      %v3760 = vpop.f32.mrf.mxu0
      %v3761 = vadd.f32 0.0, %v3760
      %v3762 = vpop.f32.mrf.mxu0
      %v3763 = vadd.f32 0.0, %v3762
      %3764 = vmatmul.bf16.gmra.mxu0 %v3689
      %v3765 = vpop.f32.mrf.mxu0
      %v3766 = vadd.f32 0.0, %v3765
      %v3767 = vpop.f32.mrf.mxu0
      %v3768 = vadd.f32 0.0, %v3767
      %3769 = vmatmul.bf16.gmra.mxu0 %v3692
      %v3770 = vpop.f32.mrf.mxu0
      %v3771 = vadd.f32 0.0, %v3770
      %v3772 = vpop.f32.mrf.mxu0
      %v3773 = vadd.f32 0.0, %v3772
      %3774 = vmatmul.bf16.gmra.mxu0 %v3695
      %v3775 = vpop.f32.mrf.mxu0
      %v3776 = vadd.f32 0.0, %v3775
      %v3777 = vpop.f32.mrf.mxu0
      %v3778 = vadd.f32 0.0, %v3777
      %3779 = vmatmul.bf16.gmra.mxu0 %v3698
      %v3780 = vpop.f32.mrf.mxu0
      %v3781 = vadd.f32 0.0, %v3780
      %v3782 = vpop.f32.mrf.mxu0
      %v3783 = vadd.f32 0.0, %v3782
      %3784 = vmatmul.bf16.gmra.mxu0 %v3701
      %v3785 = vpop.f32.mrf.mxu0
      %v3786 = vadd.f32 0.0, %v3785
      %v3787 = vpop.f32.mrf.mxu0
      %v3788 = vadd.f32 0.0, %v3787
      %3789 = vmatmul.bf16.gmra.mxu0 %v3704
      %v3790 = vpop.f32.mrf.mxu0
      %v3791 = vadd.f32 0.0, %v3790
      %v3792 = vpop.f32.mrf.mxu0
      %v3793 = vadd.f32 0.0, %v3792
      %3794 = vdwg.mxu0
      %v3795 = vadd.f32 %v3508, %v3716
      %v3796 = vadd.f32 %v3509, %v3718
      %v3797 = vadd.f32 %v3510, %v3721
      %v3798 = vadd.f32 %v3511, %v3723
      %v3799 = vadd.f32 %v3512, %v3726
      %v3800 = vadd.f32 %v3513, %v3728
      %v3801 = vadd.f32 %v3514, %v3731
      %v3802 = vadd.f32 %v3515, %v3733
      %v3803 = vadd.f32 %v3516, %v3736
      %v3804 = vadd.f32 %v3517, %v3738
      %v3805 = vadd.f32 %v3518, %v3741
      %v3806 = vadd.f32 %v3519, %v3743
      %v3807 = vadd.f32 %v3520, %v3746
      %v3808 = vadd.f32 %v3521, %v3748
      %v3809 = vadd.f32 %v3522, %v3751
      %v3810 = vadd.f32 %v3523, %v3753
      %v3811 = vadd.f32 %v3524, %v3756
      %v3812 = vadd.f32 %v3525, %v3758
      %v3813 = vadd.f32 %v3526, %v3761
      %v3814 = vadd.f32 %v3527, %v3763
      %v3815 = vadd.f32 %v3528, %v3766
      %v3816 = vadd.f32 %v3529, %v3768
      %v3817 = vadd.f32 %v3530, %v3771
      %v3818 = vadd.f32 %v3531, %v3773
      %v3819 = vadd.f32 %v3532, %v3776
      %v3820 = vadd.f32 %v3533, %v3778
      %v3821 = vadd.f32 %v3534, %v3781
      %v3822 = vadd.f32 %v3535, %v3783
      %v3823 = vadd.f32 %v3536, %v3786
      %v3824 = vadd.f32 %v3537, %v3788
      %v3825 = vadd.f32 %v3538, %v3791
      %v3826 = vadd.f32 %v3539, %v3793
      %v3827 = vunpack.c.h.bf16 %v2154
      %v3828 = vmul.f32 %v2159, %v2187
      %v3829 = vmul.f32 %v2160, %v2188
      %v3830 = vmul.f32 %v2161, %v2189
      %v3831 = vmul.f32 %v2162, %v2190
      %v3832 = vmul.f32 %v2163, %v2191
      %v3833 = vmul.f32 %v2164, %v2192
      %v3834 = vmul.f32 %v2165, %v2193
      %v3835 = vmul.f32 %v2166, %v2194
      %v3836 = vmul.f32 %v2167, %v2195
      %v3837 = vmul.f32 %v2168, %v2196
      %v3838 = vmul.f32 %v2169, %v2197
      %v3839 = vmul.f32 %v2170, %v2198
      %v3840 = vmul.f32 %v2171, %v2199
      %v3841 = vmul.f32 %v2172, %v2200
      %v3842 = vmul.f32 %v2173, %v2201
      %v3843 = vmul.f32 %v2174, %v2202
      %v3844 = vmul.f32 %v2175, %v2203
      %v3845 = vmul.f32 %v2176, %v2204
      %v3846 = vmul.f32 %v2177, %v2205
      %v3847 = vmul.f32 %v2178, %v2206
      %v3848 = vmul.f32 %v2179, %v2207
      %v3849 = vmul.f32 %v2180, %v2208
      %v3850 = vmul.f32 %v2181, %v2209
      %v3851 = vmul.f32 %v2182, %v2210
      %v3852 = vmul.f32 %v2183, %v2211
      %v3853 = vmul.f32 %v2184, %v2212
      %v3854 = vmul.f32 %v2185, %v2213
      %v3855 = vmul.f32 %v2186, %v2214
      %v3856 = vmul.f32 %v2707, %v2215
      %v3857 = vmul.f32 %v3156, %v2216
      %v3858 = vmul.f32 %v3540, %v2217
      %v3859 = vmul.f32 %v3827, %v2218
      %v3860 = vpack.c.bf16 %v3829, %v3828
      %v3861 = vpack.c.bf16 %v3831, %v3830
      %v3862 = vpack.c.bf16 %v3833, %v3832
      %v3863 = vpack.c.bf16 %v3835, %v3834
      %v3864 = vpack.c.bf16 %v3837, %v3836
      %v3865 = vpack.c.bf16 %v3839, %v3838
      %v3866 = vpack.c.bf16 %v3841, %v3840
      %v3867 = vpack.c.bf16 %v3843, %v3842
      %v3868 = vpack.c.bf16 %v3845, %v3844
      %v3869 = vpack.c.bf16 %v3847, %v3846
      %v3870 = vpack.c.bf16 %v3849, %v3848
      %v3871 = vpack.c.bf16 %v3851, %v3850
      %v3872 = vpack.c.bf16 %v3853, %v3852
      %v3873 = vpack.c.bf16 %v3855, %v3854
      %v3874 = vpack.c.bf16 %v3857, %v3856
      %v3875 = vpack.c.bf16 %v3859, %v3858
      %s3876 = scalar_lea.vmem %s3, 96
      %v3877 = vld [vmem:[%s3876] sm:$0xf]
      %v3878 = vld [vmem:[%s3876 + $0x4] sm:$0xf]
      %v3879 = vld [vmem:[%s3876 + $0x8] sm:$0xf]
      %v3880 = vld [vmem:[%s3876 + $0xc] sm:$0xf]
      %v3885 = vunpack.c.l.b16 %v3877
      %v3886 = vunpack.c.l.b16 %v3878
      %v3887 = vunpack.c.l.b16 %v3879
      %v3888 = vunpack.c.l.b16 %v3880
      %v3889 = vpack.c.b16 %v3886, %v3885
      %v3890 = vpack.c.b16 %v3888, %v3887
      %v3894 = vsel %vm614, %v3860, 0
      %v3897 = vsel %vm614, %v3861, 0
      %v3900 = vsel %vm614, %v3862, 0
      %v3903 = vsel %vm614, %v3863, 0
      %v3906 = vsel %vm614, %v3864, 0
      %v3909 = vsel %vm614, %v3865, 0
      %v3912 = vsel %vm614, %v3866, 0
      %v3915 = vsel %vm614, %v3867, 0
      %v3918 = vsel %vm614, %v3868, 0
      %v3921 = vsel %vm614, %v3869, 0
      %v3924 = vsel %vm614, %v3870, 0
      %v3927 = vsel %vm614, %v3871, 0
      %v3930 = vsel %vm614, %v3872, 0
      %v3933 = vsel %vm614, %v3873, 0
      %v3936 = vsel %vm614, %v3874, 0
      %v3939 = vsel %vm614, %v3875, 0
      %3941 = vmatpush.bf16.msra.mxu0 0
      %3942 = vmatpush.bf16.msra.mxu0 0
      %3943 = vmatpush.bf16.msra.mxu0 0
      %3944 = vmatpush.bf16.msra.mxu0 0
      %3945 = vmatpush.bf16.msra.mxu0 0
      %3946 = vmatpush.bf16.msra.mxu0 0
      %3947 = vmatpush.bf16.msra.mxu0 %v3890
      %3948 = vmatpush.bf16.msra.mxu0 %v3889
      %3949 = vmatmul.bf16.gmra.mxu0 %v3894
      %v3950 = vpop.f32.mrf.mxu0
      %v3951 = vadd.f32 0.0, %v3950
      %v3952 = vpop.f32.mrf.mxu0
      %v3953 = vadd.f32 0.0, %v3952
      %3954 = vmatmul.bf16.gmra.mxu0 %v3897
      %v3955 = vpop.f32.mrf.mxu0
      %v3956 = vadd.f32 0.0, %v3955
      %v3957 = vpop.f32.mrf.mxu0
      %v3958 = vadd.f32 0.0, %v3957
      %3959 = vmatmul.bf16.gmra.mxu0 %v3900
      %v3960 = vpop.f32.mrf.mxu0
      %v3961 = vadd.f32 0.0, %v3960
      %v3962 = vpop.f32.mrf.mxu0
      %v3963 = vadd.f32 0.0, %v3962
      %3964 = vmatmul.bf16.gmra.mxu0 %v3903
      %v3965 = vpop.f32.mrf.mxu0
      %v3966 = vadd.f32 0.0, %v3965
      %v3967 = vpop.f32.mrf.mxu0
      %v3968 = vadd.f32 0.0, %v3967
      %3969 = vmatmul.bf16.gmra.mxu0 %v3906
      %v3970 = vpop.f32.mrf.mxu0
      %v3971 = vadd.f32 0.0, %v3970
      %v3972 = vpop.f32.mrf.mxu0
      %v3973 = vadd.f32 0.0, %v3972
      %3974 = vmatmul.bf16.gmra.mxu0 %v3909
      %v3975 = vpop.f32.mrf.mxu0
      %v3976 = vadd.f32 0.0, %v3975
      %v3977 = vpop.f32.mrf.mxu0
      %v3978 = vadd.f32 0.0, %v3977
      %3979 = vmatmul.bf16.gmra.mxu0 %v3912
      %v3980 = vpop.f32.mrf.mxu0
      %v3981 = vadd.f32 0.0, %v3980
      %v3982 = vpop.f32.mrf.mxu0
      %v3983 = vadd.f32 0.0, %v3982
      %3984 = vmatmul.bf16.gmra.mxu0 %v3915
      %v3985 = vpop.f32.mrf.mxu0
      %v3986 = vadd.f32 0.0, %v3985
      %v3987 = vpop.f32.mrf.mxu0
      %v3988 = vadd.f32 0.0, %v3987
      %3989 = vmatmul.bf16.gmra.mxu0 %v3918
      %v3990 = vpop.f32.mrf.mxu0
      %v3991 = vadd.f32 0.0, %v3990
      %v3992 = vpop.f32.mrf.mxu0
      %v3993 = vadd.f32 0.0, %v3992
      %3994 = vmatmul.bf16.gmra.mxu0 %v3921
      %v3995 = vpop.f32.mrf.mxu0
      %v3996 = vadd.f32 0.0, %v3995
      %v3997 = vpop.f32.mrf.mxu0
      %v3998 = vadd.f32 0.0, %v3997
      %3999 = vmatmul.bf16.gmra.mxu0 %v3924
      %v4000 = vpop.f32.mrf.mxu0
      %v4001 = vadd.f32 0.0, %v4000
      %v4002 = vpop.f32.mrf.mxu0
      %v4003 = vadd.f32 0.0, %v4002
      %4004 = vmatmul.bf16.gmra.mxu0 %v3927
      %v4005 = vpop.f32.mrf.mxu0
      %v4006 = vadd.f32 0.0, %v4005
      %v4007 = vpop.f32.mrf.mxu0
      %v4008 = vadd.f32 0.0, %v4007
      %4009 = vmatmul.bf16.gmra.mxu0 %v3930
      %v4010 = vpop.f32.mrf.mxu0
      %v4011 = vadd.f32 0.0, %v4010
      %v4012 = vpop.f32.mrf.mxu0
      %v4013 = vadd.f32 0.0, %v4012
      %4014 = vmatmul.bf16.gmra.mxu0 %v3933
      %v4015 = vpop.f32.mrf.mxu0
      %v4016 = vadd.f32 0.0, %v4015
      %v4017 = vpop.f32.mrf.mxu0
      %v4018 = vadd.f32 0.0, %v4017
      %4019 = vmatmul.bf16.gmra.mxu0 %v3936
      %v4020 = vpop.f32.mrf.mxu0
      %v4021 = vadd.f32 0.0, %v4020
      %v4022 = vpop.f32.mrf.mxu0
      %v4023 = vadd.f32 0.0, %v4022
      %4024 = vmatmul.bf16.gmra.mxu0 %v3939
      %v4025 = vpop.f32.mrf.mxu0
      %v4026 = vadd.f32 0.0, %v4025
      %v4027 = vpop.f32.mrf.mxu0
      %v4028 = vadd.f32 0.0, %v4027
      %4029 = vdwg.mxu0
      %v4030 = vadd.f32 %v3795, %v3951
      %v4031 = vadd.f32 %v3796, %v3953
      %v4032 = vadd.f32 %v3797, %v3956
      %v4033 = vadd.f32 %v3798, %v3958
      %v4034 = vadd.f32 %v3799, %v3961
      %v4035 = vadd.f32 %v3800, %v3963
      %v4036 = vadd.f32 %v3801, %v3966
      %v4037 = vadd.f32 %v3802, %v3968
      %v4038 = vadd.f32 %v3803, %v3971
      %v4039 = vadd.f32 %v3804, %v3973
      %v4040 = vadd.f32 %v3805, %v3976
      %v4041 = vadd.f32 %v3806, %v3978
      %v4042 = vadd.f32 %v3807, %v3981
      %v4043 = vadd.f32 %v3808, %v3983
      %v4044 = vadd.f32 %v3809, %v3986
      %v4045 = vadd.f32 %v3810, %v3988
      %v4046 = vadd.f32 %v3811, %v3991
      %v4047 = vadd.f32 %v3812, %v3993
      %v4048 = vadd.f32 %v3813, %v3996
      %v4049 = vadd.f32 %v3814, %v3998
      %v4050 = vadd.f32 %v3815, %v4001
      %v4051 = vadd.f32 %v3816, %v4003
      %v4052 = vadd.f32 %v3817, %v4006
      %v4053 = vadd.f32 %v3818, %v4008
      %v4054 = vadd.f32 %v3819, %v4011
      %v4055 = vadd.f32 %v3820, %v4013
      %v4056 = vadd.f32 %v3821, %v4016
      %v4057 = vadd.f32 %v3822, %v4018
      %v4058 = vadd.f32 %v3823, %v4021
      %v4059 = vadd.f32 %v3824, %v4023
      %v4060 = vadd.f32 %v3825, %v4026
      %v4061 = vadd.f32 %v3826, %v4028
      %s4062 = scalar_lea.vmem %s3, 112
      %v4063 = vld [vmem:[%s4062] sm:$0xf]
      %v4064 = vld [vmem:[%s4062 + $0x4] sm:$0xf]
      %v4065 = vld [vmem:[%s4062 + $0x8] sm:$0xf]
      %v4066 = vld [vmem:[%s4062 + $0xc] sm:$0xf]
      %v4067 = vshrl.u32 %v2154, 16
      %v4069 = vor.u32 %v4067, %v3402
      %v4070 = vsel %vm2276, %v4069, %v2282
      %v4075 = vunpack.c.l.b16 %v4063
      %v4076 = vunpack.c.l.b16 %v4064
      %v4077 = vunpack.c.l.b16 %v4065
      %v4078 = vunpack.c.l.b16 %v4066
      %v4079 = vpack.c.b16 %v4076, %v4075
      %v4080 = vpack.c.b16 %v4078, %v4077
      %v4084 = vsel %vm614, %v4070, 0
      %4086 = vmatpush.bf16.msra.mxu0 0
      %4087 = vmatpush.bf16.msra.mxu0 0
      %4088 = vmatpush.bf16.msra.mxu0 0
      %4089 = vmatpush.bf16.msra.mxu0 0
      %4090 = vmatpush.bf16.msra.mxu0 0
      %4091 = vmatpush.bf16.msra.mxu0 0
      %4092 = vmatpush.bf16.msra.mxu0 %v4080
      %4093 = vmatpush.bf16.msra.mxu0 %v4079
      %4094 = vmatmul.bf16.gmra.mxu0 %v2428
      %v4095 = vpop.f32.mrf.mxu0
      %v4096 = vadd.f32 0.0, %v4095
      %v4097 = vpop.f32.mrf.mxu0
      %v4098 = vadd.f32 0.0, %v4097
      %4099 = vmatmul.bf16.gmra.mxu0 %v2431
      %v4100 = vpop.f32.mrf.mxu0
      %v4101 = vadd.f32 0.0, %v4100
      %v4102 = vpop.f32.mrf.mxu0
      %v4103 = vadd.f32 0.0, %v4102
      %4104 = vmatmul.bf16.gmra.mxu0 %v2434
      %v4105 = vpop.f32.mrf.mxu0
      %v4106 = vadd.f32 0.0, %v4105
      %v4107 = vpop.f32.mrf.mxu0
      %v4108 = vadd.f32 0.0, %v4107
      %4109 = vmatmul.bf16.gmra.mxu0 %v2437
      %v4110 = vpop.f32.mrf.mxu0
      %v4111 = vadd.f32 0.0, %v4110
      %v4112 = vpop.f32.mrf.mxu0
      %v4113 = vadd.f32 0.0, %v4112
      %4114 = vmatmul.bf16.gmra.mxu0 %v2440
      %v4115 = vpop.f32.mrf.mxu0
      %v4116 = vadd.f32 0.0, %v4115
      %v4117 = vpop.f32.mrf.mxu0
      %v4118 = vadd.f32 0.0, %v4117
      %4119 = vmatmul.bf16.gmra.mxu0 %v2443
      %v4120 = vpop.f32.mrf.mxu0
      %v4121 = vadd.f32 0.0, %v4120
      %v4122 = vpop.f32.mrf.mxu0
      %v4123 = vadd.f32 0.0, %v4122
      %4124 = vmatmul.bf16.gmra.mxu0 %v2446
      %v4125 = vpop.f32.mrf.mxu0
      %v4126 = vadd.f32 0.0, %v4125
      %v4127 = vpop.f32.mrf.mxu0
      %v4128 = vadd.f32 0.0, %v4127
      %4129 = vmatmul.bf16.gmra.mxu0 %v2449
      %v4130 = vpop.f32.mrf.mxu0
      %v4131 = vadd.f32 0.0, %v4130
      %v4132 = vpop.f32.mrf.mxu0
      %v4133 = vadd.f32 0.0, %v4132
      %4134 = vmatmul.bf16.gmra.mxu0 %v2452
      %v4135 = vpop.f32.mrf.mxu0
      %v4136 = vadd.f32 0.0, %v4135
      %v4137 = vpop.f32.mrf.mxu0
      %v4138 = vadd.f32 0.0, %v4137
      %4139 = vmatmul.bf16.gmra.mxu0 %v2455
      %v4140 = vpop.f32.mrf.mxu0
      %v4141 = vadd.f32 0.0, %v4140
      %v4142 = vpop.f32.mrf.mxu0
      %v4143 = vadd.f32 0.0, %v4142
      %4144 = vmatmul.bf16.gmra.mxu0 %v2458
      %v4145 = vpop.f32.mrf.mxu0
      %v4146 = vadd.f32 0.0, %v4145
      %v4147 = vpop.f32.mrf.mxu0
      %v4148 = vadd.f32 0.0, %v4147
      %4149 = vmatmul.bf16.gmra.mxu0 %v2461
      %v4150 = vpop.f32.mrf.mxu0
      %v4151 = vadd.f32 0.0, %v4150
      %v4152 = vpop.f32.mrf.mxu0
      %v4153 = vadd.f32 0.0, %v4152
      %4154 = vmatmul.bf16.gmra.mxu0 %v2464
      %v4155 = vpop.f32.mrf.mxu0
      %v4156 = vadd.f32 0.0, %v4155
      %v4157 = vpop.f32.mrf.mxu0
      %v4158 = vadd.f32 0.0, %v4157
      %4159 = vmatmul.bf16.gmra.mxu0 %v2467
      %v4160 = vpop.f32.mrf.mxu0
      %v4161 = vadd.f32 0.0, %v4160
      %v4162 = vpop.f32.mrf.mxu0
      %v4163 = vadd.f32 0.0, %v4162
      %4164 = vmatmul.bf16.gmra.mxu0 %v3417
      %v4165 = vpop.f32.mrf.mxu0
      %v4166 = vadd.f32 0.0, %v4165
      %v4167 = vpop.f32.mrf.mxu0
      %v4168 = vadd.f32 0.0, %v4167
      %4169 = vmatmul.bf16.gmra.mxu0 %v4084
      %v4170 = vpop.f32.mrf.mxu0
      %v4171 = vadd.f32 0.0, %v4170
      %v4172 = vpop.f32.mrf.mxu0
      %v4173 = vadd.f32 0.0, %v4172
      %4174 = vdwg.mxu0
      %v4175 = vadd.f32 %v4030, %v4096
      %v4176 = vadd.f32 %v4031, %v4098
      %v4177 = vadd.f32 %v4032, %v4101
      %v4178 = vadd.f32 %v4033, %v4103
      %v4179 = vadd.f32 %v4034, %v4106
      %v4180 = vadd.f32 %v4035, %v4108
      %v4181 = vadd.f32 %v4036, %v4111
      %v4182 = vadd.f32 %v4037, %v4113
      %v4183 = vadd.f32 %v4038, %v4116
      %v4184 = vadd.f32 %v4039, %v4118
      %v4185 = vadd.f32 %v4040, %v4121
      %v4186 = vadd.f32 %v4041, %v4123
      %v4187 = vadd.f32 %v4042, %v4126
      %v4188 = vadd.f32 %v4043, %v4128
      %v4189 = vadd.f32 %v4044, %v4131
      %v4190 = vadd.f32 %v4045, %v4133
      %v4191 = vadd.f32 %v4046, %v4136
      %v4192 = vadd.f32 %v4047, %v4138
      %v4193 = vadd.f32 %v4048, %v4141
      %v4194 = vadd.f32 %v4049, %v4143
      %v4195 = vadd.f32 %v4050, %v4146
      %v4196 = vadd.f32 %v4051, %v4148
      %v4197 = vadd.f32 %v4052, %v4151
      %v4198 = vadd.f32 %v4053, %v4153
      %v4199 = vadd.f32 %v4054, %v4156
      %v4200 = vadd.f32 %v4055, %v4158
      %v4201 = vadd.f32 %v4056, %v4161
      %v4202 = vadd.f32 %v4057, %v4163
      %v4203 = vadd.f32 %v4058, %v4166
      %v4204 = vadd.f32 %v4059, %v4168
      %v4205 = vadd.f32 %v4060, %v4171
      %v4206 = vadd.f32 %v4061, %v4173
      %v4207 = vmul.f32 %v2159, %v2773
      %v4208 = vmul.f32 %v2160, %v2775
      %v4209 = vmul.f32 %v2161, %v2777
      %v4210 = vmul.f32 %v2162, %v2779
      %v4211 = vmul.f32 %v2163, %v2781
      %v4212 = vmul.f32 %v2164, %v2783
      %v4213 = vmul.f32 %v2165, %v2785
      %v4214 = vmul.f32 %v2166, %v2787
      %v4215 = vmul.f32 %v2167, %v2789
      %v4216 = vmul.f32 %v2168, %v2791
      %v4217 = vmul.f32 %v2169, %v2793
      %v4218 = vmul.f32 %v2170, %v2795
      %v4219 = vmul.f32 %v2171, %v2797
      %v4220 = vmul.f32 %v2172, %v2799
      %v4221 = vmul.f32 %v2173, %v2801
      %v4222 = vmul.f32 %v2174, %v2803
      %v4223 = vmul.f32 %v2175, %v2805
      %v4224 = vmul.f32 %v2176, %v2807
      %v4225 = vmul.f32 %v2177, %v2809
      %v4226 = vmul.f32 %v2178, %v2811
      %v4227 = vmul.f32 %v2179, %v2813
      %v4228 = vmul.f32 %v2180, %v2815
      %v4229 = vmul.f32 %v2181, %v2817
      %v4230 = vmul.f32 %v2182, %v2819
      %v4231 = vmul.f32 %v2183, %v2821
      %v4232 = vmul.f32 %v2184, %v2823
      %v4233 = vmul.f32 %v2185, %v2825
      %v4234 = vmul.f32 %v2186, %v2827
      %v4235 = vmul.f32 %v2707, %v2829
      %v4236 = vmul.f32 %v3156, %v2831
      %v4237 = vmul.f32 %v3540, %v2833
      %v4238 = vmul.f32 %v3827, %v2835
      %v4239 = vmul.f32 %v2155, %v2834
      %v4240 = vpack.c.bf16 %v4208, %v4207
      %v4241 = vpack.c.bf16 %v4210, %v4209
      %v4242 = vpack.c.bf16 %v4212, %v4211
      %v4243 = vpack.c.bf16 %v4214, %v4213
      %v4244 = vpack.c.bf16 %v4216, %v4215
      %v4245 = vpack.c.bf16 %v4218, %v4217
      %v4246 = vpack.c.bf16 %v4220, %v4219
      %v4247 = vpack.c.bf16 %v4222, %v4221
      %v4248 = vpack.c.bf16 %v4224, %v4223
      %v4249 = vpack.c.bf16 %v4226, %v4225
      %v4250 = vpack.c.bf16 %v4228, %v4227
      %v4251 = vpack.c.bf16 %v4230, %v4229
      %v4252 = vpack.c.bf16 %v4232, %v4231
      %v4253 = vpack.c.bf16 %v4234, %v4233
      %v4254 = vpack.c.bf16 %v4236, %v4235
      %v4255 = vpack.c.bf16 %v4238, %v4237
      %v4256 = vpack.c.bf16 %v4239, %v4239
      %s4257 = scalar_lea.vmem %s3, 128
      %v4258 = vld [vmem:[%s4257] sm:$0xf]
      %v4259 = vld [vmem:[%s4257 + $0x4] sm:$0xf]
      %v4260 = vld [vmem:[%s4257 + $0x8] sm:$0xf]
      %v4261 = vld [vmem:[%s4257 + $0xc] sm:$0xf]
      %v4279 = vrot.slane %v4240, 1
      %v4280 = vrot.slane %v4241, 1
      %v4281 = vsel %vm2941, %v4279, %v4280
      %v4282 = vrot.slane %v4242, 1
      %v4283 = vsel %vm2941, %v4280, %v4282
      %v4284 = vrot.slane %v4243, 1
      %v4285 = vsel %vm2941, %v4282, %v4284
      %v4286 = vrot.slane %v4244, 1
      %v4287 = vsel %vm2941, %v4284, %v4286
      %v4288 = vrot.slane %v4245, 1
      %v4289 = vsel %vm2941, %v4286, %v4288
      %v4290 = vrot.slane %v4246, 1
      %v4291 = vsel %vm2941, %v4288, %v4290
      %v4292 = vrot.slane %v4247, 1
      %v4293 = vsel %vm2941, %v4290, %v4292
      %v4294 = vrot.slane %v4248, 1
      %v4295 = vsel %vm2941, %v4292, %v4294
      %v4296 = vrot.slane %v4249, 1
      %v4297 = vsel %vm2941, %v4294, %v4296
      %v4298 = vrot.slane %v4250, 1
      %v4299 = vsel %vm2941, %v4296, %v4298
      %v4300 = vrot.slane %v4251, 1
      %v4301 = vsel %vm2941, %v4298, %v4300
      %v4302 = vrot.slane %v4252, 1
      %v4303 = vsel %vm2941, %v4300, %v4302
      %v4304 = vrot.slane %v4253, 1
      %v4305 = vsel %vm2941, %v4302, %v4304
      %v4306 = vrot.slane %v4254, 1
      %v4307 = vsel %vm2941, %v4304, %v4306
      %v4308 = vrot.slane %v4255, 1
      %v4309 = vsel %vm2941, %v4306, %v4308
      %v4310 = vrot.slane %v4256, 1
      %v4311 = vsel %vm2941, %v4308, %v4310
      %v4316 = vunpack.c.l.b16 %v4258
      %v4317 = vunpack.c.l.b16 %v4259
      %v4318 = vunpack.c.l.b16 %v4260
      %v4319 = vunpack.c.l.b16 %v4261
      %v4320 = vpack.c.b16 %v4317, %v4316
      %v4321 = vpack.c.b16 %v4319, %v4318
      %v4325 = vsel %vm614, %v4281, 0
      %v4328 = vsel %vm614, %v4283, 0
      %v4331 = vsel %vm614, %v4285, 0
      %v4334 = vsel %vm614, %v4287, 0
      %v4337 = vsel %vm614, %v4289, 0
      %v4340 = vsel %vm614, %v4291, 0
      %v4343 = vsel %vm614, %v4293, 0
      %v4346 = vsel %vm614, %v4295, 0
      %v4349 = vsel %vm614, %v4297, 0
      %v4352 = vsel %vm614, %v4299, 0
      %v4355 = vsel %vm614, %v4301, 0
      %v4358 = vsel %vm614, %v4303, 0
      %v4361 = vsel %vm614, %v4305, 0
      %v4364 = vsel %vm614, %v4307, 0
      %v4367 = vsel %vm614, %v4309, 0
      %v4370 = vsel %vm614, %v4311, 0
      %4372 = vmatpush.bf16.msra.mxu0 0
      %4373 = vmatpush.bf16.msra.mxu0 0
      %4374 = vmatpush.bf16.msra.mxu0 0
      %4375 = vmatpush.bf16.msra.mxu0 0
      %4376 = vmatpush.bf16.msra.mxu0 0
      %4377 = vmatpush.bf16.msra.mxu0 0
      %4378 = vmatpush.bf16.msra.mxu0 %v4321
      %4379 = vmatpush.bf16.msra.mxu0 %v4320
      %4380 = vmatmul.bf16.gmra.mxu0 %v4325
      %v4381 = vpop.f32.mrf.mxu0
      %v4382 = vadd.f32 0.0, %v4381
      %v4383 = vpop.f32.mrf.mxu0
      %v4384 = vadd.f32 0.0, %v4383
      %4385 = vmatmul.bf16.gmra.mxu0 %v4328
      %v4386 = vpop.f32.mrf.mxu0
      %v4387 = vadd.f32 0.0, %v4386
      %v4388 = vpop.f32.mrf.mxu0
      %v4389 = vadd.f32 0.0, %v4388
      %4390 = vmatmul.bf16.gmra.mxu0 %v4331
      %v4391 = vpop.f32.mrf.mxu0
      %v4392 = vadd.f32 0.0, %v4391
      %v4393 = vpop.f32.mrf.mxu0
      %v4394 = vadd.f32 0.0, %v4393
      %4395 = vmatmul.bf16.gmra.mxu0 %v4334
      %v4396 = vpop.f32.mrf.mxu0
      %v4397 = vadd.f32 0.0, %v4396
      %v4398 = vpop.f32.mrf.mxu0
      %v4399 = vadd.f32 0.0, %v4398
      %4400 = vmatmul.bf16.gmra.mxu0 %v4337
      %v4401 = vpop.f32.mrf.mxu0
      %v4402 = vadd.f32 0.0, %v4401
      %v4403 = vpop.f32.mrf.mxu0
      %v4404 = vadd.f32 0.0, %v4403
      %4405 = vmatmul.bf16.gmra.mxu0 %v4340
      %v4406 = vpop.f32.mrf.mxu0
      %v4407 = vadd.f32 0.0, %v4406
      %v4408 = vpop.f32.mrf.mxu0
      %v4409 = vadd.f32 0.0, %v4408
      %4410 = vmatmul.bf16.gmra.mxu0 %v4343
      %v4411 = vpop.f32.mrf.mxu0
      %v4412 = vadd.f32 0.0, %v4411
      %v4413 = vpop.f32.mrf.mxu0
      %v4414 = vadd.f32 0.0, %v4413
      %4415 = vmatmul.bf16.gmra.mxu0 %v4346
      %v4416 = vpop.f32.mrf.mxu0
      %v4417 = vadd.f32 0.0, %v4416
      %v4418 = vpop.f32.mrf.mxu0
      %v4419 = vadd.f32 0.0, %v4418
      %4420 = vmatmul.bf16.gmra.mxu0 %v4349
      %v4421 = vpop.f32.mrf.mxu0
      %v4422 = vadd.f32 0.0, %v4421
      %v4423 = vpop.f32.mrf.mxu0
      %v4424 = vadd.f32 0.0, %v4423
      %4425 = vmatmul.bf16.gmra.mxu0 %v4352
      %v4426 = vpop.f32.mrf.mxu0
      %v4427 = vadd.f32 0.0, %v4426
      %v4428 = vpop.f32.mrf.mxu0
      %v4429 = vadd.f32 0.0, %v4428
      %4430 = vmatmul.bf16.gmra.mxu0 %v4355
      %v4431 = vpop.f32.mrf.mxu0
      %v4432 = vadd.f32 0.0, %v4431
      %v4433 = vpop.f32.mrf.mxu0
      %v4434 = vadd.f32 0.0, %v4433
      %4435 = vmatmul.bf16.gmra.mxu0 %v4358
      %v4436 = vpop.f32.mrf.mxu0
      %v4437 = vadd.f32 0.0, %v4436
      %v4438 = vpop.f32.mrf.mxu0
      %v4439 = vadd.f32 0.0, %v4438
      %4440 = vmatmul.bf16.gmra.mxu0 %v4361
      %v4441 = vpop.f32.mrf.mxu0
      %v4442 = vadd.f32 0.0, %v4441
      %v4443 = vpop.f32.mrf.mxu0
      %v4444 = vadd.f32 0.0, %v4443
      %4445 = vmatmul.bf16.gmra.mxu0 %v4364
      %v4446 = vpop.f32.mrf.mxu0
      %v4447 = vadd.f32 0.0, %v4446
      %v4448 = vpop.f32.mrf.mxu0
      %v4449 = vadd.f32 0.0, %v4448
      %4450 = vmatmul.bf16.gmra.mxu0 %v4367
      %v4451 = vpop.f32.mrf.mxu0
      %v4452 = vadd.f32 0.0, %v4451
      %v4453 = vpop.f32.mrf.mxu0
      %v4454 = vadd.f32 0.0, %v4453
      %4455 = vmatmul.bf16.gmra.mxu0 %v4370
      %v4456 = vpop.f32.mrf.mxu0
      %v4457 = vadd.f32 0.0, %v4456
      %v4458 = vpop.f32.mrf.mxu0
      %v4459 = vadd.f32 0.0, %v4458
      %4460 = vdwg.mxu0
      %v4461 = vadd.f32 %v4175, %v4382
      %v4462 = vadd.f32 %v4176, %v4384
      %v4463 = vadd.f32 %v4177, %v4387
      %v4464 = vadd.f32 %v4178, %v4389
      %v4465 = vadd.f32 %v4179, %v4392
      %v4466 = vadd.f32 %v4180, %v4394
      %v4467 = vadd.f32 %v4181, %v4397
      %v4468 = vadd.f32 %v4182, %v4399
      %v4469 = vadd.f32 %v4183, %v4402
      %v4470 = vadd.f32 %v4184, %v4404
      %v4471 = vadd.f32 %v4185, %v4407
      %v4472 = vadd.f32 %v4186, %v4409
      %v4473 = vadd.f32 %v4187, %v4412
      %v4474 = vadd.f32 %v4188, %v4414
      %v4475 = vadd.f32 %v4189, %v4417
      %v4476 = vadd.f32 %v4190, %v4419
      %v4477 = vadd.f32 %v4191, %v4422
      %v4478 = vadd.f32 %v4192, %v4424
      %v4479 = vadd.f32 %v4193, %v4427
      %v4480 = vadd.f32 %v4194, %v4429
      %v4481 = vadd.f32 %v4195, %v4432
      %v4482 = vadd.f32 %v4196, %v4434
      %v4483 = vadd.f32 %v4197, %v4437
      %v4484 = vadd.f32 %v4198, %v4439
      %v4485 = vadd.f32 %v4199, %v4442
      %v4486 = vadd.f32 %v4200, %v4444
      %v4487 = vadd.f32 %v4201, %v4447
      %v4488 = vadd.f32 %v4202, %v4449
      %v4489 = vadd.f32 %v4203, %v4452
      %v4490 = vadd.f32 %v4204, %v4454
      %v4491 = vadd.f32 %v4205, %v4457
      %v4492 = vadd.f32 %v4206, %v4459
      %v4493 = vld [vmem:[%s7] sm:$0x1]
      %v4494 = vld [vmem:[%s8] sm:$0x1]
      %v4495 = vsel %vm614, %v4461, 0.0
      %v4496 = vsel %vm614, %v4462, 0.0
      %v4497 = vadd.f32 %v4495, %v4496
      %v4498 = vsel %vm614, %v4463, 0.0
      %v4499 = vadd.f32 %v4497, %v4498
      %v4500 = vsel %vm614, %v4464, 0.0
      %v4501 = vadd.f32 %v4499, %v4500
      %v4502 = vsel %vm614, %v4465, 0.0
      %v4503 = vadd.f32 %v4501, %v4502
      %v4504 = vsel %vm614, %v4466, 0.0
      %v4505 = vadd.f32 %v4503, %v4504
      %v4506 = vsel %vm614, %v4467, 0.0
      %v4507 = vadd.f32 %v4505, %v4506
      %v4508 = vsel %vm614, %v4468, 0.0
      %v4509 = vadd.f32 %v4507, %v4508
      %v4510 = vsel %vm614, %v4469, 0.0
      %v4511 = vadd.f32 %v4509, %v4510
      %v4512 = vsel %vm614, %v4470, 0.0
      %v4513 = vadd.f32 %v4511, %v4512
      %v4514 = vsel %vm614, %v4471, 0.0
      %v4515 = vadd.f32 %v4513, %v4514
      %v4516 = vsel %vm614, %v4472, 0.0
      %v4517 = vadd.f32 %v4515, %v4516
      %v4518 = vsel %vm614, %v4473, 0.0
      %v4519 = vadd.f32 %v4517, %v4518
      %v4520 = vsel %vm614, %v4474, 0.0
      %v4521 = vadd.f32 %v4519, %v4520
      %v4522 = vsel %vm614, %v4475, 0.0
      %v4523 = vadd.f32 %v4521, %v4522
      %v4524 = vsel %vm614, %v4476, 0.0
      %v4525 = vadd.f32 %v4523, %v4524
      %v4526 = vsel %vm614, %v4477, 0.0
      %v4527 = vadd.f32 %v4525, %v4526
      %v4528 = vsel %vm614, %v4478, 0.0
      %v4529 = vadd.f32 %v4527, %v4528
      %v4530 = vsel %vm614, %v4479, 0.0
      %v4531 = vadd.f32 %v4529, %v4530
      %v4532 = vsel %vm614, %v4480, 0.0
      %v4533 = vadd.f32 %v4531, %v4532
      %v4534 = vsel %vm614, %v4481, 0.0
      %v4535 = vadd.f32 %v4533, %v4534
      %v4536 = vsel %vm614, %v4482, 0.0
      %v4537 = vadd.f32 %v4535, %v4536
      %v4538 = vsel %vm614, %v4483, 0.0
      %v4539 = vadd.f32 %v4537, %v4538
      %v4540 = vsel %vm614, %v4484, 0.0
      %v4541 = vadd.f32 %v4539, %v4540
      %v4542 = vsel %vm614, %v4485, 0.0
      %v4543 = vadd.f32 %v4541, %v4542
      %v4544 = vsel %vm614, %v4486, 0.0
      %v4545 = vadd.f32 %v4543, %v4544
      %v4546 = vsel %vm614, %v4487, 0.0
      %v4547 = vadd.f32 %v4545, %v4546
      %v4548 = vsel %vm614, %v4488, 0.0
      %v4549 = vadd.f32 %v4547, %v4548
      %v4550 = vsel %vm614, %v4489, 0.0
      %v4551 = vadd.f32 %v4549, %v4550
      %v4552 = vsel %vm614, %v4490, 0.0
      %v4553 = vadd.f32 %v4551, %v4552
      %v4554 = vsel %vm614, %v4491, 0.0
      %v4555 = vadd.f32 %v4553, %v4554
      %v4556 = vsel %vm614, %v4492, 0.0
      %v4557 = vadd.f32 %v4555, %v4556
      %v4558 = vrot.slane %v4557, 4
      %v4559 = vadd.f32 %v4557, %v4558
      %v4560 = vrot.slane %v4559, 2
      %v4561 = vadd.f32 %v4559, %v4560
      %v4562 = vrot.slane %v4561, 1
      %v4563 = vadd.f32 %v4561, %v4562
      %v4564 = vmul.f32 %v4563, %v942
      %v4565 = vmul.f32 %v4461, %v4461
      %v4566 = vmul.f32 %v4462, %v4462
      %v4567 = vmul.f32 %v4463, %v4463
      %v4568 = vmul.f32 %v4464, %v4464
      %v4569 = vmul.f32 %v4465, %v4465
      %v4570 = vmul.f32 %v4466, %v4466
      %v4571 = vmul.f32 %v4467, %v4467
      %v4572 = vmul.f32 %v4468, %v4468
      %v4573 = vmul.f32 %v4469, %v4469
      %v4574 = vmul.f32 %v4470, %v4470
      %v4575 = vmul.f32 %v4471, %v4471
      %v4576 = vmul.f32 %v4472, %v4472
      %v4577 = vmul.f32 %v4473, %v4473
      %v4578 = vmul.f32 %v4474, %v4474
      %v4579 = vmul.f32 %v4475, %v4475
      %v4580 = vmul.f32 %v4476, %v4476
      %v4581 = vmul.f32 %v4477, %v4477
      %v4582 = vmul.f32 %v4478, %v4478
      %v4583 = vmul.f32 %v4479, %v4479
      %v4584 = vmul.f32 %v4480, %v4480
      %v4585 = vmul.f32 %v4481, %v4481
      %v4586 = vmul.f32 %v4482, %v4482
      %v4587 = vmul.f32 %v4483, %v4483
      %v4588 = vmul.f32 %v4484, %v4484
      %v4589 = vmul.f32 %v4485, %v4485
      %v4590 = vmul.f32 %v4486, %v4486
      %v4591 = vmul.f32 %v4487, %v4487
      %v4592 = vmul.f32 %v4488, %v4488
      %v4593 = vmul.f32 %v4489, %v4489
      %v4594 = vmul.f32 %v4490, %v4490
      %v4595 = vmul.f32 %v4491, %v4491
      %v4596 = vmul.f32 %v4492, %v4492
      %v4597 = vsel %vm614, %v4565, 0.0
      %v4598 = vsel %vm614, %v4566, 0.0
      %v4599 = vadd.f32 %v4597, %v4598
      %v4600 = vsel %vm614, %v4567, 0.0
      %v4601 = vadd.f32 %v4599, %v4600
      %v4602 = vsel %vm614, %v4568, 0.0
      %v4603 = vadd.f32 %v4601, %v4602
      %v4604 = vsel %vm614, %v4569, 0.0
      %v4605 = vadd.f32 %v4603, %v4604
      %v4606 = vsel %vm614, %v4570, 0.0
      %v4607 = vadd.f32 %v4605, %v4606
      %v4608 = vsel %vm614, %v4571, 0.0
      %v4609 = vadd.f32 %v4607, %v4608
      %v4610 = vsel %vm614, %v4572, 0.0
      %v4611 = vadd.f32 %v4609, %v4610
      %v4612 = vsel %vm614, %v4573, 0.0
      %v4613 = vadd.f32 %v4611, %v4612
      %v4614 = vsel %vm614, %v4574, 0.0
      %v4615 = vadd.f32 %v4613, %v4614
      %v4616 = vsel %vm614, %v4575, 0.0
      %v4617 = vadd.f32 %v4615, %v4616
      %v4618 = vsel %vm614, %v4576, 0.0
      %v4619 = vadd.f32 %v4617, %v4618
      %v4620 = vsel %vm614, %v4577, 0.0
      %v4621 = vadd.f32 %v4619, %v4620
      %v4622 = vsel %vm614, %v4578, 0.0
      %v4623 = vadd.f32 %v4621, %v4622
      %v4624 = vsel %vm614, %v4579, 0.0
      %v4625 = vadd.f32 %v4623, %v4624
      %v4626 = vsel %vm614, %v4580, 0.0
      %v4627 = vadd.f32 %v4625, %v4626
      %v4628 = vsel %vm614, %v4581, 0.0
      %v4629 = vadd.f32 %v4627, %v4628
      %v4630 = vsel %vm614, %v4582, 0.0
      %v4631 = vadd.f32 %v4629, %v4630
      %v4632 = vsel %vm614, %v4583, 0.0
      %v4633 = vadd.f32 %v4631, %v4632
      %v4634 = vsel %vm614, %v4584, 0.0
      %v4635 = vadd.f32 %v4633, %v4634
      %v4636 = vsel %vm614, %v4585, 0.0
      %v4637 = vadd.f32 %v4635, %v4636
      %v4638 = vsel %vm614, %v4586, 0.0
      %v4639 = vadd.f32 %v4637, %v4638
      %v4640 = vsel %vm614, %v4587, 0.0
      %v4641 = vadd.f32 %v4639, %v4640
      %v4642 = vsel %vm614, %v4588, 0.0
      %v4643 = vadd.f32 %v4641, %v4642
      %v4644 = vsel %vm614, %v4589, 0.0
      %v4645 = vadd.f32 %v4643, %v4644
      %v4646 = vsel %vm614, %v4590, 0.0
      %v4647 = vadd.f32 %v4645, %v4646
      %v4648 = vsel %vm614, %v4591, 0.0
      %v4649 = vadd.f32 %v4647, %v4648
      %v4650 = vsel %vm614, %v4592, 0.0
      %v4651 = vadd.f32 %v4649, %v4650
      %v4652 = vsel %vm614, %v4593, 0.0
      %v4653 = vadd.f32 %v4651, %v4652
      %v4654 = vsel %vm614, %v4594, 0.0
      %v4655 = vadd.f32 %v4653, %v4654
      %v4656 = vsel %vm614, %v4595, 0.0
      %v4657 = vadd.f32 %v4655, %v4656
      %v4658 = vsel %vm614, %v4596, 0.0
      %v4659 = vadd.f32 %v4657, %v4658
      %v4660 = vrot.slane %v4659, 4
      %v4661 = vadd.f32 %v4659, %v4660
      %v4662 = vrot.slane %v4661, 2
      %v4663 = vadd.f32 %v4661, %v4662
      %v4664 = vrot.slane %v4663, 1
      %v4665 = vadd.f32 %v4663, %v4664
      %v4666 = vmul.f32 %v4665, %v942
      %v4667 = vsel %vm1046, %v4564, %v4666
      %v4669 = vsel %vm614, %v4667, 0
      %4671 = vmatpush.msra.mxu0 0.0
      %4672 = vmatpush.msra.mxu0 0.0
      %4673 = vmatpush.msra.mxu0 0.0
      %4674 = vmatpush.msra.mxu0 0.0
      %4675 = vmatpush.msra.mxu0 0.0
      %4676 = vmatpush.msra.mxu0 0.0
      %4677 = vmatpush.msra.mxu0 0.0
      %4678 = vmatpush.msra.mxu0 0.0
      %4679 = vmatpush.msra.mxu0 0.0
      %4680 = vmatpush.msra.mxu0 0.0
      %4681 = vmatpush.msra.mxu0 0.0
      %4682 = vmatpush.msra.mxu0 0.0
      %4683 = vmatpush.msra.mxu0 %v862
      %4684 = vmatpush.msra.mxu0 %v861
      %4685 = vmatpush.msra.mxu0 %v860
      %4686 = vmatpush.msra.mxu0 %v859
      %4687 = vmatmul.f32.gmra.mxu0 %v4669
      %v4688 = vpop.f32.mrf.mxu0
      %v4689 = vadd.f32 0.0, %v4688
      %4690 = vdwg.mxu0
      %v4692 = vsel %vm614, %v4689, 0
      %4694 = vmatpush.msra.mxu0 0.0
      %4695 = vmatpush.msra.mxu0 0.0
      %4696 = vmatpush.msra.mxu0 0.0
      %4697 = vmatpush.msra.mxu0 0.0
      %4698 = vmatpush.msra.mxu0 0.0
      %4699 = vmatpush.msra.mxu0 0.0
      %4700 = vmatpush.msra.mxu0 0.0
      %4701 = vmatpush.msra.mxu0 0.0
      %4702 = vmatpush.msra.mxu0 0.0
      %4703 = vmatpush.msra.mxu0 0.0
      %4704 = vmatpush.msra.mxu0 0.0
      %4705 = vmatpush.msra.mxu0 0.0
      %4706 = vmatpush.msra.mxu0 %v866
      %4707 = vmatpush.msra.mxu0 %v865
      %4708 = vmatpush.msra.mxu0 %v864
      %4709 = vmatpush.msra.mxu0 %v863
      %4710 = vmatmul.f32.gmra.mxu0 %v4692
      %v4711 = vpop.f32.mrf.mxu0
      %v4712 = vadd.f32 0.0, %v4711
      %4713 = vdwg.mxu0
      %v4714 = vmul.f32 %v4712, %v4712
      %v4716 = vrot.slane %v4714, 7
      %v4718 = vsub.f32 %v4712, %v4716
      %v4719 = vmax.f32 %v4718, 0.0
      %v4720 = vadd.f32 %v4719, 1e-05
      %v4721 = vrsqrt.pop %v4720
      %v4722 = vmul.f32 %v4721, %v4720
      %v4723 = vmul.f32 %v4722, %v4721
      %v4724 = vmul.f32 0.5, %v4723
      %v4725 = vsub.f32 1.5, %v4724
      %v4726 = vmul.f32 %v4721, %v4725
      %vm4727 = vweird.f32 %v4720
      %vm4728 = vweird.f32 %v4721
      %vm4729 = vmor %vm4727, %vm4728
      %v4730 = vsel %vm4729, %v4721, %v4726
      %4732 = vst [vmem:[#allocation1] sm:$0xff] %v4730
      %s4733 = scalar_lea.vmem [#allocation1], 1
      %v4734 = vld [vmem:[%s4733] ss:$9 sm:$0xff]
      %v4736 = vmul.f32 %v4493, %v4734
      %v4737 = vmul.f32 %v4712, %v4736
      %v4738 = vsub.f32 %v4494, %v4737
      %v4740 = vperm.slane %v4736, 0
      %v4742 = vmul.f32 %v4461, %v4740
      %v4743 = vmul.f32 %v4462, %v4740
      %v4744 = vmul.f32 %v4463, %v4740
      %v4745 = vmul.f32 %v4464, %v4740
      %v4746 = vmul.f32 %v4465, %v4740
      %v4747 = vmul.f32 %v4466, %v4740
      %v4748 = vmul.f32 %v4467, %v4740
      %v4749 = vmul.f32 %v4468, %v4740
      %v4750 = vmul.f32 %v4469, %v4740
      %v4751 = vmul.f32 %v4470, %v4740
      %v4752 = vmul.f32 %v4471, %v4740
      %v4753 = vmul.f32 %v4472, %v4740
      %v4754 = vmul.f32 %v4473, %v4740
      %v4755 = vmul.f32 %v4474, %v4740
      %v4756 = vmul.f32 %v4475, %v4740
      %v4757 = vmul.f32 %v4476, %v4740
      %v4758 = vmul.f32 %v4477, %v4740
      %v4759 = vmul.f32 %v4478, %v4740
      %v4760 = vmul.f32 %v4479, %v4740
      %v4761 = vmul.f32 %v4480, %v4740
      %v4762 = vmul.f32 %v4481, %v4740
      %v4763 = vmul.f32 %v4482, %v4740
      %v4764 = vmul.f32 %v4483, %v4740
      %v4765 = vmul.f32 %v4484, %v4740
      %v4766 = vmul.f32 %v4485, %v4740
      %v4767 = vmul.f32 %v4486, %v4740
      %v4768 = vmul.f32 %v4487, %v4740
      %v4769 = vmul.f32 %v4488, %v4740
      %v4770 = vmul.f32 %v4489, %v4740
      %v4771 = vmul.f32 %v4490, %v4740
      %v4772 = vmul.f32 %v4491, %v4740
      %v4773 = vmul.f32 %v4492, %v4740
      %v4775 = vperm.slane %v4738, 0
      %v4777 = vadd.f32 %v4742, %v4775
      %v4778 = vadd.f32 %v4743, %v4775
      %v4779 = vadd.f32 %v4744, %v4775
      %v4780 = vadd.f32 %v4745, %v4775
      %v4781 = vadd.f32 %v4746, %v4775
      %v4782 = vadd.f32 %v4747, %v4775
      %v4783 = vadd.f32 %v4748, %v4775
      %v4784 = vadd.f32 %v4749, %v4775
      %v4785 = vadd.f32 %v4750, %v4775
      %v4786 = vadd.f32 %v4751, %v4775
      %v4787 = vadd.f32 %v4752, %v4775
      %v4788 = vadd.f32 %v4753, %v4775
      %v4789 = vadd.f32 %v4754, %v4775
      %v4790 = vadd.f32 %v4755, %v4775
      %v4791 = vadd.f32 %v4756, %v4775
      %v4792 = vadd.f32 %v4757, %v4775
      %v4793 = vadd.f32 %v4758, %v4775
      %v4794 = vadd.f32 %v4759, %v4775
      %v4795 = vadd.f32 %v4760, %v4775
      %v4796 = vadd.f32 %v4761, %v4775
      %v4797 = vadd.f32 %v4762, %v4775
      %v4798 = vadd.f32 %v4763, %v4775
      %v4799 = vadd.f32 %v4764, %v4775
      %v4800 = vadd.f32 %v4765, %v4775
      %v4801 = vadd.f32 %v4766, %v4775
      %v4802 = vadd.f32 %v4767, %v4775
      %v4803 = vadd.f32 %v4768, %v4775
      %v4804 = vadd.f32 %v4769, %v4775
      %v4805 = vadd.f32 %v4770, %v4775
      %v4806 = vadd.f32 %v4771, %v4775
      %v4807 = vadd.f32 %v4772, %v4775
      %v4808 = vadd.f32 %v4773, %v4775
      %v4809 = vmax.f32 %v4777, 0.0
      %v4810 = vmax.f32 %v4778, 0.0
      %v4811 = vmax.f32 %v4779, 0.0
      %v4812 = vmax.f32 %v4780, 0.0
      %v4813 = vmax.f32 %v4781, 0.0
      %v4814 = vmax.f32 %v4782, 0.0
      %v4815 = vmax.f32 %v4783, 0.0
      %v4816 = vmax.f32 %v4784, 0.0
      %v4817 = vmax.f32 %v4785, 0.0
      %v4818 = vmax.f32 %v4786, 0.0
      %v4819 = vmax.f32 %v4787, 0.0
      %v4820 = vmax.f32 %v4788, 0.0
      %v4821 = vmax.f32 %v4789, 0.0
      %v4822 = vmax.f32 %v4790, 0.0
      %v4823 = vmax.f32 %v4791, 0.0
      %v4824 = vmax.f32 %v4792, 0.0
      %v4825 = vmax.f32 %v4793, 0.0
      %v4826 = vmax.f32 %v4794, 0.0
      %v4827 = vmax.f32 %v4795, 0.0
      %v4828 = vmax.f32 %v4796, 0.0
      %v4829 = vmax.f32 %v4797, 0.0
      %v4830 = vmax.f32 %v4798, 0.0
      %v4831 = vmax.f32 %v4799, 0.0
      %v4832 = vmax.f32 %v4800, 0.0
      %v4833 = vmax.f32 %v4801, 0.0
      %v4834 = vmax.f32 %v4802, 0.0
      %v4835 = vmax.f32 %v4803, 0.0
      %v4836 = vmax.f32 %v4804, 0.0
      %v4837 = vmax.f32 %v4805, 0.0
      %v4838 = vmax.f32 %v4806, 0.0
      %v4839 = vmax.f32 %v4807, 0.0
      %v4840 = vmax.f32 %v4808, 0.0
      %v4841 = vpack.c.bf16 %v4810, %v4809
      %v4842 = vpack.c.bf16 %v4812, %v4811
      %v4843 = vpack.c.bf16 %v4814, %v4813
      %v4844 = vpack.c.bf16 %v4816, %v4815
      %v4845 = vpack.c.bf16 %v4818, %v4817
      %v4846 = vpack.c.bf16 %v4820, %v4819
      %v4847 = vpack.c.bf16 %v4822, %v4821
      %v4848 = vpack.c.bf16 %v4824, %v4823
      %v4849 = vpack.c.bf16 %v4826, %v4825
      %v4850 = vpack.c.bf16 %v4828, %v4827
      %v4851 = vpack.c.bf16 %v4830, %v4829
      %v4852 = vpack.c.bf16 %v4832, %v4831
      %v4853 = vpack.c.bf16 %v4834, %v4833
      %v4854 = vpack.c.bf16 %v4836, %v4835
      %v4855 = vpack.c.bf16 %v4838, %v4837
      %v4856 = vpack.c.bf16 %v4840, %v4839
      %v4857 = vld [vmem:[%s4] sm:$0xf]
      %v4858 = vld [vmem:[%s4 + $0x4] sm:$0xf]
      %v4859 = vld [vmem:[%s4 + $0x8] sm:$0xf]
      %v4860 = vld [vmem:[%s4 + $0xc] sm:$0xf]
      %v4865 = vunpack.c.l.b16 %v4857
      %v4866 = vunpack.c.l.b16 %v4858
      %v4867 = vunpack.c.l.b16 %v4859
      %v4868 = vunpack.c.l.b16 %v4860
      %v4869 = vpack.c.b16 %v4866, %v4865
      %v4870 = vpack.c.b16 %v4868, %v4867
      %v4874 = vsel %vm614, %v4841, 0
      %v4877 = vsel %vm614, %v4842, 0
      %v4880 = vsel %vm614, %v4843, 0
      %v4883 = vsel %vm614, %v4844, 0
      %v4886 = vsel %vm614, %v4845, 0
      %v4889 = vsel %vm614, %v4846, 0
      %v4892 = vsel %vm614, %v4847, 0
      %v4895 = vsel %vm614, %v4848, 0
      %v4898 = vsel %vm614, %v4849, 0
      %v4901 = vsel %vm614, %v4850, 0
      %v4904 = vsel %vm614, %v4851, 0
      %v4907 = vsel %vm614, %v4852, 0
      %v4910 = vsel %vm614, %v4853, 0
      %v4913 = vsel %vm614, %v4854, 0
      %v4916 = vsel %vm614, %v4855, 0
      %v4919 = vsel %vm614, %v4856, 0
      %4921 = vmatpush.bf16.msra.mxu0 0
      %4922 = vmatpush.bf16.msra.mxu0 0
      %4923 = vmatpush.bf16.msra.mxu0 0
      %4924 = vmatpush.bf16.msra.mxu0 0
      %4925 = vmatpush.bf16.msra.mxu0 0
      %4926 = vmatpush.bf16.msra.mxu0 0
      %4927 = vmatpush.bf16.msra.mxu0 %v4870
      %4928 = vmatpush.bf16.msra.mxu0 %v4869
      %4929 = vmatmul.bf16.gmra.mxu0 %v4874
      %v4930 = vpop.f32.mrf.mxu0
      %v4931 = vadd.f32 0.0, %v4930
      %v4932 = vpop.f32.mrf.mxu0
      %v4933 = vadd.f32 0.0, %v4932
      %4934 = vmatmul.bf16.gmra.mxu0 %v4877
      %v4935 = vpop.f32.mrf.mxu0
      %v4936 = vadd.f32 0.0, %v4935
      %v4937 = vpop.f32.mrf.mxu0
      %v4938 = vadd.f32 0.0, %v4937
      %4939 = vmatmul.bf16.gmra.mxu0 %v4880
      %v4940 = vpop.f32.mrf.mxu0
      %v4941 = vadd.f32 0.0, %v4940
      %v4942 = vpop.f32.mrf.mxu0
      %v4943 = vadd.f32 0.0, %v4942
      %4944 = vmatmul.bf16.gmra.mxu0 %v4883
      %v4945 = vpop.f32.mrf.mxu0
      %v4946 = vadd.f32 0.0, %v4945
      %v4947 = vpop.f32.mrf.mxu0
      %v4948 = vadd.f32 0.0, %v4947
      %4949 = vmatmul.bf16.gmra.mxu0 %v4886
      %v4950 = vpop.f32.mrf.mxu0
      %v4951 = vadd.f32 0.0, %v4950
      %v4952 = vpop.f32.mrf.mxu0
      %v4953 = vadd.f32 0.0, %v4952
      %4954 = vmatmul.bf16.gmra.mxu0 %v4889
      %v4955 = vpop.f32.mrf.mxu0
      %v4956 = vadd.f32 0.0, %v4955
      %v4957 = vpop.f32.mrf.mxu0
      %v4958 = vadd.f32 0.0, %v4957
      %4959 = vmatmul.bf16.gmra.mxu0 %v4892
      %v4960 = vpop.f32.mrf.mxu0
      %v4961 = vadd.f32 0.0, %v4960
      %v4962 = vpop.f32.mrf.mxu0
      %v4963 = vadd.f32 0.0, %v4962
      %4964 = vmatmul.bf16.gmra.mxu0 %v4895
      %v4965 = vpop.f32.mrf.mxu0
      %v4966 = vadd.f32 0.0, %v4965
      %v4967 = vpop.f32.mrf.mxu0
      %v4968 = vadd.f32 0.0, %v4967
      %4969 = vmatmul.bf16.gmra.mxu0 %v4898
      %v4970 = vpop.f32.mrf.mxu0
      %v4971 = vadd.f32 0.0, %v4970
      %v4972 = vpop.f32.mrf.mxu0
      %v4973 = vadd.f32 0.0, %v4972
      %4974 = vmatmul.bf16.gmra.mxu0 %v4901
      %v4975 = vpop.f32.mrf.mxu0
      %v4976 = vadd.f32 0.0, %v4975
      %v4977 = vpop.f32.mrf.mxu0
      %v4978 = vadd.f32 0.0, %v4977
      %4979 = vmatmul.bf16.gmra.mxu0 %v4904
      %v4980 = vpop.f32.mrf.mxu0
      %v4981 = vadd.f32 0.0, %v4980
      %v4982 = vpop.f32.mrf.mxu0
      %v4983 = vadd.f32 0.0, %v4982
      %4984 = vmatmul.bf16.gmra.mxu0 %v4907
      %v4985 = vpop.f32.mrf.mxu0
      %v4986 = vadd.f32 0.0, %v4985
      %v4987 = vpop.f32.mrf.mxu0
      %v4988 = vadd.f32 0.0, %v4987
      %4989 = vmatmul.bf16.gmra.mxu0 %v4910
      %v4990 = vpop.f32.mrf.mxu0
      %v4991 = vadd.f32 0.0, %v4990
      %v4992 = vpop.f32.mrf.mxu0
      %v4993 = vadd.f32 0.0, %v4992
      %4994 = vmatmul.bf16.gmra.mxu0 %v4913
      %v4995 = vpop.f32.mrf.mxu0
      %v4996 = vadd.f32 0.0, %v4995
      %v4997 = vpop.f32.mrf.mxu0
      %v4998 = vadd.f32 0.0, %v4997
      %4999 = vmatmul.bf16.gmra.mxu0 %v4916
      %v5000 = vpop.f32.mrf.mxu0
      %v5001 = vadd.f32 0.0, %v5000
      %v5002 = vpop.f32.mrf.mxu0
      %v5003 = vadd.f32 0.0, %v5002
      %5004 = vmatmul.bf16.gmra.mxu0 %v4919
      %v5005 = vpop.f32.mrf.mxu0
      %v5006 = vadd.f32 0.0, %v5005
      %v5007 = vpop.f32.mrf.mxu0
      %v5008 = vadd.f32 0.0, %v5007
      %5009 = vdwg.mxu0
      %vm5010 = vcmask 523264
      %v5011 = vsel %vm5010, %v4931, 0.0
      %v5012 = vsel %vm5010, %v4933, 0.0
      %v5013 = vadd.f32 %v5011, %v5012
      %v5014 = vsel %vm5010, %v4936, 0.0
      %v5015 = vadd.f32 %v5013, %v5014
      %v5016 = vsel %vm5010, %v4938, 0.0
      %v5017 = vadd.f32 %v5015, %v5016
      %v5018 = vsel %vm5010, %v4941, 0.0
      %v5019 = vadd.f32 %v5017, %v5018
      %v5020 = vsel %vm5010, %v4943, 0.0
      %v5021 = vadd.f32 %v5019, %v5020
      %v5022 = vsel %vm5010, %v4946, 0.0
      %v5023 = vadd.f32 %v5021, %v5022
      %v5024 = vsel %vm5010, %v4948, 0.0
      %v5025 = vadd.f32 %v5023, %v5024
      %v5026 = vsel %vm5010, %v4951, 0.0
      %v5027 = vadd.f32 %v5025, %v5026
      %v5028 = vsel %vm5010, %v4953, 0.0
      %v5029 = vadd.f32 %v5027, %v5028
      %v5030 = vsel %vm5010, %v4956, 0.0
      %v5031 = vadd.f32 %v5029, %v5030
      %v5032 = vsel %vm5010, %v4958, 0.0
      %v5033 = vadd.f32 %v5031, %v5032
      %v5034 = vsel %vm5010, %v4961, 0.0
      %v5035 = vadd.f32 %v5033, %v5034
      %v5036 = vsel %vm5010, %v4963, 0.0
      %v5037 = vadd.f32 %v5035, %v5036
      %v5038 = vsel %vm5010, %v4966, 0.0
      %v5039 = vadd.f32 %v5037, %v5038
      %v5040 = vsel %vm5010, %v4968, 0.0
      %v5041 = vadd.f32 %v5039, %v5040
      %v5042 = vsel %vm5010, %v4971, 0.0
      %v5043 = vadd.f32 %v5041, %v5042
      %v5044 = vsel %vm5010, %v4973, 0.0
      %v5045 = vadd.f32 %v5043, %v5044
      %v5046 = vsel %vm5010, %v4976, 0.0
      %v5047 = vadd.f32 %v5045, %v5046
      %v5048 = vsel %vm5010, %v4978, 0.0
      %v5049 = vadd.f32 %v5047, %v5048
      %v5050 = vsel %vm5010, %v4981, 0.0
      %v5051 = vadd.f32 %v5049, %v5050
      %v5052 = vsel %vm5010, %v4983, 0.0
      %v5053 = vadd.f32 %v5051, %v5052
      %v5054 = vsel %vm5010, %v4986, 0.0
      %v5055 = vadd.f32 %v5053, %v5054
      %v5056 = vsel %vm5010, %v4988, 0.0
      %v5057 = vadd.f32 %v5055, %v5056
      %v5058 = vsel %vm5010, %v4991, 0.0
      %v5059 = vadd.f32 %v5057, %v5058
      %v5060 = vsel %vm5010, %v4993, 0.0
      %v5061 = vadd.f32 %v5059, %v5060
      %v5062 = vsel %vm5010, %v4996, 0.0
      %v5063 = vadd.f32 %v5061, %v5062
      %v5064 = vsel %vm5010, %v4998, 0.0
      %v5065 = vadd.f32 %v5063, %v5064
      %v5066 = vsel %vm5010, %v5001, 0.0
      %v5067 = vadd.f32 %v5065, %v5066
      %v5068 = vsel %vm5010, %v5003, 0.0
      %v5069 = vadd.f32 %v5067, %v5068
      %v5070 = vsel %vm5010, %v5006, 0.0
      %v5071 = vadd.f32 %v5069, %v5070
      %v5072 = vsel %vm5010, %v5008, 0.0
      %v5073 = vadd.f32 %v5071, %v5072
      %v5074 = vrot.slane %v5073, 4
      %v5075 = vadd.f32 %v5073, %v5074
      %v5076 = vrot.slane %v5075, 2
      %v5077 = vadd.f32 %v5075, %v5076
      %v5078 = vrot.slane %v5077, 1
      %v5079 = vadd.f32 %v5077, %v5078
      %v5080 = vmul.f32 %v5079, %v942
      %v5081 = vmul.f32 %v4931, %v4931
      %v5082 = vmul.f32 %v4933, %v4933
      %v5083 = vmul.f32 %v4936, %v4936
      %v5084 = vmul.f32 %v4938, %v4938
      %v5085 = vmul.f32 %v4941, %v4941
      %v5086 = vmul.f32 %v4943, %v4943
      %v5087 = vmul.f32 %v4946, %v4946
      %v5088 = vmul.f32 %v4948, %v4948
      %v5089 = vmul.f32 %v4951, %v4951
      %v5090 = vmul.f32 %v4953, %v4953
      %v5091 = vmul.f32 %v4956, %v4956
      %v5092 = vmul.f32 %v4958, %v4958
      %v5093 = vmul.f32 %v4961, %v4961
      %v5094 = vmul.f32 %v4963, %v4963
      %v5095 = vmul.f32 %v4966, %v4966
      %v5096 = vmul.f32 %v4968, %v4968
      %v5097 = vmul.f32 %v4971, %v4971
      %v5098 = vmul.f32 %v4973, %v4973
      %v5099 = vmul.f32 %v4976, %v4976
      %v5100 = vmul.f32 %v4978, %v4978
      %v5101 = vmul.f32 %v4981, %v4981
      %v5102 = vmul.f32 %v4983, %v4983
      %v5103 = vmul.f32 %v4986, %v4986
      %v5104 = vmul.f32 %v4988, %v4988
      %v5105 = vmul.f32 %v4991, %v4991
      %v5106 = vmul.f32 %v4993, %v4993
      %v5107 = vmul.f32 %v4996, %v4996
      %v5108 = vmul.f32 %v4998, %v4998
      %v5109 = vmul.f32 %v5001, %v5001
      %v5110 = vmul.f32 %v5003, %v5003
      %v5111 = vmul.f32 %v5006, %v5006
      %v5112 = vmul.f32 %v5008, %v5008
      %v5113 = vsel %vm5010, %v5081, 0.0
      %v5114 = vsel %vm5010, %v5082, 0.0
      %v5115 = vadd.f32 %v5113, %v5114
      %v5116 = vsel %vm5010, %v5083, 0.0
      %v5117 = vadd.f32 %v5115, %v5116
      %v5118 = vsel %vm5010, %v5084, 0.0
      %v5119 = vadd.f32 %v5117, %v5118
      %v5120 = vsel %vm5010, %v5085, 0.0
      %v5121 = vadd.f32 %v5119, %v5120
      %v5122 = vsel %vm5010, %v5086, 0.0
      %v5123 = vadd.f32 %v5121, %v5122
      %v5124 = vsel %vm5010, %v5087, 0.0
      %v5125 = vadd.f32 %v5123, %v5124
      %v5126 = vsel %vm5010, %v5088, 0.0
      %v5127 = vadd.f32 %v5125, %v5126
      %v5128 = vsel %vm5010, %v5089, 0.0
      %v5129 = vadd.f32 %v5127, %v5128
      %v5130 = vsel %vm5010, %v5090, 0.0
      %v5131 = vadd.f32 %v5129, %v5130
      %v5132 = vsel %vm5010, %v5091, 0.0
      %v5133 = vadd.f32 %v5131, %v5132
      %v5134 = vsel %vm5010, %v5092, 0.0
      %v5135 = vadd.f32 %v5133, %v5134
      %v5136 = vsel %vm5010, %v5093, 0.0
      %v5137 = vadd.f32 %v5135, %v5136
      %v5138 = vsel %vm5010, %v5094, 0.0
      %v5139 = vadd.f32 %v5137, %v5138
      %v5140 = vsel %vm5010, %v5095, 0.0
      %v5141 = vadd.f32 %v5139, %v5140
      %v5142 = vsel %vm5010, %v5096, 0.0
      %v5143 = vadd.f32 %v5141, %v5142
      %v5144 = vsel %vm5010, %v5097, 0.0
      %v5145 = vadd.f32 %v5143, %v5144
      %v5146 = vsel %vm5010, %v5098, 0.0
      %v5147 = vadd.f32 %v5145, %v5146
      %v5148 = vsel %vm5010, %v5099, 0.0
      %v5149 = vadd.f32 %v5147, %v5148
      %v5150 = vsel %vm5010, %v5100, 0.0
      %v5151 = vadd.f32 %v5149, %v5150
      %v5152 = vsel %vm5010, %v5101, 0.0
      %v5153 = vadd.f32 %v5151, %v5152
      %v5154 = vsel %vm5010, %v5102, 0.0
      %v5155 = vadd.f32 %v5153, %v5154
      %v5156 = vsel %vm5010, %v5103, 0.0
      %v5157 = vadd.f32 %v5155, %v5156
      %v5158 = vsel %vm5010, %v5104, 0.0
      %v5159 = vadd.f32 %v5157, %v5158
      %v5160 = vsel %vm5010, %v5105, 0.0
      %v5161 = vadd.f32 %v5159, %v5160
      %v5162 = vsel %vm5010, %v5106, 0.0
      %v5163 = vadd.f32 %v5161, %v5162
      %v5164 = vsel %vm5010, %v5107, 0.0
      %v5165 = vadd.f32 %v5163, %v5164
      %v5166 = vsel %vm5010, %v5108, 0.0
      %v5167 = vadd.f32 %v5165, %v5166
      %v5168 = vsel %vm5010, %v5109, 0.0
      %v5169 = vadd.f32 %v5167, %v5168
      %v5170 = vsel %vm5010, %v5110, 0.0
      %v5171 = vadd.f32 %v5169, %v5170
      %v5172 = vsel %vm5010, %v5111, 0.0
      %v5173 = vadd.f32 %v5171, %v5172
      %v5174 = vsel %vm5010, %v5112, 0.0
      %v5175 = vadd.f32 %v5173, %v5174
      %v5176 = vrot.slane %v5175, 4
      %v5177 = vadd.f32 %v5175, %v5176
      %v5178 = vrot.slane %v5177, 2
      %v5179 = vadd.f32 %v5177, %v5178
      %v5180 = vrot.slane %v5179, 1
      %v5181 = vadd.f32 %v5179, %v5180
      %v5182 = vmul.f32 %v5181, %v942
      %v5183 = vsel %vm5010, %v778, 0.0
      %v5184 = vsel %vm5010, %v780, 0.0
      %v5185 = vadd.f32 %v5183, %v5184
      %v5186 = vsel %vm5010, %v783, 0.0
      %v5187 = vadd.f32 %v5185, %v5186
      %v5188 = vsel %vm5010, %v785, 0.0
      %v5189 = vadd.f32 %v5187, %v5188
      %v5190 = vsel %vm5010, %v788, 0.0
      %v5191 = vadd.f32 %v5189, %v5190
      %v5192 = vsel %vm5010, %v790, 0.0
      %v5193 = vadd.f32 %v5191, %v5192
      %v5194 = vsel %vm5010, %v793, 0.0
      %v5195 = vadd.f32 %v5193, %v5194
      %v5196 = vsel %vm5010, %v795, 0.0
      %v5197 = vadd.f32 %v5195, %v5196
      %v5198 = vsel %vm5010, %v798, 0.0
      %v5199 = vadd.f32 %v5197, %v5198
      %v5200 = vsel %vm5010, %v800, 0.0
      %v5201 = vadd.f32 %v5199, %v5200
      %v5202 = vsel %vm5010, %v803, 0.0
      %v5203 = vadd.f32 %v5201, %v5202
      %v5204 = vsel %vm5010, %v805, 0.0
      %v5205 = vadd.f32 %v5203, %v5204
      %v5206 = vsel %vm5010, %v808, 0.0
      %v5207 = vadd.f32 %v5205, %v5206
      %v5208 = vsel %vm5010, %v810, 0.0
      %v5209 = vadd.f32 %v5207, %v5208
      %v5210 = vsel %vm5010, %v813, 0.0
      %v5211 = vadd.f32 %v5209, %v5210
      %v5212 = vsel %vm5010, %v815, 0.0
      %v5213 = vadd.f32 %v5211, %v5212
      %v5214 = vsel %vm5010, %v818, 0.0
      %v5215 = vadd.f32 %v5213, %v5214
      %v5216 = vsel %vm5010, %v820, 0.0
      %v5217 = vadd.f32 %v5215, %v5216
      %v5218 = vsel %vm5010, %v823, 0.0
      %v5219 = vadd.f32 %v5217, %v5218
      %v5220 = vsel %vm5010, %v825, 0.0
      %v5221 = vadd.f32 %v5219, %v5220
      %v5222 = vsel %vm5010, %v828, 0.0
      %v5223 = vadd.f32 %v5221, %v5222
      %v5224 = vsel %vm5010, %v830, 0.0
      %v5225 = vadd.f32 %v5223, %v5224
      %v5226 = vsel %vm5010, %v833, 0.0
      %v5227 = vadd.f32 %v5225, %v5226
      %v5228 = vsel %vm5010, %v835, 0.0
      %v5229 = vadd.f32 %v5227, %v5228
      %v5230 = vsel %vm5010, %v838, 0.0
      %v5231 = vadd.f32 %v5229, %v5230
      %v5232 = vsel %vm5010, %v840, 0.0
      %v5233 = vadd.f32 %v5231, %v5232
      %v5234 = vsel %vm5010, %v843, 0.0
      %v5235 = vadd.f32 %v5233, %v5234
      %v5236 = vsel %vm5010, %v845, 0.0
      %v5237 = vadd.f32 %v5235, %v5236
      %v5238 = vsel %vm5010, %v848, 0.0
      %v5239 = vadd.f32 %v5237, %v5238
      %v5240 = vsel %vm5010, %v850, 0.0
      %v5241 = vadd.f32 %v5239, %v5240
      %v5242 = vsel %vm5010, %v853, 0.0
      %v5243 = vadd.f32 %v5241, %v5242
      %v5244 = vsel %vm5010, %v855, 0.0
      %v5245 = vadd.f32 %v5243, %v5244
      %v5246 = vrot.slane %v5245, 4
      %v5247 = vadd.f32 %v5245, %v5246
      %v5248 = vrot.slane %v5247, 2
      %v5249 = vadd.f32 %v5247, %v5248
      %v5250 = vrot.slane %v5249, 1
      %v5251 = vadd.f32 %v5249, %v5250
      %v5252 = vmul.f32 %v5251, %v942
      %v5253 = vmul.f32 %v778, %v778
      %v5254 = vmul.f32 %v780, %v780
      %v5255 = vmul.f32 %v783, %v783
      %v5256 = vmul.f32 %v785, %v785
      %v5257 = vmul.f32 %v788, %v788
      %v5258 = vmul.f32 %v790, %v790
      %v5259 = vmul.f32 %v793, %v793
      %v5260 = vmul.f32 %v795, %v795
      %v5261 = vmul.f32 %v798, %v798
      %v5262 = vmul.f32 %v800, %v800
      %v5263 = vmul.f32 %v803, %v803
      %v5264 = vmul.f32 %v805, %v805
      %v5265 = vmul.f32 %v808, %v808
      %v5266 = vmul.f32 %v810, %v810
      %v5267 = vmul.f32 %v813, %v813
      %v5268 = vmul.f32 %v815, %v815
      %v5269 = vmul.f32 %v818, %v818
      %v5270 = vmul.f32 %v820, %v820
      %v5271 = vmul.f32 %v823, %v823
      %v5272 = vmul.f32 %v825, %v825
      %v5273 = vmul.f32 %v828, %v828
      %v5274 = vmul.f32 %v830, %v830
      %v5275 = vmul.f32 %v833, %v833
      %v5276 = vmul.f32 %v835, %v835
      %v5277 = vmul.f32 %v838, %v838
      %v5278 = vmul.f32 %v840, %v840
      %v5279 = vmul.f32 %v843, %v843
      %v5280 = vmul.f32 %v845, %v845
      %v5281 = vmul.f32 %v848, %v848
      %v5282 = vmul.f32 %v850, %v850
      %v5283 = vmul.f32 %v853, %v853
      %v5284 = vmul.f32 %v855, %v855
      %v5285 = vsel %vm5010, %v5253, 0.0
      %v5286 = vsel %vm5010, %v5254, 0.0
      %v5287 = vadd.f32 %v5285, %v5286
      %v5288 = vsel %vm5010, %v5255, 0.0
      %v5289 = vadd.f32 %v5287, %v5288
      %v5290 = vsel %vm5010, %v5256, 0.0
      %v5291 = vadd.f32 %v5289, %v5290
      %v5292 = vsel %vm5010, %v5257, 0.0
      %v5293 = vadd.f32 %v5291, %v5292
      %v5294 = vsel %vm5010, %v5258, 0.0
      %v5295 = vadd.f32 %v5293, %v5294
      %v5296 = vsel %vm5010, %v5259, 0.0
      %v5297 = vadd.f32 %v5295, %v5296
      %v5298 = vsel %vm5010, %v5260, 0.0
      %v5299 = vadd.f32 %v5297, %v5298
      %v5300 = vsel %vm5010, %v5261, 0.0
      %v5301 = vadd.f32 %v5299, %v5300
      %v5302 = vsel %vm5010, %v5262, 0.0
      %v5303 = vadd.f32 %v5301, %v5302
      %v5304 = vsel %vm5010, %v5263, 0.0
      %v5305 = vadd.f32 %v5303, %v5304
      %v5306 = vsel %vm5010, %v5264, 0.0
      %v5307 = vadd.f32 %v5305, %v5306
      %v5308 = vsel %vm5010, %v5265, 0.0
      %v5309 = vadd.f32 %v5307, %v5308
      %v5310 = vsel %vm5010, %v5266, 0.0
      %v5311 = vadd.f32 %v5309, %v5310
      %v5312 = vsel %vm5010, %v5267, 0.0
      %v5313 = vadd.f32 %v5311, %v5312
      %v5314 = vsel %vm5010, %v5268, 0.0
      %v5315 = vadd.f32 %v5313, %v5314
      %v5316 = vsel %vm5010, %v5269, 0.0
      %v5317 = vadd.f32 %v5315, %v5316
      %v5318 = vsel %vm5010, %v5270, 0.0
      %v5319 = vadd.f32 %v5317, %v5318
      %v5320 = vsel %vm5010, %v5271, 0.0
      %v5321 = vadd.f32 %v5319, %v5320
      %v5322 = vsel %vm5010, %v5272, 0.0
      %v5323 = vadd.f32 %v5321, %v5322
      %v5324 = vsel %vm5010, %v5273, 0.0
      %v5325 = vadd.f32 %v5323, %v5324
      %v5326 = vsel %vm5010, %v5274, 0.0
      %v5327 = vadd.f32 %v5325, %v5326
      %v5328 = vsel %vm5010, %v5275, 0.0
      %v5329 = vadd.f32 %v5327, %v5328
      %v5330 = vsel %vm5010, %v5276, 0.0
      %v5331 = vadd.f32 %v5329, %v5330
      %v5332 = vsel %vm5010, %v5277, 0.0
      %v5333 = vadd.f32 %v5331, %v5332
      %v5334 = vsel %vm5010, %v5278, 0.0
      %v5335 = vadd.f32 %v5333, %v5334
      %v5336 = vsel %vm5010, %v5279, 0.0
      %v5337 = vadd.f32 %v5335, %v5336
      %v5338 = vsel %vm5010, %v5280, 0.0
      %v5339 = vadd.f32 %v5337, %v5338
      %v5340 = vsel %vm5010, %v5281, 0.0
      %v5341 = vadd.f32 %v5339, %v5340
      %v5342 = vsel %vm5010, %v5282, 0.0
      %v5343 = vadd.f32 %v5341, %v5342
      %v5344 = vsel %vm5010, %v5283, 0.0
      %v5345 = vadd.f32 %v5343, %v5344
      %v5346 = vsel %vm5010, %v5284, 0.0
      %v5347 = vadd.f32 %v5345, %v5346
      %v5348 = vrot.slane %v5347, 4
      %v5349 = vadd.f32 %v5347, %v5348
      %v5350 = vrot.slane %v5349, 2
      %v5351 = vadd.f32 %v5349, %v5350
      %v5352 = vrot.slane %v5351, 1
      %v5353 = vadd.f32 %v5351, %v5352
      %v5354 = vmul.f32 %v5353, %v942
      %v5355 = vsel %vm1046, %v5080, %v5182
      %v5356 = vsel %vm2772, %v5355, %v5252
      %vm5357 = vcmask 1042432
      %v5358 = vsel %vm5357, %v5356, %v5354
      %v5359 = vld [vmem:[%s15] sm:$0xff]
      %v5360 = vld [vmem:[%s15 + $0x8] sm:$0xff]
      %v5361 = vld [vmem:[%s15 + $0x10] sm:$0xff]
      %v5362 = vld [vmem:[%s15 + $0x18] sm:$0xff]
      %v5363 = vld [vmem:[%s15 + $0x20] sm:$0xff]
      %v5364 = vld [vmem:[%s15 + $0x28] sm:$0xff]
      %v5365 = vld [vmem:[%s15 + $0x30] sm:$0xff]
      %v5366 = vld [vmem:[%s15 + $0x38] sm:$0xff]
      %v5368 = vsel %vm5010, %v5358, 0
      %5370 = vmatpush.msra.mxu0 0.0
      %5371 = vmatpush.msra.mxu0 0.0
      %5372 = vmatpush.msra.mxu0 0.0
      %5373 = vmatpush.msra.mxu0 0.0
      %5374 = vmatpush.msra.mxu0 0.0
      %5375 = vmatpush.msra.mxu0 0.0
      %5376 = vmatpush.msra.mxu0 0.0
      %5377 = vmatpush.msra.mxu0 0.0
      %5378 = vmatpush.msra.mxu0 %v5366
      %5379 = vmatpush.msra.mxu0 %v5365
      %5380 = vmatpush.msra.mxu0 %v5364
      %5381 = vmatpush.msra.mxu0 %v5363
      %5382 = vmatpush.msra.mxu0 %v5362
      %5383 = vmatpush.msra.mxu0 %v5361
      %5384 = vmatpush.msra.mxu0 %v5360
      %5385 = vmatpush.msra.mxu0 %v5359
      %5386 = vmatmul.f32.gmra.mxu0 %v5368
      %v5387 = vpop.f32.mrf.mxu0
      %v5388 = vadd.f32 0.0, %v5387
      %5389 = vdwg.mxu0
      %v5390 = vld [vmem:[%s16] sm:$0xff]
      %v5391 = vld [vmem:[%s16 + $0x8] sm:$0xff]
      %v5392 = vld [vmem:[%s16 + $0x10] sm:$0xff]
      %v5393 = vld [vmem:[%s16 + $0x18] sm:$0xff]
      %v5395 = vsel %vm614, %v5388, 0
      %5397 = vmatpush.msra.mxu0 0.0
      %5398 = vmatpush.msra.mxu0 0.0
      %5399 = vmatpush.msra.mxu0 0.0
      %5400 = vmatpush.msra.mxu0 0.0
      %5401 = vmatpush.msra.mxu0 0.0
      %5402 = vmatpush.msra.mxu0 0.0
      %5403 = vmatpush.msra.mxu0 0.0
      %5404 = vmatpush.msra.mxu0 0.0
      %5405 = vmatpush.msra.mxu0 0.0
      %5406 = vmatpush.msra.mxu0 0.0
      %5407 = vmatpush.msra.mxu0 0.0
      %5408 = vmatpush.msra.mxu0 0.0
      %5409 = vmatpush.msra.mxu0 %v5393
      %5410 = vmatpush.msra.mxu0 %v5392
      %5411 = vmatpush.msra.mxu0 %v5391
      %5412 = vmatpush.msra.mxu0 %v5390
      %5413 = vmatmul.f32.gmra.mxu0 %v5395
      %v5414 = vpop.f32.mrf.mxu0
      %v5415 = vadd.f32 0.0, %v5414
      %5416 = vdwg.mxu0
      %v5417 = vld [vmem:[%s9] sm:$0x1]
      %v5418 = vmul.f32 %v5415, %v5415
      %v5420 = vrot.slane %v5418, 7
      %v5422 = vsub.f32 %v5415, %v5420
      %v5423 = vmax.f32 %v5422, 0.0
      %v5424 = vadd.f32 %v5423, 1e-05
      %v5425 = vrsqrt.pop %v5424
      %v5426 = vmul.f32 %v5425, %v5424
      %v5427 = vmul.f32 %v5426, %v5425
      %v5428 = vmul.f32 0.5, %v5427
      %v5429 = vsub.f32 1.5, %v5428
      %v5430 = vmul.f32 %v5425, %v5429
      %vm5431 = vweird.f32 %v5424
      %vm5432 = vweird.f32 %v5425
      %vm5433 = vmor %vm5431, %vm5432
      %v5434 = vsel %vm5433, %v5425, %v5430
      %5436 = vst [vmem:[#allocation1] sm:$0xff] %v5434
      %s5437 = scalar_lea.vmem [#allocation1], 1
      %v5438 = vld [vmem:[%s5437] ss:$9 sm:$0xff]
      %v5440 = vmul.f32 %v5417, %v5438
      %v5441 = vld [vmem:[%s10] sm:$0x1]
      %v5442 = vmul.f32 %v5415, %v5440
      %v5443 = vsub.f32 %v5441, %v5442
      %v5444 = vld [vmem:[%s11] sm:$0x1]
      %5445 = vst [vmem:[#allocation1] sm:$0xff] %v5434
      %s5446 = scalar_lea.vmem [#allocation1], 3
      %v5447 = vld [vmem:[%s5446] ss:$9 sm:$0xff]
      %v5449 = vmul.f32 %v5444, %v5447
      %v5450 = vld [vmem:[%s12] sm:$0x1]
      %v5452 = vperm.slane %v5449, 0
      %v5454 = vmul.f32 %v5415, %v5452
      %5456 = vst [vmem:[#allocation1] sm:$0xff] %v5454
      %s5457 = scalar_lea.vmem [#allocation1], 2
      %v5458 = vld [vmem:[%s5457] ss:$9 sm:$0xff]
      %v5460 = vsub.f32 %v5450, %v5458
      %v5462 = vperm.slane %v5440, 0
      %v5464 = vmul.f32 %v4931, %v5462
      %v5465 = vmul.f32 %v4933, %v5462
      %v5466 = vmul.f32 %v4936, %v5462
      %v5467 = vmul.f32 %v4938, %v5462
      %v5468 = vmul.f32 %v4941, %v5462
      %v5469 = vmul.f32 %v4943, %v5462
      %v5470 = vmul.f32 %v4946, %v5462
      %v5471 = vmul.f32 %v4948, %v5462
      %v5472 = vmul.f32 %v4951, %v5462
      %v5473 = vmul.f32 %v4953, %v5462
      %v5474 = vmul.f32 %v4956, %v5462
      %v5475 = vmul.f32 %v4958, %v5462
      %v5476 = vmul.f32 %v4961, %v5462
      %v5477 = vmul.f32 %v4963, %v5462
      %v5478 = vmul.f32 %v4966, %v5462
      %v5479 = vmul.f32 %v4968, %v5462
      %v5480 = vmul.f32 %v4971, %v5462
      %v5481 = vmul.f32 %v4973, %v5462
      %v5482 = vmul.f32 %v4976, %v5462
      %v5483 = vmul.f32 %v4978, %v5462
      %v5484 = vmul.f32 %v4981, %v5462
      %v5485 = vmul.f32 %v4983, %v5462
      %v5486 = vmul.f32 %v4986, %v5462
      %v5487 = vmul.f32 %v4988, %v5462
      %v5488 = vmul.f32 %v4991, %v5462
      %v5489 = vmul.f32 %v4993, %v5462
      %v5490 = vmul.f32 %v4996, %v5462
      %v5491 = vmul.f32 %v4998, %v5462
      %v5492 = vmul.f32 %v5001, %v5462
      %v5493 = vmul.f32 %v5003, %v5462
      %v5494 = vmul.f32 %v5006, %v5462
      %v5495 = vmul.f32 %v5008, %v5462
      %v5497 = vperm.slane %v5443, 0
      %v5499 = vadd.f32 %v5464, %v5497
      %v5500 = vadd.f32 %v5465, %v5497
      %v5501 = vadd.f32 %v5466, %v5497
      %v5502 = vadd.f32 %v5467, %v5497
      %v5503 = vadd.f32 %v5468, %v5497
      %v5504 = vadd.f32 %v5469, %v5497
      %v5505 = vadd.f32 %v5470, %v5497
      %v5506 = vadd.f32 %v5471, %v5497
      %v5507 = vadd.f32 %v5472, %v5497
      %v5508 = vadd.f32 %v5473, %v5497
      %v5509 = vadd.f32 %v5474, %v5497
      %v5510 = vadd.f32 %v5475, %v5497
      %v5511 = vadd.f32 %v5476, %v5497
      %v5512 = vadd.f32 %v5477, %v5497
      %v5513 = vadd.f32 %v5478, %v5497
      %v5514 = vadd.f32 %v5479, %v5497
      %v5515 = vadd.f32 %v5480, %v5497
      %v5516 = vadd.f32 %v5481, %v5497
      %v5517 = vadd.f32 %v5482, %v5497
      %v5518 = vadd.f32 %v5483, %v5497
      %v5519 = vadd.f32 %v5484, %v5497
      %v5520 = vadd.f32 %v5485, %v5497
      %v5521 = vadd.f32 %v5486, %v5497
      %v5522 = vadd.f32 %v5487, %v5497
      %v5523 = vadd.f32 %v5488, %v5497
      %v5524 = vadd.f32 %v5489, %v5497
      %v5525 = vadd.f32 %v5490, %v5497
      %v5526 = vadd.f32 %v5491, %v5497
      %v5527 = vadd.f32 %v5492, %v5497
      %v5528 = vadd.f32 %v5493, %v5497
      %v5529 = vadd.f32 %v5494, %v5497
      %v5530 = vadd.f32 %v5495, %v5497
      %v5531 = vmul.f32 %v778, %v5452
      %v5532 = vmul.f32 %v780, %v5452
      %v5533 = vmul.f32 %v783, %v5452
      %v5534 = vmul.f32 %v785, %v5452
      %v5535 = vmul.f32 %v788, %v5452
      %v5536 = vmul.f32 %v790, %v5452
      %v5537 = vmul.f32 %v793, %v5452
      %v5538 = vmul.f32 %v795, %v5452
      %v5539 = vmul.f32 %v798, %v5452
      %v5540 = vmul.f32 %v800, %v5452
      %v5541 = vmul.f32 %v803, %v5452
      %v5542 = vmul.f32 %v805, %v5452
      %v5543 = vmul.f32 %v808, %v5452
      %v5544 = vmul.f32 %v810, %v5452
      %v5545 = vmul.f32 %v813, %v5452
      %v5546 = vmul.f32 %v815, %v5452
      %v5547 = vmul.f32 %v818, %v5452
      %v5548 = vmul.f32 %v820, %v5452
      %v5549 = vmul.f32 %v823, %v5452
      %v5550 = vmul.f32 %v825, %v5452
      %v5551 = vmul.f32 %v828, %v5452
      %v5552 = vmul.f32 %v830, %v5452
      %v5553 = vmul.f32 %v833, %v5452
      %v5554 = vmul.f32 %v835, %v5452
      %v5555 = vmul.f32 %v838, %v5452
      %v5556 = vmul.f32 %v840, %v5452
      %v5557 = vmul.f32 %v843, %v5452
      %v5558 = vmul.f32 %v845, %v5452
      %v5559 = vmul.f32 %v848, %v5452
      %v5560 = vmul.f32 %v850, %v5452
      %v5561 = vmul.f32 %v853, %v5452
      %v5562 = vmul.f32 %v855, %v5452
      %v5563 = vadd.f32 %v5499, %v5531
      %v5564 = vadd.f32 %v5500, %v5532
      %v5565 = vadd.f32 %v5501, %v5533
      %v5566 = vadd.f32 %v5502, %v5534
      %v5567 = vadd.f32 %v5503, %v5535
      %v5568 = vadd.f32 %v5504, %v5536
      %v5569 = vadd.f32 %v5505, %v5537
      %v5570 = vadd.f32 %v5506, %v5538
      %v5571 = vadd.f32 %v5507, %v5539
      %v5572 = vadd.f32 %v5508, %v5540
      %v5573 = vadd.f32 %v5509, %v5541
      %v5574 = vadd.f32 %v5510, %v5542
      %v5575 = vadd.f32 %v5511, %v5543
      %v5576 = vadd.f32 %v5512, %v5544
      %v5577 = vadd.f32 %v5513, %v5545
      %v5578 = vadd.f32 %v5514, %v5546
      %v5579 = vadd.f32 %v5515, %v5547
      %v5580 = vadd.f32 %v5516, %v5548
      %v5581 = vadd.f32 %v5517, %v5549
      %v5582 = vadd.f32 %v5518, %v5550
      %v5583 = vadd.f32 %v5519, %v5551
      %v5584 = vadd.f32 %v5520, %v5552
      %v5585 = vadd.f32 %v5521, %v5553
      %v5586 = vadd.f32 %v5522, %v5554
      %v5587 = vadd.f32 %v5523, %v5555
      %v5588 = vadd.f32 %v5524, %v5556
      %v5589 = vadd.f32 %v5525, %v5557
      %v5590 = vadd.f32 %v5526, %v5558
      %v5591 = vadd.f32 %v5527, %v5559
      %v5592 = vadd.f32 %v5528, %v5560
      %v5593 = vadd.f32 %v5529, %v5561
      %v5594 = vadd.f32 %v5530, %v5562
      %v5596 = vperm.slane %v5460, 0
      %v5598 = vadd.f32 %v5563, %v5596
      %v5599 = vadd.f32 %v5564, %v5596
      %v5600 = vadd.f32 %v5565, %v5596
      %v5601 = vadd.f32 %v5566, %v5596
      %v5602 = vadd.f32 %v5567, %v5596
      %v5603 = vadd.f32 %v5568, %v5596
      %v5604 = vadd.f32 %v5569, %v5596
      %v5605 = vadd.f32 %v5570, %v5596
      %v5606 = vadd.f32 %v5571, %v5596
      %v5607 = vadd.f32 %v5572, %v5596
      %v5608 = vadd.f32 %v5573, %v5596
      %v5609 = vadd.f32 %v5574, %v5596
      %v5610 = vadd.f32 %v5575, %v5596
      %v5611 = vadd.f32 %v5576, %v5596
      %v5612 = vadd.f32 %v5577, %v5596
      %v5613 = vadd.f32 %v5578, %v5596
      %v5614 = vadd.f32 %v5579, %v5596
      %v5615 = vadd.f32 %v5580, %v5596
      %v5616 = vadd.f32 %v5581, %v5596
      %v5617 = vadd.f32 %v5582, %v5596
      %v5618 = vadd.f32 %v5583, %v5596
      %v5619 = vadd.f32 %v5584, %v5596
      %v5620 = vadd.f32 %v5585, %v5596
      %v5621 = vadd.f32 %v5586, %v5596
      %v5622 = vadd.f32 %v5587, %v5596
      %v5623 = vadd.f32 %v5588, %v5596
      %v5624 = vadd.f32 %v5589, %v5596
      %v5625 = vadd.f32 %v5590, %v5596
      %v5626 = vadd.f32 %v5591, %v5596
      %v5627 = vadd.f32 %v5592, %v5596
      %v5628 = vadd.f32 %v5593, %v5596
      %v5629 = vadd.f32 %v5594, %v5596
      %v5630 = vmax.f32 %v5598, 0.0
      %v5631 = vmax.f32 %v5599, 0.0
      %v5632 = vmax.f32 %v5600, 0.0
      %v5633 = vmax.f32 %v5601, 0.0
      %v5634 = vmax.f32 %v5602, 0.0
      %v5635 = vmax.f32 %v5603, 0.0
      %v5636 = vmax.f32 %v5604, 0.0
      %v5637 = vmax.f32 %v5605, 0.0
      %v5638 = vmax.f32 %v5606, 0.0
      %v5639 = vmax.f32 %v5607, 0.0
      %v5640 = vmax.f32 %v5608, 0.0
      %v5641 = vmax.f32 %v5609, 0.0
      %v5642 = vmax.f32 %v5610, 0.0
      %v5643 = vmax.f32 %v5611, 0.0
      %v5644 = vmax.f32 %v5612, 0.0
      %v5645 = vmax.f32 %v5613, 0.0
      %v5646 = vmax.f32 %v5614, 0.0
      %v5647 = vmax.f32 %v5615, 0.0
      %v5648 = vmax.f32 %v5616, 0.0
      %v5649 = vmax.f32 %v5617, 0.0
      %v5650 = vmax.f32 %v5618, 0.0
      %v5651 = vmax.f32 %v5619, 0.0
      %v5652 = vmax.f32 %v5620, 0.0
      %v5653 = vmax.f32 %v5621, 0.0
      %v5654 = vmax.f32 %v5622, 0.0
      %v5655 = vmax.f32 %v5623, 0.0
      %v5656 = vmax.f32 %v5624, 0.0
      %v5657 = vmax.f32 %v5625, 0.0
      %v5658 = vmax.f32 %v5626, 0.0
      %v5659 = vmax.f32 %v5627, 0.0
      %v5660 = vmax.f32 %v5628, 0.0
      %v5661 = vmax.f32 %v5629, 0.0
      %5662 = vst.msk [vmem:[%s548] sm:$0xff] %vm5010, %v5630
      %5663 = vst.msk [vmem:[%s548 + $0x8] sm:$0xff] %vm5010, %v5631
      %5664 = vst.msk [vmem:[%s548 + $0x10] sm:$0xff] %vm5010, %v5632
      %5665 = vst.msk [vmem:[%s548 + $0x18] sm:$0xff] %vm5010, %v5633
      %5666 = vst.msk [vmem:[%s548 + $0x20] sm:$0xff] %vm5010, %v5634
      %5667 = vst.msk [vmem:[%s548 + $0x28] sm:$0xff] %vm5010, %v5635
      %5668 = vst.msk [vmem:[%s548 + $0x30] sm:$0xff] %vm5010, %v5636
      %5669 = vst.msk [vmem:[%s548 + $0x38] sm:$0xff] %vm5010, %v5637
      %5670 = vst.msk [vmem:[%s548 + $0x40] sm:$0xff] %vm5010, %v5638
      %5671 = vst.msk [vmem:[%s548 + $0x48] sm:$0xff] %vm5010, %v5639
      %5672 = vst.msk [vmem:[%s548 + $0x50] sm:$0xff] %vm5010, %v5640
      %5673 = vst.msk [vmem:[%s548 + $0x58] sm:$0xff] %vm5010, %v5641
      %5674 = vst.msk [vmem:[%s548 + $0x60] sm:$0xff] %vm5010, %v5642
      %5675 = vst.msk [vmem:[%s548 + $0x68] sm:$0xff] %vm5010, %v5643
      %5676 = vst.msk [vmem:[%s548 + $0x70] sm:$0xff] %vm5010, %v5644
      %5677 = vst.msk [vmem:[%s548 + $0x78] sm:$0xff] %vm5010, %v5645
      %5678 = vst.msk [vmem:[%s548 + $0x80] sm:$0xff] %vm5010, %v5646
      %5679 = vst.msk [vmem:[%s548 + $0x88] sm:$0xff] %vm5010, %v5647
      %5680 = vst.msk [vmem:[%s548 + $0x90] sm:$0xff] %vm5010, %v5648
      %5681 = vst.msk [vmem:[%s548 + $0x98] sm:$0xff] %vm5010, %v5649
      %5682 = vst.msk [vmem:[%s548 + $0xa0] sm:$0xff] %vm5010, %v5650
      %5683 = vst.msk [vmem:[%s548 + $0xa8] sm:$0xff] %vm5010, %v5651
      %5684 = vst.msk [vmem:[%s548 + $0xb0] sm:$0xff] %vm5010, %v5652
      %5685 = vst.msk [vmem:[%s548 + $0xb8] sm:$0xff] %vm5010, %v5653
      %5686 = vst.msk [vmem:[%s548 + $0xc0] sm:$0xff] %vm5010, %v5654
      %5687 = vst.msk [vmem:[%s548 + $0xc8] sm:$0xff] %vm5010, %v5655
      %5688 = vst.msk [vmem:[%s548 + $0xd0] sm:$0xff] %vm5010, %v5656
      %5689 = vst.msk [vmem:[%s548 + $0xd8] sm:$0xff] %vm5010, %v5657
      %5690 = vst.msk [vmem:[%s548 + $0xe0] sm:$0xff] %vm5010, %v5658
      %5691 = vst.msk [vmem:[%s548 + $0xe8] sm:$0xff] %vm5010, %v5659
      %5692 = vst.msk [vmem:[%s548 + $0xf0] sm:$0xff] %vm5010, %v5660
      %5693 = vst.msk [vmem:[%s548 + $0xf8] sm:$0xff] %vm5010, %v5661
      %p5694 = scmp.lt.s32.totalorder %s28, 1
      %s5695 = scalar_select %p5694, %s28, 1
      %s5696 = smul.addr %s5695, 32
      %s5697 = smul.addr %s5696, 8
      %s5698 = scalar_lea.vmem %s17, %s5697
      // Predicated region
      $region89: #{tpu_custom_call.1} parent=87 // pred_check
        %p5699 = pneg %p408
      $region90: #{tpu_custom_call.1} parent=87 // pred_check_branch
        %5701 = sbr.rel (%p5699) target = $region92
      $region91: #{tpu_custom_call.1} parent=87 // pred_region
        _
      $region92: #{tpu_custom_call.1} parent=87 // pred_fallthru
        _
    $region88: #{tpu_custom_call.1} parent=5 // pred_fallthru
      _
    %p5702 = scmp.le.s32.totalorder 2, %s23
    // Predicated region
    $region93: #{tpu_custom_call.1} parent=5 // pred_check
      %p5703 = pneg %p5702
    $region94: #{tpu_custom_call.1} parent=5 // pred_check_branch
      %5705 = sbr.rel (%p5703) target = $region96
    $region95: #{tpu_custom_call.1} parent=5 // pred_region
      %s5706 = ssub.s32 %s23, 2
      // Predicated region
      $region97: #{tpu_custom_call.1} parent=95 // pred_check
        %p5707 = pneg %p414
      $region98: #{tpu_custom_call.1} parent=95 // pred_check_branch
        %5709 = sbr.rel (%p5707) target = $region100
      $region99: #{tpu_custom_call.1} parent=95 // pred_region
        %p5710 = scmp.lt.s32.totalorder %s29, 1
        %s5711 = scalar_select %p5710, %s29, 1
        %s5712 = smul.addr %s5711, 32
        %s5713 = smul.addr %s5712, 8
        %s5714 = scalar_lea.vmem %s17, %s5713
      $region100: #{tpu_custom_call.1} parent=95 // pred_fallthru
        _
    $region96: #{tpu_custom_call.1} parent=5 // pred_fallthru
      _
  $region6: #{tpu_custom_call.1} parent=0 // loop_footer
    %s27 = sadd.s32 1, %s23
  $region7: #{tpu_custom_call.1} parent=0 // loop_footer_branch
    %22 = sbr.rel target = $region3
  $region8: #{tpu_custom_call.1} parent=0 // loop_exit
    _

</llo_original>
